<compile_context>
chip_gen: v6e
topology: v6e:2x2x1
jax: 0.10.0
libtpu: 0.0.40
codegen_flags: <defaults>
</compile_context>

<pallas_src>
import functools

import jax
import jax.numpy as jnp
from jax import lax
from jax.experimental import pallas as pl
from jax.experimental.pallas import tpu as pltpu

RELU_UPPER_BOUND = 20.0
BN_EPS = 1e-5
NEG_INF = -1e30


# ----------------------------------------------------------------------------
# Planning helpers (generation-aware VMEM limits, tiling)
# ----------------------------------------------------------------------------
def _round_up(x, m):
    return (x + m - 1) // m * m


@functools.lru_cache(maxsize=None)
def _vmem_cap_bytes():
    try:
        return int(pltpu.get_tpu_info().vmem_capacity_bytes)
    except Exception:
        return 128 * 1024 * 1024


@functools.lru_cache(maxsize=None)
def _vmem_limit_bytes():
    # ~48 MiB on v7x (64 MiB physical), 64 MiB on v5e/v6e (128 MiB physical).
    return min(64 * 1024 * 1024, max(16 * 1024 * 1024, (_vmem_cap_bytes() * 3) // 4))


def _largest_divisor_leq(n, target):
    for d in range(min(n, max(target, 1)), 0, -1):
        if n % d == 0:
            return d
    return 1


def _pick_row_tile(M, row_bytes, resident_bytes):
    """Row tile for the GEMM kernel, sized from the VMEM budget; always divides M."""
    budget = max(_vmem_limit_bytes() - resident_bytes, 1 << 20)
    cap = int(min(budget // max(1, 2 * row_bytes), 1024, M))
    cap = max(cap, 8)
    if M <= cap:
        return M
    start = cap - cap % 8
    for cand in range(start, 7, -8):
        if M % cand == 0:
            return cand
    return _largest_divisor_leq(M, cap)


def _plan_time_chunks(T, Bp, C_max, H, G3p):
    """Time-chunk size for the GRU scan from the VMEM budget; T padded to NC*TC."""
    budget = _vmem_limit_bytes()
    fixed = 2 * 2 * (C_max + H) * G3p          # bf16 w_ih + w_hh, double-buffered
    fixed += Bp * H * 4 + (4 << 20)            # h scratch + intermediate/compiler margin
    per_t = Bp * (4 * C_max + 4 * H + 4 * G3p)  # x/out bf16 (2 bufs) + gx f32 scratch
    avail = budget - fixed
    tc = int(max(1, min(avail // per_t if avail > per_t else 1, T, 256)))
    if tc >= 8:
        tc -= tc % 8
    nc = -(-T // tc)
    return tc, nc


# ----------------------------------------------------------------------------
# Fused (sum_j x_j @ w_j) + shift + activation Pallas kernel  (used for the FC head)
# ----------------------------------------------------------------------------
def _mm_affine_kernel(*refs, n_in, act):
    o_ref = refs[-1]
    shift_ref = refs[-2]
    acc = jnp.dot(refs[0][...], refs[1][...], preferred_element_type=jnp.float32)
    for j in range(1, n_in):
        acc = acc + jnp.dot(refs[2 * j][...], refs[2 * j + 1][...],
                            preferred_element_type=jnp.float32)
    y = acc + shift_ref[...]
    if act == "hardtanh":
        y = jnp.clip(y, 0.0, RELU_UPPER_BOUND)
    elif act == "log_softmax":
        y = y - jnp.max(y, axis=-1, keepdims=True)
        y = y - jnp.log(jnp.sum(jnp.exp(y), axis=-1, keepdims=True))
    o_ref[...] = y.astype(o_ref.dtype)


def matmul_affine(x_parts, ws, shift, act="none", out_dtype=jnp.float32,
                  pad_n=False, pad_shift_value=0.0):
    """y = act(sum_j x_j @ w_j + shift); bf16 MXU operands, f32 accumulation.

    x_parts: list of (arr, leading_index).  arr is (M, K_j) if leading_index is None,
    else (S, M, K_j) read at [leading_index] via a squeezed BlockSpec (no HBM slice).
    If pad_n, the N dim is padded to a multiple of 128 (padded w columns zero, padded
    shift entries = pad_shift_value); the caller slices the extra columns off.
    """
    arr0, _ = x_parts[0]
    M = arr0.shape[-2]
    N = ws[0].shape[1]
    Np = _round_up(N, 128) if pad_n else N
    K_total = sum(a.shape[-1] for a, _ in x_parts)

    ws = [w.astype(jnp.bfloat16) for w in ws]
    shift = shift.astype(jnp.float32)
    if Np != N:
        ws = [jnp.pad(w, ((0, 0), (0, Np - N))) for w in ws]
        shift = jnp.pad(shift, (0, Np - N), constant_values=pad_shift_value)

    out_bytes = jnp.dtype(out_dtype).itemsize
    row_bytes = 2 * K_total + out_bytes * Np
    resident = 2 * 2 * K_total * Np + 8 * Np
    tm = _pick_row_tile(M, row_bytes, resident)

    in_specs, args = [], []
    for (arr, li), w in zip(x_parts, ws):
        K = arr.shape[-1]
        if li is None:
            in_specs.append(pl.BlockSpec((tm, K), lambda i: (i, 0)))
        else:
            in_specs.append(pl.BlockSpec((None, tm, K), lambda i, li=li: (li, i, 0)))
        in_specs.append(pl.BlockSpec((K, Np), lambda i: (0, 0)))
        args += [arr.astype(jnp.bfloat16), w]
    in_specs.append(pl.BlockSpec((1, Np), lambda i: (0, 0)))
    args.append(shift.reshape(1, Np))

    return pl.pallas_call(
        functools.partial(_mm_affine_kernel, n_in=len(x_parts), act=act),
        out_shape=jax.ShapeDtypeStruct((M, Np), out_dtype),
        grid=(M // tm,),
        in_specs=in_specs,
        out_specs=pl.BlockSpec((tm, Np), lambda i: (i, 0)),
        compiler_params=pltpu.CompilerParams(
            dimension_semantics=("parallel",),
            vmem_limit_bytes=_vmem_limit_bytes()),
    )(*args)


# ----------------------------------------------------------------------------
# Bidirectional GRU: projection fused into a time-chunked scan kernel
# ----------------------------------------------------------------------------
def _sigmoid(x):
    # EUP tanh instead of a VPU divide on the serial critical path.
    return 0.5 * jnp.tanh(0.5 * x) + 0.5


def _bigru_kernel(*refs, n_parts, TC, Bp, H, G3p, T, Tp, unroll):
    """Grid = (direction, time-chunk).  One direction per program, h carried in VMEM.

    Per-part inputs: x chunk (TC*Bp, C_j) bf16, folded w_ih (C_j, G3p) bf16.
    Then: folded input bias (1, G3p) f32, w_hh (H, G3p) bf16, b_hh (1, G3p) f32.
    Output: hidden states (TC*Bp, H) bf16 written at natural time positions.
    Scratch: h (Bp, H) f32 carried across chunks, gx (TC*Bp, G3p) f32 projections.
    Gate order per direction matches PyTorch: [r, z, n] (+ lane padding to G3p).
    """
    x_refs = [refs[2 * j] for j in range(n_parts)]
    w_refs = [refs[2 * j + 1] for j in range(n_parts)]
    bsh_ref, whh_ref, bhh_ref, out_ref, h_ref, gx_ref = refs[2 * n_parts:]

    d = pl.program_id(0)
    c = pl.program_id(1)

    @pl.when(c == 0)
    def _():
        h_ref[...] = jnp.zeros((Bp, H), jnp.float32)

    # ---- fused input projection for the whole chunk (row-sub-blocked MXU GEMM) ----
    w_mats = [w[...] for w in w_refs]
    bsh = bsh_ref[...]
    SB = min(TC, max(1, 512 // Bp))          # time steps per projection sub-block
    for t0 in range(0, TC, SB):
        tb = min(SB, TC - t0)
        r0, rb = t0 * Bp, tb * Bp
        acc = jnp.dot(x_refs[0][r0:r0 + rb, :], w_mats[0],
                      preferred_element_type=jnp.float32)
        for j in range(1, n_parts):
            acc = acc + jnp.dot(x_refs[j][r0:r0 + rb, :], w_mats[j],
                                preferred_element_type=jnp.float32)
        gx_ref[r0:r0 + rb, :] = acc + bsh

    # ---- serial GRU recurrence over the chunk ----
    whh = whh_ref[...]                       # (H, G3p) bf16
    bhh = bhh_ref[...]                       # (1, G3p) f32
    base = c * TC

    def step(s, h):
        # fwd (d==0): within-chunk row s ; bwd (d==1): row TC-1-s (reverse time order)
        srow = (1 - d) * s + d * (TC - 1 - s)
        off = pl.multiple_of(srow * Bp, Bp)
        gx = gx_ref[pl.ds(off, Bp), :]                                   # (Bp, G3p) f32
        gh = jnp.dot(h.astype(jnp.bfloat16), whh,
                     preferred_element_type=jnp.float32) + bhh           # (Bp, G3p) f32
        rz = _sigmoid(gx[:, 0:2 * H] + gh[:, 0:2 * H])                   # [r | z]
        n = jnp.tanh(gx[:, 2 * H:3 * H] + rz[:, 0:H] * gh[:, 2 * H:3 * H])
        z = rz[:, H:2 * H]
        h_cand = (1.0 - z) * n + z * h
        # padded time steps (>= T) leave h unchanged (bwd pads are processed first)
        abs_s = base + s
        t = (1 - d) * abs_s + d * (Tp - 1 - abs_s)
        valid = (t < T).astype(jnp.float32)
        h_new = valid * h_cand + (1.0 - valid) * h
        out_ref[pl.ds(off, Bp), :] = h_new.astype(out_ref.dtype)
        return h_new

    h_ref[...] = lax.fori_loop(0, TC, step, h_ref[...], unroll=unroll)


def bigru_scan(x_parts, w_parts, b_sh, w_hh, b_hh, T, Tp, Bp, H, G3p, TC, NC):
    """x_parts: list of (arr, leading_index) time-major slabs with Tp*Bp rows.
    Returns (2, Tp*Bp, H) bf16: [0]=forward hidden states, [1]=backward, natural order.
    """
    def chunk(d, c):
        return (1 - d) * c + d * (NC - 1 - c)

    if TC <= 8:
        unroll = TC
    elif TC % 4 == 0:
        unroll = 4
    elif TC % 2 == 0:
        unroll = 2
    else:
        unroll = 1

    in_specs, args = [], []
    for (arr, li), w in zip(x_parts, w_parts):
        C_j = arr.shape[-1]
        if li is None:
            in_specs.append(pl.BlockSpec((TC * Bp, C_j),
                                         lambda d, c: (chunk(d, c), 0)))
        else:
            in_specs.append(pl.BlockSpec((None, TC * Bp, C_j),
                                         lambda d, c, li=li: (li, chunk(d, c), 0)))
        in_specs.append(pl.BlockSpec((None, C_j, G3p), lambda d, c: (d, 0, 0)))
        args += [arr, w]
    in_specs += [
        pl.BlockSpec((None, 1, G3p), lambda d, c: (d, 0, 0)),   # folded input bias
        pl.BlockSpec((None, H, G3p), lambda d, c: (d, 0, 0)),   # w_hh
        pl.BlockSpec((None, 1, G3p), lambda d, c: (d, 0, 0)),   # b_hh
    ]
    args += [b_sh, w_hh, b_hh]

    return pl.pallas_call(
        functools.partial(_bigru_kernel, n_parts=len(x_parts), TC=TC, Bp=Bp, H=H,
                          G3p=G3p, T=T, Tp=Tp, unroll=unroll),
        out_shape=jax.ShapeDtypeStruct((2, Tp * Bp, H), jnp.bfloat16),
        grid=(2, NC),
        in_specs=in_specs,
        out_specs=pl.BlockSpec((None, TC * Bp, H), lambda d, c: (d, chunk(d, c), 0)),
        scratch_shapes=[pltpu.VMEM((Bp, H), jnp.float32),
                        pltpu.VMEM((TC * Bp, G3p), jnp.float32)],
        compiler_params=pltpu.CompilerParams(
            dimension_semantics=("parallel", "arbitrary"),
            vmem_limit_bytes=_vmem_limit_bytes()),
    )(*args)


def gru_block(x_parts, bn, fwd, bwd, T, Tp, Bp, H, TC, NC):
    """Folded BatchNorm1d (eval) + fused bidirectional single-layer GRU."""
    s_bn = bn["gamma"] / jnp.sqrt(bn["var"] + BN_EPS)
    t_bn = bn["beta"] - bn["mean"] * s_bn
    G3p = _round_up(3 * H, 128)
    pad = G3p - 3 * H

    def fold(p):
        w = jnp.pad(p["w_ih_t"] * s_bn[:, None], ((0, 0), (0, pad)))
        sh = jnp.pad(t_bn @ p["w_ih_t"] + p["b_ih"], (0, pad))
        whh = jnp.pad(p["w_hh_t"], ((0, 0), (0, pad)))
        bhh = jnp.pad(p["b_hh"], (0, pad))
        return w, sh, whh, bhh

    wf, shf, whf, bhf = fold(fwd)
    wb, shb, whb, bhb = fold(bwd)
    w_ih = jnp.stack([wf, wb]).astype(jnp.bfloat16)                  # (2, C, G3p)
    b_sh = jnp.stack([shf, shb])[:, None, :].astype(jnp.float32)     # (2, 1, G3p)
    w_hh = jnp.stack([whf, whb]).astype(jnp.bfloat16)                # (2, H, G3p)
    b_hh = jnp.stack([bhf, bhb])[:, None, :].astype(jnp.float32)     # (2, 1, G3p)

    # split the folded input-projection rows to match the x parts
    w_parts, off = [], 0
    for arr, _ in x_parts:
        c = arr.shape[-1]
        w_parts.append(w_ih[:, off:off + c, :])
        off += c

    return bigru_scan(x_parts, w_parts, b_sh, w_hh, b_hh, T, Tp, Bp, H, G3p, TC, NC)


# ----------------------------------------------------------------------------
# Conv stage (XLA conv, BN folded, Hardtanh fused) and full forward
# ----------------------------------------------------------------------------
def conv_bn_hardtanh(x, w, b, gamma, beta, mean, var, stride):
    """Conv2d (valid) + folded eval-mode BatchNorm2d + Hardtanh(0, 20), NCHW layout."""
    s = gamma / jnp.sqrt(var + BN_EPS)
    w_f = (w * s[:, None, None, None]).astype(jnp.bfloat16)
    shift = (beta + (b - mean) * s).astype(jnp.float32)
    y = lax.conv_general_dilated(
        x.astype(jnp.bfloat16), w_f, window_strides=stride, padding="VALID",
        dimension_numbers=("NCHW", "OIHW", "NCHW"),
        preferred_element_type=jnp.float32)
    y = jnp.clip(y + shift[None, :, None, None], 0.0, RELU_UPPER_BOUND)
    return y.astype(jnp.bfloat16)


def conv_out_len(length, kernel, stride, pad=0, delay=1):
    x = length.astype(jnp.float32) + 2 * pad - delay * (kernel - 1) - 1
    return jnp.floor(x / stride + 1).astype(jnp.int32)


def deep_speech_forward(spectrogram, spectrogram_length, params, H, n_blocks):
    B = spectrogram.shape[0]
    x = spectrogram[:, None, :, :]                                   # (B, 1, F, T) NCHW

    # conv_2_layers (eval-mode BatchNorm folded into the conv weights/bias)
    y = conv_bn_hardtanh(x, params["conv1_w"], params["conv1_b"],
                         params["bn1_gamma"], params["bn1_beta"],
                         params["bn1_mean"], params["bn1_var"], (2, 2))
    y = conv_bn_hardtanh(y, params["conv2_w"], params["conv2_b"],
                         params["bn2_gamma"], params["bn2_beta"],
                         params["bn2_mean"], params["bn2_var"], (2, 1))
    Bq, C32, F2, T2 = y.shape
    feat = C32 * F2                              # PyTorch flatten order: c*F2 + f
    Bp = _round_up(max(B, 8), 8)

    G3p = _round_up(3 * H, 128)
    C_max = max(feat, 2 * H)
    TC, NC = _plan_time_chunks(T2, Bp, C_max, H, G3p)
    Tp = TC * NC

    # Time-major RNN input slab (Tp*Bp, feat): rows ordered (t, b); pad time & batch.
    xg = jnp.transpose(y.reshape(Bq, feat, T2), (2, 0, 1))           # (T2, B, feat)
    xg = jnp.pad(xg, ((0, Tp - T2), (0, Bp - B), (0, 0)))
    x_parts = [(xg.reshape(Tp * Bp, feat), None)]

    for i in range(n_blocks):
        p = params["gru"][i]
        bn = {k: p["bn_" + k] for k in ("gamma", "beta", "mean", "var")}
        out = gru_block(x_parts, bn, p["fwd"], p["bwd"], T2, Tp, Bp, H, TC, NC)
        # next layer / FC read the fwd|bwd halves directly (no HBM concat or slice)
        x_parts = [(out, 0), (out, 1)]

    # FC + log_softmax; token lanes padded to 128 with -1e30 shift (f32) so the
    # in-kernel normalization over the full vreg is unchanged.
    n_tokens = params["fc_b"].shape[0]
    logp = matmul_affine(x_parts, [params["fc_w_t"][:H, :], params["fc_w_t"][H:, :]],
                         params["fc_b"], act="log_softmax", out_dtype=jnp.float32,
                         pad_n=True, pad_shift_value=NEG_INF)        # (Tp*Bp, Np)
    logp = logp[:, :n_tokens].reshape(Tp, Bp, n_tokens)[:T2, :B]
    log_probs = jnp.transpose(logp, (1, 0, 2))                       # (B, T2, n_tokens)

    l1 = conv_out_len(spectrogram_length, 11, 2)
    l2 = conv_out_len(l1, 11, 1)
    return {"log_probs": log_probs, "log_probs_length": l2}


# ----------------------------------------------------------------------------
# Deterministic parameter initialization (matches the module's parameter shapes)
# ----------------------------------------------------------------------------
def init_params(key, n_tokens, H, n_blocks):
    keys = iter(jax.random.split(key, 128))

    def nrm(shape, scale):
        return jax.random.normal(next(keys), shape, jnp.float32) * scale

    def bn(c):
        return dict(
            bn_gamma=1.0 + nrm((c,), 0.05),
            bn_beta=nrm((c,), 0.05),
            bn_mean=nrm((c,), 0.05),
            bn_var=1.0 + 0.1 * jnp.abs(nrm((c,), 1.0)),
        )

    params = {}
    params["conv1_w"] = nrm((32, 1, 41, 11), 0.05)
    params["conv1_b"] = nrm((32,), 0.05)
    b1 = bn(32)
    params.update(bn1_gamma=b1["bn_gamma"], bn1_beta=b1["bn_beta"],
                  bn1_mean=b1["bn_mean"], bn1_var=b1["bn_var"])

    params["conv2_w"] = nrm((32, 32, 21, 11), 0.02)
    params["conv2_b"] = nrm((32,), 0.05)
    b2 = bn(32)
    params.update(bn2_gamma=b2["bn_gamma"], bn2_beta=b2["bn_beta"],
                  bn2_mean=b2["bn_mean"], bn2_var=b2["bn_var"])

    def gru_dir(in_size):
        k = 1.0 / (H ** 0.5)
        return dict(
            w_ih_t=nrm((in_size, 3 * H), 1.0 / (in_size ** 0.5)),   # gate order [r|z|n]
            w_hh_t=nrm((H, 3 * H), k),
            b_ih=nrm((3 * H,), 0.05),
            b_hh=nrm((3 * H,), 0.05),
        )

    gru = []
    for i in range(n_blocks):
        in_size = 384 if i == 0 else 2 * H          # n_feats=128 -> 32 * 12 = 384
        layer = bn(in_size)
        layer["fwd"] = gru_dir(in_size)
        layer["bwd"] = gru_dir(in_size)
        gru.append(layer)
    params["gru"] = gru

    params["fc_w_t"] = nrm((2 * H, n_tokens), 0.1)
    params["fc_b"] = nrm((n_tokens,), 0.05)
    return params


# ----------------------------------------------------------------------------
if __name__ == "__main__":
    # n_feats = 128 so that after the two freq-axis convs (k=41,s=2 then k=21,s=2)
    # the flattened feature size is 32 * 12 = 384, matching the module's GRU input.
    B, n_feats, T = 2, 128, 40
    H, n_blocks, n_tokens = 32, 2, 28

    key = jax.random.PRNGKey(0)
    kp, kx = jax.random.split(key)
    params = init_params(kp, n_tokens, H, n_blocks)

    spectrogram = jax.random.normal(kx, (B, n_feats, T), jnp.float32)
    spectrogram_length = jnp.array([T, T - 5], jnp.int32)

    fwd_fn = jax.jit(functools.partial(deep_speech_forward, H=H, n_blocks=n_blocks))
    out = fwd_fn(spectrogram, spectrogram_length, params)
    jax.block_until_ready(out)

    t1 = (T - 11) // 2 + 1
    t2 = t1 - 10
    assert out["log_probs"].shape == (B, t2, n_tokens), out["log_probs"].shape
    assert out["log_probs_length"].shape == (B,)
    assert bool(jnp.all(jnp.isfinite(out["log_probs"])))
    # log_softmax rows should sum to ~1 in prob space
    assert bool(jnp.allclose(jnp.sum(jnp.exp(out["log_probs"]), axis=-1), 1.0,
                             atol=1e-3))
    print("KERNEL_OK")
</pallas_src>

<mosaic_0001>
module attributes {stable_mosaic.version = 11 : i64} {
  func.func @_bigru_kernel(%arg0: i32, %arg1: i32, %arg2: memref<40x384xbf16, #tpu.memory_space<vmem>>, %arg3: memref<1x384x128xbf16, #tpu.memory_space<vmem>>, %arg4: memref<1x1x128xf32, #tpu.memory_space<vmem>>, %arg5: memref<1x32x128xbf16, #tpu.memory_space<vmem>>, %arg6: memref<1x1x128xf32, #tpu.memory_space<vmem>>, %arg7: memref<1x40x32xbf16, #tpu.memory_space<vmem>>, %arg8: memref<8x32xf32, #tpu.memory_space<vmem>>, %arg9: memref<40x128xf32, #tpu.memory_space<vmem>>) attributes {dimension_semantics = [#tpu.dimension_semantics<parallel>, #tpu.dimension_semantics<arbitrary>], iteration_bounds = array<i64: 2, 1>, scalar_prefetch = 0 : i64, scratch_operands = 2 : i64, tpu.core_type = #tpu.core_type<tc>, window_params = [{transform_indices = @transform_0, window_bounds = array<i64: 40, 384>}, {transform_indices = @transform_1, window_bounds = array<i64: 1, 384, 128>}, {transform_indices = @transform_2, window_bounds = array<i64: 1, 1, 128>}, {transform_indices = @transform_3, window_bounds = array<i64: 1, 32, 128>}, {transform_indices = @transform_4, window_bounds = array<i64: 1, 1, 128>}, {transform_indices = @transform_5, window_bounds = array<i64: 1, 40, 32>}]} {
    %c0_i32 = arith.constant 0 : i32
    %0 = arith.cmpi eq, %arg1, %c0_i32 : i32
    %1 = arith.extui %0 : i1 to i32
    %c0_i32_0 = arith.constant 0 : i32
    %2 = arith.cmpi ne, %1, %c0_i32_0 : i32
    scf.if %2 {
      %cst_96 = arith.constant 0.000000e+00 : f32
      %294 = vector.broadcast %cst_96 : f32 to vector<8x32xf32>
      %c0_97 = arith.constant 0 : index
      %c0_98 = arith.constant 0 : index
      %295 = vector.load %arg8[%c0_97, %c0_98] : memref<8x32xf32, #tpu.memory_space<vmem>>, vector<8x32xf32>
      tpu.vector_store %arg8[%c0_97, %c0_98], %294 {strides = array<i32>} : memref<8x32xf32, #tpu.memory_space<vmem>>, vector<8x32xf32>,
    } else {
    }
    %c0 = arith.constant 0 : index
    %c0_1 = arith.constant 0 : index
    %c0_2 = arith.constant 0 : index
    %3 = vector.load %arg3[%c0, %c0_1, %c0_2] : memref<1x384x128xbf16, #tpu.memory_space<vmem>>, vector<1x384x128xbf16>
    %4 = vector.shape_cast %3 : vector<1x384x128xbf16> to vector<384x128xbf16>
    %c0_3 = arith.constant 0 : index
    %c0_4 = arith.constant 0 : index
    %c0_5 = arith.constant 0 : index
    %5 = vector.load %arg4[%c0_3, %c0_4, %c0_5] : memref<1x1x128xf32, #tpu.memory_space<vmem>>, vector<1x1x128xf32>
    %6 = vector.shape_cast %5 : vector<1x1x128xf32> to vector<1x128xf32>
    %c0_6 = arith.constant 0 : index
    %c0_7 = arith.constant 0 : index
    %7 = vector.load %arg2[%c0_6, %c0_7] : memref<40x384xbf16, #tpu.memory_space<vmem>>, vector<40x384xbf16>
    %cst = arith.constant dense<0.000000e+00> : vector<40x128xf32>
    %8 = tpu.matmul %7, %4, %cst {dimension_numbers = #tpu.dot_dimension_numbers<[1], [0], [0], [1], [0, 0, 1, 1], [], []>} : vector<40x384xbf16>, vector<384x128xbf16>, vector<40x128xf32> -> vector<40x128xf32>
    %9 = vector.broadcast %6 : vector<1x128xf32> to vector<40x128xf32>
    %10 = arith.addf %8, %9 : vector<40x128xf32>
    %c0_8 = arith.constant 0 : index
    %c0_9 = arith.constant 0 : index
    %11 = vector.load %arg9[%c0_8, %c0_9] : memref<40x128xf32, #tpu.memory_space<vmem>>, vector<40x128xf32>
    tpu.vector_store %arg9[%c0_8, %c0_9], %10 {strides = array<i32>} : memref<40x128xf32, #tpu.memory_space<vmem>>, vector<40x128xf32>,
    %c0_10 = arith.constant 0 : index
    %c0_11 = arith.constant 0 : index
    %c0_12 = arith.constant 0 : index
    %12 = vector.load %arg5[%c0_10, %c0_11, %c0_12] : memref<1x32x128xbf16, #tpu.memory_space<vmem>>, vector<1x32x128xbf16>
    %13 = vector.shape_cast %12 : vector<1x32x128xbf16> to vector<32x128xbf16>
    %c0_13 = arith.constant 0 : index
    %c0_14 = arith.constant 0 : index
    %c0_15 = arith.constant 0 : index
    %14 = vector.load %arg6[%c0_13, %c0_14, %c0_15] : memref<1x1x128xf32, #tpu.memory_space<vmem>>, vector<1x1x128xf32>
    %15 = vector.shape_cast %14 : vector<1x1x128xf32> to vector<1x128xf32>
    %c5_i32 = arith.constant 5 : i32
    %16 = arith.muli %arg1, %c5_i32 : i32
    %c0_16 = arith.constant 0 : index
    %c0_17 = arith.constant 0 : index
    %17 = vector.load %arg8[%c0_16, %c0_17] : memref<8x32xf32, #tpu.memory_space<vmem>>, vector<8x32xf32>
    %c0_i32_18 = arith.constant 0 : i32
    %c1_i32 = arith.constant 1 : i32
    %18 = arith.subi %c1_i32, %arg0 : i32
    %19 = arith.muli %18, %c0_i32_18 : i32
    %c4_i32 = arith.constant 4 : i32
    %20 = arith.subi %c4_i32, %c0_i32_18 : i32
    %21 = arith.muli %arg0, %20 : i32
    %22 = arith.addi %19, %21 : i32
    %c8_i32 = arith.constant 8 : i32
    %23 = arith.muli %22, %c8_i32 : i32
    %24 = tpu.assume_multiple %23, 8 : i32
    %25 = arith.index_cast %24 : i32 to index
    %c0_19 = arith.constant 0 : index
    %26 = vector.load %arg9[%25, %c0_19] : memref<40x128xf32, #tpu.memory_space<vmem>>, vector<8x128xf32>
    %27 = arith.truncf %17 : vector<8x32xf32> to vector<8x32xbf16>
    %cst_20 = arith.constant dense<0.000000e+00> : vector<8x128xf32>
    %28 = tpu.matmul %27, %13, %cst_20 {dimension_numbers = #tpu.dot_dimension_numbers<[1], [0], [0], [1], [0, 0, 1, 1], [], []>} : vector<8x32xbf16>, vector<32x128xbf16>, vector<8x128xf32> -> vector<8x128xf32>
    %29 = vector.broadcast %15 : vector<1x128xf32> to vector<8x128xf32>
    %30 = arith.addf %28, %29 : vector<8x128xf32>
    %31 = vector.extract_strided_slice %26 {offsets = [0, 0], sizes = [8, 64], strides = [1, 1]} : vector<8x128xf32> to vector<8x64xf32>
    %32 = vector.extract_strided_slice %30 {offsets = [0, 0], sizes = [8, 64], strides = [1, 1]} : vector<8x128xf32> to vector<8x64xf32>
    %33 = arith.addf %31, %32 : vector<8x64xf32>
    %cst_21 = arith.constant 5.000000e-01 : f32
    %34 = vector.broadcast %cst_21 : f32 to vector<8x64xf32>
    %35 = arith.mulf %34, %33 : vector<8x64xf32>
    %36 = math.tanh %35 : vector<8x64xf32>
    %cst_22 = arith.constant 5.000000e-01 : f32
    %37 = vector.broadcast %cst_22 : f32 to vector<8x64xf32>
    %38 = arith.mulf %37, %36 : vector<8x64xf32>
    %cst_23 = arith.constant 5.000000e-01 : f32
    %39 = vector.broadcast %cst_23 : f32 to vector<8x64xf32>
    %40 = arith.addf %38, %39 : vector<8x64xf32>
    %41 = vector.extract_strided_slice %26 {offsets = [0, 64], sizes = [8, 32], strides = [1, 1]} : vector<8x128xf32> to vector<8x32xf32>
    %42 = vector.extract_strided_slice %40 {offsets = [0, 0], sizes = [8, 32], strides = [1, 1]} : vector<8x64xf32> to vector<8x32xf32>
    %43 = vector.extract_strided_slice %30 {offsets = [0, 64], sizes = [8, 32], strides = [1, 1]} : vector<8x128xf32> to vector<8x32xf32>
    %44 = arith.mulf %42, %43 : vector<8x32xf32>
    %45 = arith.addf %41, %44 : vector<8x32xf32>
    %46 = math.tanh %45 : vector<8x32xf32>
    %47 = vector.extract_strided_slice %40 {offsets = [0, 32], sizes = [8, 32], strides = [1, 1]} : vector<8x64xf32> to vector<8x32xf32>
    %cst_24 = arith.constant 1.000000e+00 : f32
    %48 = vector.broadcast %cst_24 : f32 to vector<8x32xf32>
    %49 = arith.subf %48, %47 : vector<8x32xf32>
    %50 = arith.mulf %49, %46 : vector<8x32xf32>
    %51 = arith.mulf %47, %17 : vector<8x32xf32>
    %52 = arith.addf %50, %51 : vector<8x32xf32>
    %53 = arith.addi %16, %c0_i32_18 : i32
    %c1_i32_25 = arith.constant 1 : i32
    %54 = arith.subi %c1_i32_25, %arg0 : i32
    %55 = arith.muli %54, %53 : i32
    %c4_i32_26 = arith.constant 4 : i32
    %56 = arith.subi %c4_i32_26, %53 : i32
    %57 = arith.muli %arg0, %56 : i32
    %58 = arith.addi %55, %57 : i32
    %c5_i32_27 = arith.constant 5 : i32
    %59 = arith.cmpi slt, %58, %c5_i32_27 : i32
    %60 = arith.extui %59 : i1 to i32
    %61 = arith.sitofp %60 : i32 to f32
    %62 = vector.broadcast %61 : f32 to vector<8x32xf32>
    %63 = arith.mulf %62, %52 : vector<8x32xf32>
    %cst_28 = arith.constant 1.000000e+00 : f32
    %64 = arith.subf %cst_28, %61 : f32
    %65 = vector.broadcast %64 : f32 to vector<8x32xf32>
    %66 = arith.mulf %65, %17 : vector<8x32xf32>
    %67 = arith.addf %63, %66 : vector<8x32xf32>
    %68 = arith.truncf %67 : vector<8x32xf32> to vector<8x32xbf16>
    %c0_29 = arith.constant 0 : index
    %69 = arith.index_cast %24 : i32 to index
    %c0_30 = arith.constant 0 : index
    %70 = vector.load %arg7[%c0_29, %69, %c0_30] : memref<1x40x32xbf16, #tpu.memory_space<vmem>>, vector<1x8x32xbf16>
    %71 = vector.shape_cast %70 : vector<1x8x32xbf16> to vector<8x32xbf16>
    %72 = vector.shape_cast %68 : vector<8x32xbf16> to vector<1x8x32xbf16>
    tpu.vector_store %arg7[%c0_29, %69, %c0_30], %72 {strides = array<i32>} : memref<1x40x32xbf16, #tpu.memory_space<vmem>>, vector<1x8x32xbf16>,
    %c1_i32_31 = arith.constant 1 : i32
    %c1_i32_32 = arith.constant 1 : i32
    %73 = arith.subi %c1_i32_32, %arg0 : i32
    %74 = arith.muli %73, %c1_i32_31 : i32
    %c4_i32_33 = arith.constant 4 : i32
    %75 = arith.subi %c4_i32_33, %c1_i32_31 : i32
    %76 = arith.muli %arg0, %75 : i32
    %77 = arith.addi %74, %76 : i32
    %c8_i32_34 = arith.constant 8 : i32
    %78 = arith.muli %77, %c8_i32_34 : i32
    %79 = tpu.assume_multiple %78, 8 : i32
    %80 = arith.index_cast %79 : i32 to index
    %c0_35 = arith.constant 0 : index
    %81 = vector.load %arg9[%80, %c0_35] : memref<40x128xf32, #tpu.memory_space<vmem>>, vector<8x128xf32>
    %82 = arith.truncf %67 : vector<8x32xf32> to vector<8x32xbf16>
    %cst_36 = arith.constant dense<0.000000e+00> : vector<8x128xf32>
    %83 = tpu.matmul %82, %13, %cst_36 {dimension_numbers = #tpu.dot_dimension_numbers<[1], [0], [0], [1], [0, 0, 1, 1], [], []>} : vector<8x32xbf16>, vector<32x128xbf16>, vector<8x128xf32> -> vector<8x128xf32>
    %84 = vector.broadcast %15 : vector<1x128xf32> to vector<8x128xf32>
    %85 = arith.addf %83, %84 : vector<8x128xf32>
    %86 = vector.extract_strided_slice %81 {offsets = [0, 0], sizes = [8, 64], strides = [1, 1]} : vector<8x128xf32> to vector<8x64xf32>
    %87 = vector.extract_strided_slice %85 {offsets = [0, 0], sizes = [8, 64], strides = [1, 1]} : vector<8x128xf32> to vector<8x64xf32>
    %88 = arith.addf %86, %87 : vector<8x64xf32>
    %cst_37 = arith.constant 5.000000e-01 : f32
    %89 = vector.broadcast %cst_37 : f32 to vector<8x64xf32>
    %90 = arith.mulf %89, %88 : vector<8x64xf32>
    %91 = math.tanh %90 : vector<8x64xf32>
    %cst_38 = arith.constant 5.000000e-01 : f32
    %92 = vector.broadcast %cst_38 : f32 to vector<8x64xf32>
    %93 = arith.mulf %92, %91 : vector<8x64xf32>
    %cst_39 = arith.constant 5.000000e-01 : f32
    %94 = vector.broadcast %cst_39 : f32 to vector<8x64xf32>
    %95 = arith.addf %93, %94 : vector<8x64xf32>
    %96 = vector.extract_strided_slice %81 {offsets = [0, 64], sizes = [8, 32], strides = [1, 1]} : vector<8x128xf32> to vector<8x32xf32>
    %97 = vector.extract_strided_slice %95 {offsets = [0, 0], sizes = [8, 32], strides = [1, 1]} : vector<8x64xf32> to vector<8x32xf32>
    %98 = vector.extract_strided_slice %85 {offsets = [0, 64], sizes = [8, 32], strides = [1, 1]} : vector<8x128xf32> to vector<8x32xf32>
    %99 = arith.mulf %97, %98 : vector<8x32xf32>
    %100 = arith.addf %96, %99 : vector<8x32xf32>
    %101 = math.tanh %100 : vector<8x32xf32>
    %102 = vector.extract_strided_slice %95 {offsets = [0, 32], sizes = [8, 32], strides = [1, 1]} : vector<8x64xf32> to vector<8x32xf32>
    %cst_40 = arith.constant 1.000000e+00 : f32
    %103 = vector.broadcast %cst_40 : f32 to vector<8x32xf32>
    %104 = arith.subf %103, %102 : vector<8x32xf32>
    %105 = arith.mulf %104, %101 : vector<8x32xf32>
    %106 = arith.mulf %102, %67 : vector<8x32xf32>
    %107 = arith.addf %105, %106 : vector<8x32xf32>
    %108 = arith.addi %16, %c1_i32_31 : i32
    %c1_i32_41 = arith.constant 1 : i32
    %109 = arith.subi %c1_i32_41, %arg0 : i32
    %110 = arith.muli %109, %108 : i32
    %c4_i32_42 = arith.constant 4 : i32
    %111 = arith.subi %c4_i32_42, %108 : i32
    %112 = arith.muli %arg0, %111 : i32
    %113 = arith.addi %110, %112 : i32
    %c5_i32_43 = arith.constant 5 : i32
    %114 = arith.cmpi slt, %113, %c5_i32_43 : i32
    %115 = arith.extui %114 : i1 to i32
    %116 = arith.sitofp %115 : i32 to f32
    %117 = vector.broadcast %116 : f32 to vector<8x32xf32>
    %118 = arith.mulf %117, %107 : vector<8x32xf32>
    %cst_44 = arith.constant 1.000000e+00 : f32
    %119 = arith.subf %cst_44, %116 : f32
    %120 = vector.broadcast %119 : f32 to vector<8x32xf32>
    %121 = arith.mulf %120, %67 : vector<8x32xf32>
    %122 = arith.addf %118, %121 : vector<8x32xf32>
    %123 = arith.truncf %122 : vector<8x32xf32> to vector<8x32xbf16>
    %c0_45 = arith.constant 0 : index
    %124 = arith.index_cast %79 : i32 to index
    %c0_46 = arith.constant 0 : index
    %125 = vector.load %arg7[%c0_45, %124, %c0_46] : memref<1x40x32xbf16, #tpu.memory_space<vmem>>, vector<1x8x32xbf16>
    %126 = vector.shape_cast %125 : vector<1x8x32xbf16> to vector<8x32xbf16>
    %127 = vector.shape_cast %123 : vector<8x32xbf16> to vector<1x8x32xbf16>
    tpu.vector_store %arg7[%c0_45, %124, %c0_46], %127 {strides = array<i32>} : memref<1x40x32xbf16, #tpu.memory_space<vmem>>, vector<1x8x32xbf16>,
    %c2_i32 = arith.constant 2 : i32
    %c1_i32_47 = arith.constant 1 : i32
    %128 = arith.subi %c1_i32_47, %arg0 : i32
    %129 = arith.muli %128, %c2_i32 : i32
    %c4_i32_48 = arith.constant 4 : i32
    %130 = arith.subi %c4_i32_48, %c2_i32 : i32
    %131 = arith.muli %arg0, %130 : i32
    %132 = arith.addi %129, %131 : i32
    %c8_i32_49 = arith.constant 8 : i32
    %133 = arith.muli %132, %c8_i32_49 : i32
    %134 = tpu.assume_multiple %133, 8 : i32
    %135 = arith.index_cast %134 : i32 to index
    %c0_50 = arith.constant 0 : index
    %136 = vector.load %arg9[%135, %c0_50] : memref<40x128xf32, #tpu.memory_space<vmem>>, vector<8x128xf32>
    %137 = arith.truncf %122 : vector<8x32xf32> to vector<8x32xbf16>
    %cst_51 = arith.constant dense<0.000000e+00> : vector<8x128xf32>
    %138 = tpu.matmul %137, %13, %cst_51 {dimension_numbers = #tpu.dot_dimension_numbers<[1], [0], [0], [1], [0, 0, 1, 1], [], []>} : vector<8x32xbf16>, vector<32x128xbf16>, vector<8x128xf32> -> vector<8x128xf32>
    %139 = vector.broadcast %15 : vector<1x128xf32> to vector<8x128xf32>
    %140 = arith.addf %138, %139 : vector<8x128xf32>
    %141 = vector.extract_strided_slice %136 {offsets = [0, 0], sizes = [8, 64], strides = [1, 1]} : vector<8x128xf32> to vector<8x64xf32>
    %142 = vector.extract_strided_slice %140 {offsets = [0, 0], sizes = [8, 64], strides = [1, 1]} : vector<8x128xf32> to vector<8x64xf32>
    %143 = arith.addf %141, %142 : vector<8x64xf32>
    %cst_52 = arith.constant 5.000000e-01 : f32
    %144 = vector.broadcast %cst_52 : f32 to vector<8x64xf32>
    %145 = arith.mulf %144, %143 : vector<8x64xf32>
    %146 = math.tanh %145 : vector<8x64xf32>
    %cst_53 = arith.constant 5.000000e-01 : f32
    %147 = vector.broadcast %cst_53 : f32 to vector<8x64xf32>
    %148 = arith.mulf %147, %146 : vector<8x64xf32>
    %cst_54 = arith.constant 5.000000e-01 : f32
    %149 = vector.broadcast %cst_54 : f32 to vector<8x64xf32>
    %150 = arith.addf %148, %149 : vector<8x64xf32>
    %151 = vector.extract_strided_slice %136 {offsets = [0, 64], sizes = [8, 32], strides = [1, 1]} : vector<8x128xf32> to vector<8x32xf32>
    %152 = vector.extract_strided_slice %150 {offsets = [0, 0], sizes = [8, 32], strides = [1, 1]} : vector<8x64xf32> to vector<8x32xf32>
    %153 = vector.extract_strided_slice %140 {offsets = [0, 64], sizes = [8, 32], strides = [1, 1]} : vector<8x128xf32> to vector<8x32xf32>
    %154 = arith.mulf %152, %153 : vector<8x32xf32>
    %155 = arith.addf %151, %154 : vector<8x32xf32>
    %156 = math.tanh %155 : vector<8x32xf32>
    %157 = vector.extract_strided_slice %150 {offsets = [0, 32], sizes = [8, 32], strides = [1, 1]} : vector<8x64xf32> to vector<8x32xf32>
    %cst_55 = arith.constant 1.000000e+00 : f32
    %158 = vector.broadcast %cst_55 : f32 to vector<8x32xf32>
    %159 = arith.subf %158, %157 : vector<8x32xf32>
    %160 = arith.mulf %159, %156 : vector<8x32xf32>
    %161 = arith.mulf %157, %122 : vector<8x32xf32>
    %162 = arith.addf %160, %161 : vector<8x32xf32>
    %163 = arith.addi %16, %c2_i32 : i32
    %c1_i32_56 = arith.constant 1 : i32
    %164 = arith.subi %c1_i32_56, %arg0 : i32
    %165 = arith.muli %164, %163 : i32
    %c4_i32_57 = arith.constant 4 : i32
    %166 = arith.subi %c4_i32_57, %163 : i32
    %167 = arith.muli %arg0, %166 : i32
    %168 = arith.addi %165, %167 : i32
    %c5_i32_58 = arith.constant 5 : i32
    %169 = arith.cmpi slt, %168, %c5_i32_58 : i32
    %170 = arith.extui %169 : i1 to i32
    %171 = arith.sitofp %170 : i32 to f32
    %172 = vector.broadcast %171 : f32 to vector<8x32xf32>
    %173 = arith.mulf %172, %162 : vector<8x32xf32>
    %cst_59 = arith.constant 1.000000e+00 : f32
    %174 = arith.subf %cst_59, %171 : f32
    %175 = vector.broadcast %174 : f32 to vector<8x32xf32>
    %176 = arith.mulf %175, %122 : vector<8x32xf32>
    %177 = arith.addf %173, %176 : vector<8x32xf32>
    %178 = arith.truncf %177 : vector<8x32xf32> to vector<8x32xbf16>
    %c0_60 = arith.constant 0 : index
    %179 = arith.index_cast %134 : i32 to index
    %c0_61 = arith.constant 0 : index
    %180 = vector.load %arg7[%c0_60, %179, %c0_61] : memref<1x40x32xbf16, #tpu.memory_space<vmem>>, vector<1x8x32xbf16>
    %181 = vector.shape_cast %180 : vector<1x8x32xbf16> to vector<8x32xbf16>
    %182 = vector.shape_cast %178 : vector<8x32xbf16> to vector<1x8x32xbf16>
    tpu.vector_store %arg7[%c0_60, %179, %c0_61], %182 {strides = array<i32>} : memref<1x40x32xbf16, #tpu.memory_space<vmem>>, vector<1x8x32xbf16>,
    %c3_i32 = arith.constant 3 : i32
    %c1_i32_62 = arith.constant 1 : i32
    %183 = arith.subi %c1_i32_62, %arg0 : i32
    %184 = arith.muli %183, %c3_i32 : i32
    %c4_i32_63 = arith.constant 4 : i32
    %185 = arith.subi %c4_i32_63, %c3_i32 : i32
    %186 = arith.muli %arg0, %185 : i32
    %187 = arith.addi %184, %186 : i32
    %c8_i32_64 = arith.constant 8 : i32
    %188 = arith.muli %187, %c8_i32_64 : i32
    %189 = tpu.assume_multiple %188, 8 : i32
    %190 = arith.index_cast %189 : i32 to index
    %c0_65 = arith.constant 0 : index
    %191 = vector.load %arg9[%190, %c0_65] : memref<40x128xf32, #tpu.memory_space<vmem>>, vector<8x128xf32>
    %192 = arith.truncf %177 : vector<8x32xf32> to vector<8x32xbf16>
    %cst_66 = arith.constant dense<0.000000e+00> : vector<8x128xf32>
    %193 = tpu.matmul %192, %13, %cst_66 {dimension_numbers = #tpu.dot_dimension_numbers<[1], [0], [0], [1], [0, 0, 1, 1], [], []>} : vector<8x32xbf16>, vector<32x128xbf16>, vector<8x128xf32> -> vector<8x128xf32>
    %194 = vector.broadcast %15 : vector<1x128xf32> to vector<8x128xf32>
    %195 = arith.addf %193, %194 : vector<8x128xf32>
    %196 = vector.extract_strided_slice %191 {offsets = [0, 0], sizes = [8, 64], strides = [1, 1]} : vector<8x128xf32> to vector<8x64xf32>
    %197 = vector.extract_strided_slice %195 {offsets = [0, 0], sizes = [8, 64], strides = [1, 1]} : vector<8x128xf32> to vector<8x64xf32>
    %198 = arith.addf %196, %197 : vector<8x64xf32>
    %cst_67 = arith.constant 5.000000e-01 : f32
    %199 = vector.broadcast %cst_67 : f32 to vector<8x64xf32>
    %200 = arith.mulf %199, %198 : vector<8x64xf32>
    %201 = math.tanh %200 : vector<8x64xf32>
    %cst_68 = arith.constant 5.000000e-01 : f32
    %202 = vector.broadcast %cst_68 : f32 to vector<8x64xf32>
    %203 = arith.mulf %202, %201 : vector<8x64xf32>
    %cst_69 = arith.constant 5.000000e-01 : f32
    %204 = vector.broadcast %cst_69 : f32 to vector<8x64xf32>
    %205 = arith.addf %203, %204 : vector<8x64xf32>
    %206 = vector.extract_strided_slice %191 {offsets = [0, 64], sizes = [8, 32], strides = [1, 1]} : vector<8x128xf32> to vector<8x32xf32>
    %207 = vector.extract_strided_slice %205 {offsets = [0, 0], sizes = [8, 32], strides = [1, 1]} : vector<8x64xf32> to vector<8x32xf32>
    %208 = vector.extract_strided_slice %195 {offsets = [0, 64], sizes = [8, 32], strides = [1, 1]} : vector<8x128xf32> to vector<8x32xf32>
    %209 = arith.mulf %207, %208 : vector<8x32xf32>
    %210 = arith.addf %206, %209 : vector<8x32xf32>
    %211 = math.tanh %210 : vector<8x32xf32>
    %212 = vector.extract_strided_slice %205 {offsets = [0, 32], sizes = [8, 32], strides = [1, 1]} : vector<8x64xf32> to vector<8x32xf32>
    %cst_70 = arith.constant 1.000000e+00 : f32
    %213 = vector.broadcast %cst_70 : f32 to vector<8x32xf32>
    %214 = arith.subf %213, %212 : vector<8x32xf32>
    %215 = arith.mulf %214, %211 : vector<8x32xf32>
    %216 = arith.mulf %212, %177 : vector<8x32xf32>
    %217 = arith.addf %215, %216 : vector<8x32xf32>
    %218 = arith.addi %16, %c3_i32 : i32
    %c1_i32_71 = arith.constant 1 : i32
    %219 = arith.subi %c1_i32_71, %arg0 : i32
    %220 = arith.muli %219, %218 : i32
    %c4_i32_72 = arith.constant 4 : i32
    %221 = arith.subi %c4_i32_72, %218 : i32
    %222 = arith.muli %arg0, %221 : i32
    %223 = arith.addi %220, %222 : i32
    %c5_i32_73 = arith.constant 5 : i32
    %224 = arith.cmpi slt, %223, %c5_i32_73 : i32
    %225 = arith.extui %224 : i1 to i32
    %226 = arith.sitofp %225 : i32 to f32
    %227 = vector.broadcast %226 : f32 to vector<8x32xf32>
    %228 = arith.mulf %227, %217 : vector<8x32xf32>
    %cst_74 = arith.constant 1.000000e+00 : f32
    %229 = arith.subf %cst_74, %226 : f32
    %230 = vector.broadcast %229 : f32 to vector<8x32xf32>
    %231 = arith.mulf %230, %177 : vector<8x32xf32>
    %232 = arith.addf %228, %231 : vector<8x32xf32>
    %233 = arith.truncf %232 : vector<8x32xf32> to vector<8x32xbf16>
    %c0_75 = arith.constant 0 : index
    %234 = arith.index_cast %189 : i32 to index
    %c0_76 = arith.constant 0 : index
    %235 = vector.load %arg7[%c0_75, %234, %c0_76] : memref<1x40x32xbf16, #tpu.memory_space<vmem>>, vector<1x8x32xbf16>
    %236 = vector.shape_cast %235 : vector<1x8x32xbf16> to vector<8x32xbf16>
    %237 = vector.shape_cast %233 : vector<8x32xbf16> to vector<1x8x32xbf16>
    tpu.vector_store %arg7[%c0_75, %234, %c0_76], %237 {strides = array<i32>} : memref<1x40x32xbf16, #tpu.memory_space<vmem>>, vector<1x8x32xbf16>,
    %c4_i32_77 = arith.constant 4 : i32
    %c1_i32_78 = arith.constant 1 : i32
    %238 = arith.subi %c1_i32_78, %arg0 : i32
    %239 = arith.muli %238, %c4_i32_77 : i32
    %c4_i32_79 = arith.constant 4 : i32
    %240 = arith.subi %c4_i32_79, %c4_i32_77 : i32
    %241 = arith.muli %arg0, %240 : i32
    %242 = arith.addi %239, %241 : i32
    %c8_i32_80 = arith.constant 8 : i32
    %243 = arith.muli %242, %c8_i32_80 : i32
    %244 = tpu.assume_multiple %243, 8 : i32
    %245 = arith.index_cast %244 : i32 to index
    %c0_81 = arith.constant 0 : index
    %246 = vector.load %arg9[%245, %c0_81] : memref<40x128xf32, #tpu.memory_space<vmem>>, vector<8x128xf32>
    %247 = arith.truncf %232 : vector<8x32xf32> to vector<8x32xbf16>
    %cst_82 = arith.constant dense<0.000000e+00> : vector<8x128xf32>
    %248 = tpu.matmul %247, %13, %cst_82 {dimension_numbers = #tpu.dot_dimension_numbers<[1], [0], [0], [1], [0, 0, 1, 1], [], []>} : vector<8x32xbf16>, vector<32x128xbf16>, vector<8x128xf32> -> vector<8x128xf32>
    %249 = vector.broadcast %15 : vector<1x128xf32> to vector<8x128xf32>
    %250 = arith.addf %248, %249 : vector<8x128xf32>
    %251 = vector.extract_strided_slice %246 {offsets = [0, 0], sizes = [8, 64], strides = [1, 1]} : vector<8x128xf32> to vector<8x64xf32>
    %252 = vector.extract_strided_slice %250 {offsets = [0, 0], sizes = [8, 64], strides = [1, 1]} : vector<8x128xf32> to vector<8x64xf32>
    %253 = arith.addf %251, %252 : vector<8x64xf32>
    %cst_83 = arith.constant 5.000000e-01 : f32
    %254 = vector.broadcast %cst_83 : f32 to vector<8x64xf32>
    %255 = arith.mulf %254, %253 : vector<8x64xf32>
    %256 = math.tanh %255 : vector<8x64xf32>
    %cst_84 = arith.constant 5.000000e-01 : f32
    %257 = vector.broadcast %cst_84 : f32 to vector<8x64xf32>
    %258 = arith.mulf %257, %256 : vector<8x64xf32>
    %cst_85 = arith.constant 5.000000e-01 : f32
    %259 = vector.broadcast %cst_85 : f32 to vector<8x64xf32>
    %260 = arith.addf %258, %259 : vector<8x64xf32>
    %261 = vector.extract_strided_slice %246 {offsets = [0, 64], sizes = [8, 32], strides = [1, 1]} : vector<8x128xf32> to vector<8x32xf32>
    %262 = vector.extract_strided_slice %260 {offsets = [0, 0], sizes = [8, 32], strides = [1, 1]} : vector<8x64xf32> to vector<8x32xf32>
    %263 = vector.extract_strided_slice %250 {offsets = [0, 64], sizes = [8, 32], strides = [1, 1]} : vector<8x128xf32> to vector<8x32xf32>
    %264 = arith.mulf %262, %263 : vector<8x32xf32>
    %265 = arith.addf %261, %264 : vector<8x32xf32>
    %266 = math.tanh %265 : vector<8x32xf32>
    %267 = vector.extract_strided_slice %260 {offsets = [0, 32], sizes = [8, 32], strides = [1, 1]} : vector<8x64xf32> to vector<8x32xf32>
    %cst_86 = arith.constant 1.000000e+00 : f32
    %268 = vector.broadcast %cst_86 : f32 to vector<8x32xf32>
    %269 = arith.subf %268, %267 : vector<8x32xf32>
    %270 = arith.mulf %269, %266 : vector<8x32xf32>
    %271 = arith.mulf %267, %232 : vector<8x32xf32>
    %272 = arith.addf %270, %271 : vector<8x32xf32>
    %273 = arith.addi %16, %c4_i32_77 : i32
    %c1_i32_87 = arith.constant 1 : i32
    %274 = arith.subi %c1_i32_87, %arg0 : i32
    %275 = arith.muli %274, %273 : i32
    %c4_i32_88 = arith.constant 4 : i32
    %276 = arith.subi %c4_i32_88, %273 : i32
    %277 = arith.muli %arg0, %276 : i32
    %278 = arith.addi %275, %277 : i32
    %c5_i32_89 = arith.constant 5 : i32
    %279 = arith.cmpi slt, %278, %c5_i32_89 : i32
    %280 = arith.extui %279 : i1 to i32
    %281 = arith.sitofp %280 : i32 to f32
    %282 = vector.broadcast %281 : f32 to vector<8x32xf32>
    %283 = arith.mulf %282, %272 : vector<8x32xf32>
    %cst_90 = arith.constant 1.000000e+00 : f32
    %284 = arith.subf %cst_90, %281 : f32
    %285 = vector.broadcast %284 : f32 to vector<8x32xf32>
    %286 = arith.mulf %285, %232 : vector<8x32xf32>
    %287 = arith.addf %283, %286 : vector<8x32xf32>
    %288 = arith.truncf %287 : vector<8x32xf32> to vector<8x32xbf16>
    %c0_91 = arith.constant 0 : index
    %289 = arith.index_cast %244 : i32 to index
    %c0_92 = arith.constant 0 : index
    %290 = vector.load %arg7[%c0_91, %289, %c0_92] : memref<1x40x32xbf16, #tpu.memory_space<vmem>>, vector<1x8x32xbf16>
    %291 = vector.shape_cast %290 : vector<1x8x32xbf16> to vector<8x32xbf16>
    %292 = vector.shape_cast %288 : vector<8x32xbf16> to vector<1x8x32xbf16>
    tpu.vector_store %arg7[%c0_91, %289, %c0_92], %292 {strides = array<i32>} : memref<1x40x32xbf16, #tpu.memory_space<vmem>>, vector<1x8x32xbf16>,
    %c5_i32_93 = arith.constant 5 : i32
    %c0_94 = arith.constant 0 : index
    %c0_95 = arith.constant 0 : index
    %293 = vector.load %arg8[%c0_94, %c0_95] : memref<8x32xf32, #tpu.memory_space<vmem>>, vector<8x32xf32>
    tpu.vector_store %arg8[%c0_94, %c0_95], %287 {strides = array<i32>} : memref<8x32xf32, #tpu.memory_space<vmem>>, vector<8x32xf32>,
    return
  }
  func.func @transform_0(%arg0: i32, %arg1: i32) -> (i32, i32) {
    %c1_i32 = arith.constant 1 : i32
    %0 = arith.subi %c1_i32, %arg0 : i32
    %1 = arith.muli %0, %arg1 : i32
    %c0_i32 = arith.constant 0 : i32
    %2 = arith.subi %c0_i32, %arg1 : i32
    %3 = arith.muli %arg0, %2 : i32
    %4 = arith.addi %1, %3 : i32
    %c0_i32_0 = arith.constant 0 : i32
    %c0_i32_1 = arith.constant 0 : i32
    return %4, %c0_i32_0 : i32, i32
  }
  func.func @transform_1(%arg0: i32, %arg1: i32) -> (i32, i32, i32) {
    %c0_i32 = arith.constant 0 : i32
    %c0_i32_0 = arith.constant 0 : i32
    %c0_i32_1 = arith.constant 0 : i32
    return %arg0, %c0_i32, %c0_i32_0 : i32, i32, i32
  }
  func.func @transform_2(%arg0: i32, %arg1: i32) -> (i32, i32, i32) {
    %c0_i32 = arith.constant 0 : i32
    %c0_i32_0 = arith.constant 0 : i32
    %c0_i32_1 = arith.constant 0 : i32
    return %arg0, %c0_i32, %c0_i32_0 : i32, i32, i32
  }
  func.func @transform_3(%arg0: i32, %arg1: i32) -> (i32, i32, i32) {
    %c0_i32 = arith.constant 0 : i32
    %c0_i32_0 = arith.constant 0 : i32
    %c0_i32_1 = arith.constant 0 : i32
    return %arg0, %c0_i32, %c0_i32_0 : i32, i32, i32
  }
  func.func @transform_4(%arg0: i32, %arg1: i32) -> (i32, i32, i32) {
    %c0_i32 = arith.constant 0 : i32
    %c0_i32_0 = arith.constant 0 : i32
    %c0_i32_1 = arith.constant 0 : i32
    return %arg0, %c0_i32, %c0_i32_0 : i32, i32, i32
  }
  func.func @transform_5(%arg0: i32, %arg1: i32) -> (i32, i32, i32) {
    %c1_i32 = arith.constant 1 : i32
    %0 = arith.subi %c1_i32, %arg0 : i32
    %1 = arith.muli %0, %arg1 : i32
    %c0_i32 = arith.constant 0 : i32
    %2 = arith.subi %c0_i32, %arg1 : i32
    %3 = arith.muli %arg0, %2 : i32
    %4 = arith.addi %1, %3 : i32
    %c0_i32_0 = arith.constant 0 : i32
    %c0_i32_1 = arith.constant 0 : i32
    return %arg0, %4, %c0_i32_0 : i32, i32, i32
  }
}

module attributes {stable_mosaic.version = 11 : i64} {
  func.func @_bigru_kernel(%arg0: i32, %arg1: i32, %arg2: memref<1x40x32xbf16, #tpu.memory_space<vmem>>, %arg3: memref<1x32x128xbf16, #tpu.memory_space<vmem>>, %arg4: memref<1x40x32xbf16, #tpu.memory_space<vmem>>, %arg5: memref<1x32x128xbf16, #tpu.memory_space<vmem>>, %arg6: memref<1x1x128xf32, #tpu.memory_space<vmem>>, %arg7: memref<1x32x128xbf16, #tpu.memory_space<vmem>>, %arg8: memref<1x1x128xf32, #tpu.memory_space<vmem>>, %arg9: memref<1x40x32xbf16, #tpu.memory_space<vmem>>, %arg10: memref<8x32xf32, #tpu.memory_space<vmem>>, %arg11: memref<40x128xf32, #tpu.memory_space<vmem>>) attributes {dimension_semantics = [#tpu.dimension_semantics<parallel>, #tpu.dimension_semantics<arbitrary>], iteration_bounds = array<i64: 2, 1>, scalar_prefetch = 0 : i64, scratch_operands = 2 : i64, tpu.core_type = #tpu.core_type<tc>, window_params = [{transform_indices = @transform_0, window_bounds = array<i64: 1, 40, 32>}, {transform_indices = @transform_1, window_bounds = array<i64: 1, 32, 128>}, {transform_indices = @transform_2, window_bounds = array<i64: 1, 40, 32>}, {transform_indices = @transform_3, window_bounds = array<i64: 1, 32, 128>}, {transform_indices = @transform_4, window_bounds = array<i64: 1, 1, 128>}, {transform_indices = @transform_5, window_bounds = array<i64: 1, 32, 128>}, {transform_indices = @transform_6, window_bounds = array<i64: 1, 1, 128>}, {transform_indices = @transform_7, window_bounds = array<i64: 1, 40, 32>}]} {
    %c0_i32 = arith.constant 0 : i32
    %0 = arith.cmpi eq, %arg1, %c0_i32 : i32
    %1 = arith.extui %0 : i1 to i32
    %c0_i32_0 = arith.constant 0 : i32
    %2 = arith.cmpi ne, %1, %c0_i32_0 : i32
    scf.if %2 {
      %cst_104 = arith.constant 0.000000e+00 : f32
      %301 = vector.broadcast %cst_104 : f32 to vector<8x32xf32>
      %c0_105 = arith.constant 0 : index
      %c0_106 = arith.constant 0 : index
      %302 = vector.load %arg10[%c0_105, %c0_106] : memref<8x32xf32, #tpu.memory_space<vmem>>, vector<8x32xf32>
      tpu.vector_store %arg10[%c0_105, %c0_106], %301 {strides = array<i32>} : memref<8x32xf32, #tpu.memory_space<vmem>>, vector<8x32xf32>,
    } else {
    }
    %c0 = arith.constant 0 : index
    %c0_1 = arith.constant 0 : index
    %c0_2 = arith.constant 0 : index
    %3 = vector.load %arg3[%c0, %c0_1, %c0_2] : memref<1x32x128xbf16, #tpu.memory_space<vmem>>, vector<1x32x128xbf16>
    %4 = vector.shape_cast %3 : vector<1x32x128xbf16> to vector<32x128xbf16>
    %c0_3 = arith.constant 0 : index
    %c0_4 = arith.constant 0 : index
    %c0_5 = arith.constant 0 : index
    %5 = vector.load %arg5[%c0_3, %c0_4, %c0_5] : memref<1x32x128xbf16, #tpu.memory_space<vmem>>, vector<1x32x128xbf16>
    %6 = vector.shape_cast %5 : vector<1x32x128xbf16> to vector<32x128xbf16>
    %c0_6 = arith.constant 0 : index
    %c0_7 = arith.constant 0 : index
    %c0_8 = arith.constant 0 : index
    %7 = vector.load %arg6[%c0_6, %c0_7, %c0_8] : memref<1x1x128xf32, #tpu.memory_space<vmem>>, vector<1x1x128xf32>
    %8 = vector.shape_cast %7 : vector<1x1x128xf32> to vector<1x128xf32>
    %c0_9 = arith.constant 0 : index
    %c0_10 = arith.constant 0 : index
    %c0_11 = arith.constant 0 : index
    %9 = vector.load %arg2[%c0_9, %c0_10, %c0_11] : memref<1x40x32xbf16, #tpu.memory_space<vmem>>, vector<1x40x32xbf16>
    %10 = vector.shape_cast %9 : vector<1x40x32xbf16> to vector<40x32xbf16>
    %cst = arith.constant dense<0.000000e+00> : vector<40x128xf32>
    %11 = tpu.matmul %10, %4, %cst {dimension_numbers = #tpu.dot_dimension_numbers<[1], [0], [0], [1], [0, 0, 1, 1], [], []>} : vector<40x32xbf16>, vector<32x128xbf16>, vector<40x128xf32> -> vector<40x128xf32>
    %c0_12 = arith.constant 0 : index
    %c0_13 = arith.constant 0 : index
    %c0_14 = arith.constant 0 : index
    %12 = vector.load %arg4[%c0_12, %c0_13, %c0_14] : memref<1x40x32xbf16, #tpu.memory_space<vmem>>, vector<1x40x32xbf16>
    %13 = vector.shape_cast %12 : vector<1x40x32xbf16> to vector<40x32xbf16>
    %cst_15 = arith.constant dense<0.000000e+00> : vector<40x128xf32>
    %14 = tpu.matmul %13, %6, %cst_15 {dimension_numbers = #tpu.dot_dimension_numbers<[1], [0], [0], [1], [0, 0, 1, 1], [], []>} : vector<40x32xbf16>, vector<32x128xbf16>, vector<40x128xf32> -> vector<40x128xf32>
    %15 = arith.addf %11, %14 : vector<40x128xf32>
    %16 = vector.broadcast %8 : vector<1x128xf32> to vector<40x128xf32>
    %17 = arith.addf %15, %16 : vector<40x128xf32>
    %c0_16 = arith.constant 0 : index
    %c0_17 = arith.constant 0 : index
    %18 = vector.load %arg11[%c0_16, %c0_17] : memref<40x128xf32, #tpu.memory_space<vmem>>, vector<40x128xf32>
    tpu.vector_store %arg11[%c0_16, %c0_17], %17 {strides = array<i32>} : memref<40x128xf32, #tpu.memory_space<vmem>>, vector<40x128xf32>,
    %c0_18 = arith.constant 0 : index
    %c0_19 = arith.constant 0 : index
    %c0_20 = arith.constant 0 : index
    %19 = vector.load %arg7[%c0_18, %c0_19, %c0_20] : memref<1x32x128xbf16, #tpu.memory_space<vmem>>, vector<1x32x128xbf16>
    %20 = vector.shape_cast %19 : vector<1x32x128xbf16> to vector<32x128xbf16>
    %c0_21 = arith.constant 0 : index
    %c0_22 = arith.constant 0 : index
    %c0_23 = arith.constant 0 : index
    %21 = vector.load %arg8[%c0_21, %c0_22, %c0_23] : memref<1x1x128xf32, #tpu.memory_space<vmem>>, vector<1x1x128xf32>
    %22 = vector.shape_cast %21 : vector<1x1x128xf32> to vector<1x128xf32>
    %c5_i32 = arith.constant 5 : i32
    %23 = arith.muli %arg1, %c5_i32 : i32
    %c0_24 = arith.constant 0 : index
    %c0_25 = arith.constant 0 : index
    %24 = vector.load %arg10[%c0_24, %c0_25] : memref<8x32xf32, #tpu.memory_space<vmem>>, vector<8x32xf32>
    %c0_i32_26 = arith.constant 0 : i32
    %c1_i32 = arith.constant 1 : i32
    %25 = arith.subi %c1_i32, %arg0 : i32
    %26 = arith.muli %25, %c0_i32_26 : i32
    %c4_i32 = arith.constant 4 : i32
    %27 = arith.subi %c4_i32, %c0_i32_26 : i32
    %28 = arith.muli %arg0, %27 : i32
    %29 = arith.addi %26, %28 : i32
    %c8_i32 = arith.constant 8 : i32
    %30 = arith.muli %29, %c8_i32 : i32
    %31 = tpu.assume_multiple %30, 8 : i32
    %32 = arith.index_cast %31 : i32 to index
    %c0_27 = arith.constant 0 : index
    %33 = vector.load %arg11[%32, %c0_27] : memref<40x128xf32, #tpu.memory_space<vmem>>, vector<8x128xf32>
    %34 = arith.truncf %24 : vector<8x32xf32> to vector<8x32xbf16>
    %cst_28 = arith.constant dense<0.000000e+00> : vector<8x128xf32>
    %35 = tpu.matmul %34, %20, %cst_28 {dimension_numbers = #tpu.dot_dimension_numbers<[1], [0], [0], [1], [0, 0, 1, 1], [], []>} : vector<8x32xbf16>, vector<32x128xbf16>, vector<8x128xf32> -> vector<8x128xf32>
    %36 = vector.broadcast %22 : vector<1x128xf32> to vector<8x128xf32>
    %37 = arith.addf %35, %36 : vector<8x128xf32>
    %38 = vector.extract_strided_slice %33 {offsets = [0, 0], sizes = [8, 64], strides = [1, 1]} : vector<8x128xf32> to vector<8x64xf32>
    %39 = vector.extract_strided_slice %37 {offsets = [0, 0], sizes = [8, 64], strides = [1, 1]} : vector<8x128xf32> to vector<8x64xf32>
    %40 = arith.addf %38, %39 : vector<8x64xf32>
    %cst_29 = arith.constant 5.000000e-01 : f32
    %41 = vector.broadcast %cst_29 : f32 to vector<8x64xf32>
    %42 = arith.mulf %41, %40 : vector<8x64xf32>
    %43 = math.tanh %42 : vector<8x64xf32>
    %cst_30 = arith.constant 5.000000e-01 : f32
    %44 = vector.broadcast %cst_30 : f32 to vector<8x64xf32>
    %45 = arith.mulf %44, %43 : vector<8x64xf32>
    %cst_31 = arith.constant 5.000000e-01 : f32
    %46 = vector.broadcast %cst_31 : f32 to vector<8x64xf32>
    %47 = arith.addf %45, %46 : vector<8x64xf32>
    %48 = vector.extract_strided_slice %33 {offsets = [0, 64], sizes = [8, 32], strides = [1, 1]} : vector<8x128xf32> to vector<8x32xf32>
    %49 = vector.extract_strided_slice %47 {offsets = [0, 0], sizes = [8, 32], strides = [1, 1]} : vector<8x64xf32> to vector<8x32xf32>
    %50 = vector.extract_strided_slice %37 {offsets = [0, 64], sizes = [8, 32], strides = [1, 1]} : vector<8x128xf32> to vector<8x32xf32>
    %51 = arith.mulf %49, %50 : vector<8x32xf32>
    %52 = arith.addf %48, %51 : vector<8x32xf32>
    %53 = math.tanh %52 : vector<8x32xf32>
    %54 = vector.extract_strided_slice %47 {offsets = [0, 32], sizes = [8, 32], strides = [1, 1]} : vector<8x64xf32> to vector<8x32xf32>
    %cst_32 = arith.constant 1.000000e+00 : f32
    %55 = vector.broadcast %cst_32 : f32 to vector<8x32xf32>
    %56 = arith.subf %55, %54 : vector<8x32xf32>
    %57 = arith.mulf %56, %53 : vector<8x32xf32>
    %58 = arith.mulf %54, %24 : vector<8x32xf32>
    %59 = arith.addf %57, %58 : vector<8x32xf32>
    %60 = arith.addi %23, %c0_i32_26 : i32
    %c1_i32_33 = arith.constant 1 : i32
    %61 = arith.subi %c1_i32_33, %arg0 : i32
    %62 = arith.muli %61, %60 : i32
    %c4_i32_34 = arith.constant 4 : i32
    %63 = arith.subi %c4_i32_34, %60 : i32
    %64 = arith.muli %arg0, %63 : i32
    %65 = arith.addi %62, %64 : i32
    %c5_i32_35 = arith.constant 5 : i32
    %66 = arith.cmpi slt, %65, %c5_i32_35 : i32
    %67 = arith.extui %66 : i1 to i32
    %68 = arith.sitofp %67 : i32 to f32
    %69 = vector.broadcast %68 : f32 to vector<8x32xf32>
    %70 = arith.mulf %69, %59 : vector<8x32xf32>
    %cst_36 = arith.constant 1.000000e+00 : f32
    %71 = arith.subf %cst_36, %68 : f32
    %72 = vector.broadcast %71 : f32 to vector<8x32xf32>
    %73 = arith.mulf %72, %24 : vector<8x32xf32>
    %74 = arith.addf %70, %73 : vector<8x32xf32>
    %75 = arith.truncf %74 : vector<8x32xf32> to vector<8x32xbf16>
    %c0_37 = arith.constant 0 : index
    %76 = arith.index_cast %31 : i32 to index
    %c0_38 = arith.constant 0 : index
    %77 = vector.load %arg9[%c0_37, %76, %c0_38] : memref<1x40x32xbf16, #tpu.memory_space<vmem>>, vector<1x8x32xbf16>
    %78 = vector.shape_cast %77 : vector<1x8x32xbf16> to vector<8x32xbf16>
    %79 = vector.shape_cast %75 : vector<8x32xbf16> to vector<1x8x32xbf16>
    tpu.vector_store %arg9[%c0_37, %76, %c0_38], %79 {strides = array<i32>} : memref<1x40x32xbf16, #tpu.memory_space<vmem>>, vector<1x8x32xbf16>,
    %c1_i32_39 = arith.constant 1 : i32
    %c1_i32_40 = arith.constant 1 : i32
    %80 = arith.subi %c1_i32_40, %arg0 : i32
    %81 = arith.muli %80, %c1_i32_39 : i32
    %c4_i32_41 = arith.constant 4 : i32
    %82 = arith.subi %c4_i32_41, %c1_i32_39 : i32
    %83 = arith.muli %arg0, %82 : i32
    %84 = arith.addi %81, %83 : i32
    %c8_i32_42 = arith.constant 8 : i32
    %85 = arith.muli %84, %c8_i32_42 : i32
    %86 = tpu.assume_multiple %85, 8 : i32
    %87 = arith.index_cast %86 : i32 to index
    %c0_43 = arith.constant 0 : index
    %88 = vector.load %arg11[%87, %c0_43] : memref<40x128xf32, #tpu.memory_space<vmem>>, vector<8x128xf32>
    %89 = arith.truncf %74 : vector<8x32xf32> to vector<8x32xbf16>
    %cst_44 = arith.constant dense<0.000000e+00> : vector<8x128xf32>
    %90 = tpu.matmul %89, %20, %cst_44 {dimension_numbers = #tpu.dot_dimension_numbers<[1], [0], [0], [1], [0, 0, 1, 1], [], []>} : vector<8x32xbf16>, vector<32x128xbf16>, vector<8x128xf32> -> vector<8x128xf32>
    %91 = vector.broadcast %22 : vector<1x128xf32> to vector<8x128xf32>
    %92 = arith.addf %90, %91 : vector<8x128xf32>
    %93 = vector.extract_strided_slice %88 {offsets = [0, 0], sizes = [8, 64], strides = [1, 1]} : vector<8x128xf32> to vector<8x64xf32>
    %94 = vector.extract_strided_slice %92 {offsets = [0, 0], sizes = [8, 64], strides = [1, 1]} : vector<8x128xf32> to vector<8x64xf32>
    %95 = arith.addf %93, %94 : vector<8x64xf32>
    %cst_45 = arith.constant 5.000000e-01 : f32
    %96 = vector.broadcast %cst_45 : f32 to vector<8x64xf32>
    %97 = arith.mulf %96, %95 : vector<8x64xf32>
    %98 = math.tanh %97 : vector<8x64xf32>
    %cst_46 = arith.constant 5.000000e-01 : f32
    %99 = vector.broadcast %cst_46 : f32 to vector<8x64xf32>
    %100 = arith.mulf %99, %98 : vector<8x64xf32>
    %cst_47 = arith.constant 5.000000e-01 : f32
    %101 = vector.broadcast %cst_47 : f32 to vector<8x64xf32>
    %102 = arith.addf %100, %101 : vector<8x64xf32>
    %103 = vector.extract_strided_slice %88 {offsets = [0, 64], sizes = [8, 32], strides = [1, 1]} : vector<8x128xf32> to vector<8x32xf32>
    %104 = vector.extract_strided_slice %102 {offsets = [0, 0], sizes = [8, 32], strides = [1, 1]} : vector<8x64xf32> to vector<8x32xf32>
    %105 = vector.extract_strided_slice %92 {offsets = [0, 64], sizes = [8, 32], strides = [1, 1]} : vector<8x128xf32> to vector<8x32xf32>
    %106 = arith.mulf %104, %105 : vector<8x32xf32>
    %107 = arith.addf %103, %106 : vector<8x32xf32>
    %108 = math.tanh %107 : vector<8x32xf32>
    %109 = vector.extract_strided_slice %102 {offsets = [0, 32], sizes = [8, 32], strides = [1, 1]} : vector<8x64xf32> to vector<8x32xf32>
    %cst_48 = arith.constant 1.000000e+00 : f32
    %110 = vector.broadcast %cst_48 : f32 to vector<8x32xf32>
    %111 = arith.subf %110, %109 : vector<8x32xf32>
    %112 = arith.mulf %111, %108 : vector<8x32xf32>
    %113 = arith.mulf %109, %74 : vector<8x32xf32>
    %114 = arith.addf %112, %113 : vector<8x32xf32>
    %115 = arith.addi %23, %c1_i32_39 : i32
    %c1_i32_49 = arith.constant 1 : i32
    %116 = arith.subi %c1_i32_49, %arg0 : i32
    %117 = arith.muli %116, %115 : i32
    %c4_i32_50 = arith.constant 4 : i32
    %118 = arith.subi %c4_i32_50, %115 : i32
    %119 = arith.muli %arg0, %118 : i32
    %120 = arith.addi %117, %119 : i32
    %c5_i32_51 = arith.constant 5 : i32
    %121 = arith.cmpi slt, %120, %c5_i32_51 : i32
    %122 = arith.extui %121 : i1 to i32
    %123 = arith.sitofp %122 : i32 to f32
    %124 = vector.broadcast %123 : f32 to vector<8x32xf32>
    %125 = arith.mulf %124, %114 : vector<8x32xf32>
    %cst_52 = arith.constant 1.000000e+00 : f32
    %126 = arith.subf %cst_52, %123 : f32
    %127 = vector.broadcast %126 : f32 to vector<8x32xf32>
    %128 = arith.mulf %127, %74 : vector<8x32xf32>
    %129 = arith.addf %125, %128 : vector<8x32xf32>
    %130 = arith.truncf %129 : vector<8x32xf32> to vector<8x32xbf16>
    %c0_53 = arith.constant 0 : index
    %131 = arith.index_cast %86 : i32 to index
    %c0_54 = arith.constant 0 : index
    %132 = vector.load %arg9[%c0_53, %131, %c0_54] : memref<1x40x32xbf16, #tpu.memory_space<vmem>>, vector<1x8x32xbf16>
    %133 = vector.shape_cast %132 : vector<1x8x32xbf16> to vector<8x32xbf16>
    %134 = vector.shape_cast %130 : vector<8x32xbf16> to vector<1x8x32xbf16>
    tpu.vector_store %arg9[%c0_53, %131, %c0_54], %134 {strides = array<i32>} : memref<1x40x32xbf16, #tpu.memory_space<vmem>>, vector<1x8x32xbf16>,
    %c2_i32 = arith.constant 2 : i32
    %c1_i32_55 = arith.constant 1 : i32
    %135 = arith.subi %c1_i32_55, %arg0 : i32
    %136 = arith.muli %135, %c2_i32 : i32
    %c4_i32_56 = arith.constant 4 : i32
    %137 = arith.subi %c4_i32_56, %c2_i32 : i32
    %138 = arith.muli %arg0, %137 : i32
    %139 = arith.addi %136, %138 : i32
    %c8_i32_57 = arith.constant 8 : i32
    %140 = arith.muli %139, %c8_i32_57 : i32
    %141 = tpu.assume_multiple %140, 8 : i32
    %142 = arith.index_cast %141 : i32 to index
    %c0_58 = arith.constant 0 : index
    %143 = vector.load %arg11[%142, %c0_58] : memref<40x128xf32, #tpu.memory_space<vmem>>, vector<8x128xf32>
    %144 = arith.truncf %129 : vector<8x32xf32> to vector<8x32xbf16>
    %cst_59 = arith.constant dense<0.000000e+00> : vector<8x128xf32>
    %145 = tpu.matmul %144, %20, %cst_59 {dimension_numbers = #tpu.dot_dimension_numbers<[1], [0], [0], [1], [0, 0, 1, 1], [], []>} : vector<8x32xbf16>, vector<32x128xbf16>, vector<8x128xf32> -> vector<8x128xf32>
    %146 = vector.broadcast %22 : vector<1x128xf32> to vector<8x128xf32>
    %147 = arith.addf %145, %146 : vector<8x128xf32>
    %148 = vector.extract_strided_slice %143 {offsets = [0, 0], sizes = [8, 64], strides = [1, 1]} : vector<8x128xf32> to vector<8x64xf32>
    %149 = vector.extract_strided_slice %147 {offsets = [0, 0], sizes = [8, 64], strides = [1, 1]} : vector<8x128xf32> to vector<8x64xf32>
    %150 = arith.addf %148, %149 : vector<8x64xf32>
    %cst_60 = arith.constant 5.000000e-01 : f32
    %151 = vector.broadcast %cst_60 : f32 to vector<8x64xf32>
    %152 = arith.mulf %151, %150 : vector<8x64xf32>
    %153 = math.tanh %152 : vector<8x64xf32>
    %cst_61 = arith.constant 5.000000e-01 : f32
    %154 = vector.broadcast %cst_61 : f32 to vector<8x64xf32>
    %155 = arith.mulf %154, %153 : vector<8x64xf32>
    %cst_62 = arith.constant 5.000000e-01 : f32
    %156 = vector.broadcast %cst_62 : f32 to vector<8x64xf32>
    %157 = arith.addf %155, %156 : vector<8x64xf32>
    %158 = vector.extract_strided_slice %143 {offsets = [0, 64], sizes = [8, 32], strides = [1, 1]} : vector<8x128xf32> to vector<8x32xf32>
    %159 = vector.extract_strided_slice %157 {offsets = [0, 0], sizes = [8, 32], strides = [1, 1]} : vector<8x64xf32> to vector<8x32xf32>
    %160 = vector.extract_strided_slice %147 {offsets = [0, 64], sizes = [8, 32], strides = [1, 1]} : vector<8x128xf32> to vector<8x32xf32>
    %161 = arith.mulf %159, %160 : vector<8x32xf32>
    %162 = arith.addf %158, %161 : vector<8x32xf32>
    %163 = math.tanh %162 : vector<8x32xf32>
    %164 = vector.extract_strided_slice %157 {offsets = [0, 32], sizes = [8, 32], strides = [1, 1]} : vector<8x64xf32> to vector<8x32xf32>
    %cst_63 = arith.constant 1.000000e+00 : f32
    %165 = vector.broadcast %cst_63 : f32 to vector<8x32xf32>
    %166 = arith.subf %165, %164 : vector<8x32xf32>
    %167 = arith.mulf %166, %163 : vector<8x32xf32>
    %168 = arith.mulf %164, %129 : vector<8x32xf32>
    %169 = arith.addf %167, %168 : vector<8x32xf32>
    %170 = arith.addi %23, %c2_i32 : i32
    %c1_i32_64 = arith.constant 1 : i32
    %171 = arith.subi %c1_i32_64, %arg0 : i32
    %172 = arith.muli %171, %170 : i32
    %c4_i32_65 = arith.constant 4 : i32
    %173 = arith.subi %c4_i32_65, %170 : i32
    %174 = arith.muli %arg0, %173 : i32
    %175 = arith.addi %172, %174 : i32
    %c5_i32_66 = arith.constant 5 : i32
    %176 = arith.cmpi slt, %175, %c5_i32_66 : i32
    %177 = arith.extui %176 : i1 to i32
    %178 = arith.sitofp %177 : i32 to f32
    %179 = vector.broadcast %178 : f32 to vector<8x32xf32>
    %180 = arith.mulf %179, %169 : vector<8x32xf32>
    %cst_67 = arith.constant 1.000000e+00 : f32
    %181 = arith.subf %cst_67, %178 : f32
    %182 = vector.broadcast %181 : f32 to vector<8x32xf32>
    %183 = arith.mulf %182, %129 : vector<8x32xf32>
    %184 = arith.addf %180, %183 : vector<8x32xf32>
    %185 = arith.truncf %184 : vector<8x32xf32> to vector<8x32xbf16>
    %c0_68 = arith.constant 0 : index
    %186 = arith.index_cast %141 : i32 to index
    %c0_69 = arith.constant 0 : index
    %187 = vector.load %arg9[%c0_68, %186, %c0_69] : memref<1x40x32xbf16, #tpu.memory_space<vmem>>, vector<1x8x32xbf16>
    %188 = vector.shape_cast %187 : vector<1x8x32xbf16> to vector<8x32xbf16>
    %189 = vector.shape_cast %185 : vector<8x32xbf16> to vector<1x8x32xbf16>
    tpu.vector_store %arg9[%c0_68, %186, %c0_69], %189 {strides = array<i32>} : memref<1x40x32xbf16, #tpu.memory_space<vmem>>, vector<1x8x32xbf16>,
    %c3_i32 = arith.constant 3 : i32
    %c1_i32_70 = arith.constant 1 : i32
    %190 = arith.subi %c1_i32_70, %arg0 : i32
    %191 = arith.muli %190, %c3_i32 : i32
    %c4_i32_71 = arith.constant 4 : i32
    %192 = arith.subi %c4_i32_71, %c3_i32 : i32
    %193 = arith.muli %arg0, %192 : i32
    %194 = arith.addi %191, %193 : i32
    %c8_i32_72 = arith.constant 8 : i32
    %195 = arith.muli %194, %c8_i32_72 : i32
    %196 = tpu.assume_multiple %195, 8 : i32
    %197 = arith.index_cast %196 : i32 to index
    %c0_73 = arith.constant 0 : index
    %198 = vector.load %arg11[%197, %c0_73] : memref<40x128xf32, #tpu.memory_space<vmem>>, vector<8x128xf32>
    %199 = arith.truncf %184 : vector<8x32xf32> to vector<8x32xbf16>
    %cst_74 = arith.constant dense<0.000000e+00> : vector<8x128xf32>
    %200 = tpu.matmul %199, %20, %cst_74 {dimension_numbers = #tpu.dot_dimension_numbers<[1], [0], [0], [1], [0, 0, 1, 1], [], []>} : vector<8x32xbf16>, vector<32x128xbf16>, vector<8x128xf32> -> vector<8x128xf32>
    %201 = vector.broadcast %22 : vector<1x128xf32> to vector<8x128xf32>
    %202 = arith.addf %200, %201 : vector<8x128xf32>
    %203 = vector.extract_strided_slice %198 {offsets = [0, 0], sizes = [8, 64], strides = [1, 1]} : vector<8x128xf32> to vector<8x64xf32>
    %204 = vector.extract_strided_slice %202 {offsets = [0, 0], sizes = [8, 64], strides = [1, 1]} : vector<8x128xf32> to vector<8x64xf32>
    %205 = arith.addf %203, %204 : vector<8x64xf32>
    %cst_75 = arith.constant 5.000000e-01 : f32
    %206 = vector.broadcast %cst_75 : f32 to vector<8x64xf32>
    %207 = arith.mulf %206, %205 : vector<8x64xf32>
    %208 = math.tanh %207 : vector<8x64xf32>
    %cst_76 = arith.constant 5.000000e-01 : f32
    %209 = vector.broadcast %cst_76 : f32 to vector<8x64xf32>
    %210 = arith.mulf %209, %208 : vector<8x64xf32>
    %cst_77 = arith.constant 5.000000e-01 : f32
    %211 = vector.broadcast %cst_77 : f32 to vector<8x64xf32>
    %212 = arith.addf %210, %211 : vector<8x64xf32>
    %213 = vector.extract_strided_slice %198 {offsets = [0, 64], sizes = [8, 32], strides = [1, 1]} : vector<8x128xf32> to vector<8x32xf32>
    %214 = vector.extract_strided_slice %212 {offsets = [0, 0], sizes = [8, 32], strides = [1, 1]} : vector<8x64xf32> to vector<8x32xf32>
    %215 = vector.extract_strided_slice %202 {offsets = [0, 64], sizes = [8, 32], strides = [1, 1]} : vector<8x128xf32> to vector<8x32xf32>
    %216 = arith.mulf %214, %215 : vector<8x32xf32>
    %217 = arith.addf %213, %216 : vector<8x32xf32>
    %218 = math.tanh %217 : vector<8x32xf32>
    %219 = vector.extract_strided_slice %212 {offsets = [0, 32], sizes = [8, 32], strides = [1, 1]} : vector<8x64xf32> to vector<8x32xf32>
    %cst_78 = arith.constant 1.000000e+00 : f32
    %220 = vector.broadcast %cst_78 : f32 to vector<8x32xf32>
    %221 = arith.subf %220, %219 : vector<8x32xf32>
    %222 = arith.mulf %221, %218 : vector<8x32xf32>
    %223 = arith.mulf %219, %184 : vector<8x32xf32>
    %224 = arith.addf %222, %223 : vector<8x32xf32>
    %225 = arith.addi %23, %c3_i32 : i32
    %c1_i32_79 = arith.constant 1 : i32
    %226 = arith.subi %c1_i32_79, %arg0 : i32
    %227 = arith.muli %226, %225 : i32
    %c4_i32_80 = arith.constant 4 : i32
    %228 = arith.subi %c4_i32_80, %225 : i32
    %229 = arith.muli %arg0, %228 : i32
    %230 = arith.addi %227, %229 : i32
    %c5_i32_81 = arith.constant 5 : i32
    %231 = arith.cmpi slt, %230, %c5_i32_81 : i32
    %232 = arith.extui %231 : i1 to i32
    %233 = arith.sitofp %232 : i32 to f32
    %234 = vector.broadcast %233 : f32 to vector<8x32xf32>
    %235 = arith.mulf %234, %224 : vector<8x32xf32>
    %cst_82 = arith.constant 1.000000e+00 : f32
    %236 = arith.subf %cst_82, %233 : f32
    %237 = vector.broadcast %236 : f32 to vector<8x32xf32>
    %238 = arith.mulf %237, %184 : vector<8x32xf32>
    %239 = arith.addf %235, %238 : vector<8x32xf32>
    %240 = arith.truncf %239 : vector<8x32xf32> to vector<8x32xbf16>
    %c0_83 = arith.constant 0 : index
    %241 = arith.index_cast %196 : i32 to index
    %c0_84 = arith.constant 0 : index
    %242 = vector.load %arg9[%c0_83, %241, %c0_84] : memref<1x40x32xbf16, #tpu.memory_space<vmem>>, vector<1x8x32xbf16>
    %243 = vector.shape_cast %242 : vector<1x8x32xbf16> to vector<8x32xbf16>
    %244 = vector.shape_cast %240 : vector<8x32xbf16> to vector<1x8x32xbf16>
    tpu.vector_store %arg9[%c0_83, %241, %c0_84], %244 {strides = array<i32>} : memref<1x40x32xbf16, #tpu.memory_space<vmem>>, vector<1x8x32xbf16>,
    %c4_i32_85 = arith.constant 4 : i32
    %c1_i32_86 = arith.constant 1 : i32
    %245 = arith.subi %c1_i32_86, %arg0 : i32
    %246 = arith.muli %245, %c4_i32_85 : i32
    %c4_i32_87 = arith.constant 4 : i32
    %247 = arith.subi %c4_i32_87, %c4_i32_85 : i32
    %248 = arith.muli %arg0, %247 : i32
    %249 = arith.addi %246, %248 : i32
    %c8_i32_88 = arith.constant 8 : i32
    %250 = arith.muli %249, %c8_i32_88 : i32
    %251 = tpu.assume_multiple %250, 8 : i32
    %252 = arith.index_cast %251 : i32 to index
    %c0_89 = arith.constant 0 : index
    %253 = vector.load %arg11[%252, %c0_89] : memref<40x128xf32, #tpu.memory_space<vmem>>, vector<8x128xf32>
    %254 = arith.truncf %239 : vector<8x32xf32> to vector<8x32xbf16>
    %cst_90 = arith.constant dense<0.000000e+00> : vector<8x128xf32>
    %255 = tpu.matmul %254, %20, %cst_90 {dimension_numbers = #tpu.dot_dimension_numbers<[1], [0], [0], [1], [0, 0, 1, 1], [], []>} : vector<8x32xbf16>, vector<32x128xbf16>, vector<8x128xf32> -> vector<8x128xf32>
    %256 = vector.broadcast %22 : vector<1x128xf32> to vector<8x128xf32>
    %257 = arith.addf %255, %256 : vector<8x128xf32>
    %258 = vector.extract_strided_slice %253 {offsets = [0, 0], sizes = [8, 64], strides = [1, 1]} : vector<8x128xf32> to vector<8x64xf32>
    %259 = vector.extract_strided_slice %257 {offsets = [0, 0], sizes = [8, 64], strides = [1, 1]} : vector<8x128xf32> to vector<8x64xf32>
    %260 = arith.addf %258, %259 : vector<8x64xf32>
    %cst_91 = arith.constant 5.000000e-01 : f32
    %261 = vector.broadcast %cst_91 : f32 to vector<8x64xf32>
    %262 = arith.mulf %261, %260 : vector<8x64xf32>
    %263 = math.tanh %262 : vector<8x64xf32>
    %cst_92 = arith.constant 5.000000e-01 : f32
    %264 = vector.broadcast %cst_92 : f32 to vector<8x64xf32>
    %265 = arith.mulf %264, %263 : vector<8x64xf32>
    %cst_93 = arith.constant 5.000000e-01 : f32
    %266 = vector.broadcast %cst_93 : f32 to vector<8x64xf32>
    %267 = arith.addf %265, %266 : vector<8x64xf32>
    %268 = vector.extract_strided_slice %253 {offsets = [0, 64], sizes = [8, 32], strides = [1, 1]} : vector<8x128xf32> to vector<8x32xf32>
    %269 = vector.extract_strided_slice %267 {offsets = [0, 0], sizes = [8, 32], strides = [1, 1]} : vector<8x64xf32> to vector<8x32xf32>
    %270 = vector.extract_strided_slice %257 {offsets = [0, 64], sizes = [8, 32], strides = [1, 1]} : vector<8x128xf32> to vector<8x32xf32>
    %271 = arith.mulf %269, %270 : vector<8x32xf32>
    %272 = arith.addf %268, %271 : vector<8x32xf32>
    %273 = math.tanh %272 : vector<8x32xf32>
    %274 = vector.extract_strided_slice %267 {offsets = [0, 32], sizes = [8, 32], strides = [1, 1]} : vector<8x64xf32> to vector<8x32xf32>
    %cst_94 = arith.constant 1.000000e+00 : f32
    %275 = vector.broadcast %cst_94 : f32 to vector<8x32xf32>
    %276 = arith.subf %275, %274 : vector<8x32xf32>
    %277 = arith.mulf %276, %273 : vector<8x32xf32>
    %278 = arith.mulf %274, %239 : vector<8x32xf32>
    %279 = arith.addf %277, %278 : vector<8x32xf32>
    %280 = arith.addi %23, %c4_i32_85 : i32
    %c1_i32_95 = arith.constant 1 : i32
    %281 = arith.subi %c1_i32_95, %arg0 : i32
    %282 = arith.muli %281, %280 : i32
    %c4_i32_96 = arith.constant 4 : i32
    %283 = arith.subi %c4_i32_96, %280 : i32
    %284 = arith.muli %arg0, %283 : i32
    %285 = arith.addi %282, %284 : i32
    %c5_i32_97 = arith.constant 5 : i32
    %286 = arith.cmpi slt, %285, %c5_i32_97 : i32
    %287 = arith.extui %286 : i1 to i32
    %288 = arith.sitofp %287 : i32 to f32
    %289 = vector.broadcast %288 : f32 to vector<8x32xf32>
    %290 = arith.mulf %289, %279 : vector<8x32xf32>
    %cst_98 = arith.constant 1.000000e+00 : f32
    %291 = arith.subf %cst_98, %288 : f32
    %292 = vector.broadcast %291 : f32 to vector<8x32xf32>
    %293 = arith.mulf %292, %239 : vector<8x32xf32>
    %294 = arith.addf %290, %293 : vector<8x32xf32>
    %295 = arith.truncf %294 : vector<8x32xf32> to vector<8x32xbf16>
    %c0_99 = arith.constant 0 : index
    %296 = arith.index_cast %251 : i32 to index
    %c0_100 = arith.constant 0 : index
    %297 = vector.load %arg9[%c0_99, %296, %c0_100] : memref<1x40x32xbf16, #tpu.memory_space<vmem>>, vector<1x8x32xbf16>
    %298 = vector.shape_cast %297 : vector<1x8x32xbf16> to vector<8x32xbf16>
    %299 = vector.shape_cast %295 : vector<8x32xbf16> to vector<1x8x32xbf16>
    tpu.vector_store %arg9[%c0_99, %296, %c0_100], %299 {strides = array<i32>} : memref<1x40x32xbf16, #tpu.memory_space<vmem>>, vector<1x8x32xbf16>,
    %c5_i32_101 = arith.constant 5 : i32
    %c0_102 = arith.constant 0 : index
    %c0_103 = arith.constant 0 : index
    %300 = vector.load %arg10[%c0_102, %c0_103] : memref<8x32xf32, #tpu.memory_space<vmem>>, vector<8x32xf32>
    tpu.vector_store %arg10[%c0_102, %c0_103], %294 {strides = array<i32>} : memref<8x32xf32, #tpu.memory_space<vmem>>, vector<8x32xf32>,
    return
  }
  func.func @transform_0(%arg0: i32, %arg1: i32) -> (i32, i32, i32) {
    %c1_i32 = arith.constant 1 : i32
    %0 = arith.subi %c1_i32, %arg0 : i32
    %1 = arith.muli %0, %arg1 : i32
    %c0_i32 = arith.constant 0 : i32
    %2 = arith.subi %c0_i32, %arg1 : i32
    %3 = arith.muli %arg0, %2 : i32
    %4 = arith.addi %1, %3 : i32
    %c0_i32_0 = arith.constant 0 : i32
    %c0_i32_1 = arith.constant 0 : i32
    %c0_i32_2 = arith.constant 0 : i32
    return %c0_i32_0, %4, %c0_i32_1 : i32, i32, i32
  }
  func.func @transform_1(%arg0: i32, %arg1: i32) -> (i32, i32, i32) {
    %c0_i32 = arith.constant 0 : i32
    %c0_i32_0 = arith.constant 0 : i32
    %c0_i32_1 = arith.constant 0 : i32
    return %arg0, %c0_i32, %c0_i32_0 : i32, i32, i32
  }
  func.func @transform_2(%arg0: i32, %arg1: i32) -> (i32, i32, i32) {
    %c1_i32 = arith.constant 1 : i32
    %0 = arith.subi %c1_i32, %arg0 : i32
    %1 = arith.muli %0, %arg1 : i32
    %c0_i32 = arith.constant 0 : i32
    %2 = arith.subi %c0_i32, %arg1 : i32
    %3 = arith.muli %arg0, %2 : i32
    %4 = arith.addi %1, %3 : i32
    %c1_i32_0 = arith.constant 1 : i32
    %c0_i32_1 = arith.constant 0 : i32
    %c0_i32_2 = arith.constant 0 : i32
    return %c1_i32_0, %4, %c0_i32_1 : i32, i32, i32
  }
  func.func @transform_3(%arg0: i32, %arg1: i32) -> (i32, i32, i32) {
    %c0_i32 = arith.constant 0 : i32
    %c0_i32_0 = arith.constant 0 : i32
    %c0_i32_1 = arith.constant 0 : i32
    return %arg0, %c0_i32, %c0_i32_0 : i32, i32, i32
  }
  func.func @transform_4(%arg0: i32, %arg1: i32) -> (i32, i32, i32) {
    %c0_i32 = arith.constant 0 : i32
    %c0_i32_0 = arith.constant 0 : i32
    %c0_i32_1 = arith.constant 0 : i32
    return %arg0, %c0_i32, %c0_i32_0 : i32, i32, i32
  }
  func.func @transform_5(%arg0: i32, %arg1: i32) -> (i32, i32, i32) {
    %c0_i32 = arith.constant 0 : i32
    %c0_i32_0 = arith.constant 0 : i32
    %c0_i32_1 = arith.constant 0 : i32
    return %arg0, %c0_i32, %c0_i32_0 : i32, i32, i32
  }
  func.func @transform_6(%arg0: i32, %arg1: i32) -> (i32, i32, i32) {
    %c0_i32 = arith.constant 0 : i32
    %c0_i32_0 = arith.constant 0 : i32
    %c0_i32_1 = arith.constant 0 : i32
    return %arg0, %c0_i32, %c0_i32_0 : i32, i32, i32
  }
  func.func @transform_7(%arg0: i32, %arg1: i32) -> (i32, i32, i32) {
    %c1_i32 = arith.constant 1 : i32
    %0 = arith.subi %c1_i32, %arg0 : i32
    %1 = arith.muli %0, %arg1 : i32
    %c0_i32 = arith.constant 0 : i32
    %2 = arith.subi %c0_i32, %arg1 : i32
    %3 = arith.muli %arg0, %2 : i32
    %4 = arith.addi %1, %3 : i32
    %c0_i32_0 = arith.constant 0 : i32
    %c0_i32_1 = arith.constant 0 : i32
    return %arg0, %4, %c0_i32_0 : i32, i32, i32
  }
}

module attributes {stable_mosaic.version = 11 : i64} {
  func.func @_mm_affine_kernel(%arg0: i32, %arg1: memref<1x40x32xbf16, #tpu.memory_space<vmem>>, %arg2: memref<32x128xbf16, #tpu.memory_space<vmem>>, %arg3: memref<1x40x32xbf16, #tpu.memory_space<vmem>>, %arg4: memref<32x128xbf16, #tpu.memory_space<vmem>>, %arg5: memref<1x128xf32, #tpu.memory_space<vmem>>, %arg6: memref<40x128xf32, #tpu.memory_space<vmem>>) attributes {dimension_semantics = [#tpu.dimension_semantics<parallel>], iteration_bounds = array<i64: 1>, scalar_prefetch = 0 : i64, scratch_operands = 0 : i64, tpu.core_type = #tpu.core_type<tc>, window_params = [{transform_indices = @transform_0, window_bounds = array<i64: 1, 40, 32>}, {pipeline_mode = #tpu.pipeline_mode<synchronous>, transform_indices = @transform_1, window_bounds = array<i64: 32, 128>}, {transform_indices = @transform_2, window_bounds = array<i64: 1, 40, 32>}, {pipeline_mode = #tpu.pipeline_mode<synchronous>, transform_indices = @transform_3, window_bounds = array<i64: 32, 128>}, {pipeline_mode = #tpu.pipeline_mode<synchronous>, transform_indices = @transform_4, window_bounds = array<i64: 1, 128>}, {transform_indices = @transform_5, window_bounds = array<i64: 40, 128>}]} {
    %c0 = arith.constant 0 : index
    %c0_0 = arith.constant 0 : index
    %c0_1 = arith.constant 0 : index
    %0 = vector.load %arg1[%c0, %c0_0, %c0_1] : memref<1x40x32xbf16, #tpu.memory_space<vmem>>, vector<1x40x32xbf16>
    %1 = vector.shape_cast %0 : vector<1x40x32xbf16> to vector<40x32xbf16>
    %c0_2 = arith.constant 0 : index
    %c0_3 = arith.constant 0 : index
    %2 = vector.load %arg2[%c0_2, %c0_3] : memref<32x128xbf16, #tpu.memory_space<vmem>>, vector<32x128xbf16>
    %cst = arith.constant dense<0.000000e+00> : vector<40x128xf32>
    %3 = tpu.matmul %1, %2, %cst {dimension_numbers = #tpu.dot_dimension_numbers<[1], [0], [0], [1], [0, 0, 1, 1], [], []>} : vector<40x32xbf16>, vector<32x128xbf16>, vector<40x128xf32> -> vector<40x128xf32>
    %c0_4 = arith.constant 0 : index
    %c0_5 = arith.constant 0 : index
    %c0_6 = arith.constant 0 : index
    %4 = vector.load %arg3[%c0_4, %c0_5, %c0_6] : memref<1x40x32xbf16, #tpu.memory_space<vmem>>, vector<1x40x32xbf16>
    %5 = vector.shape_cast %4 : vector<1x40x32xbf16> to vector<40x32xbf16>
    %c0_7 = arith.constant 0 : index
    %c0_8 = arith.constant 0 : index
    %6 = vector.load %arg4[%c0_7, %c0_8] : memref<32x128xbf16, #tpu.memory_space<vmem>>, vector<32x128xbf16>
    %cst_9 = arith.constant dense<0.000000e+00> : vector<40x128xf32>
    %7 = tpu.matmul %5, %6, %cst_9 {dimension_numbers = #tpu.dot_dimension_numbers<[1], [0], [0], [1], [0, 0, 1, 1], [], []>} : vector<40x32xbf16>, vector<32x128xbf16>, vector<40x128xf32> -> vector<40x128xf32>
    %8 = arith.addf %3, %7 : vector<40x128xf32>
    %c0_10 = arith.constant 0 : index
    %c0_11 = arith.constant 0 : index
    %9 = vector.load %arg5[%c0_10, %c0_11] : memref<1x128xf32, #tpu.memory_space<vmem>>, vector<1x128xf32>
    %10 = vector.broadcast %9 : vector<1x128xf32> to vector<40x128xf32>
    %11 = arith.addf %8, %10 : vector<40x128xf32>
    %cst_12 = arith.constant dense<0xFF800000> : vector<40xf32>
    %12 = vector.multi_reduction <maximumf>, %11, %cst_12 [1] : vector<40x128xf32> to vector<40xf32>
    %13 = vector.shape_cast %12 : vector<40xf32> to vector<40x1xf32>
    %14 = vector.broadcast %13 : vector<40x1xf32> to vector<40x128xf32>
    %15 = arith.subf %11, %14 : vector<40x128xf32>
    %16 = math.exp %15 : vector<40x128xf32>
    %cst_13 = arith.constant dense<0.000000e+00> : vector<40xf32>
    %17 = vector.multi_reduction <add>, %16, %cst_13 [1] : vector<40x128xf32> to vector<40xf32>
    %18 = vector.shape_cast %17 : vector<40xf32> to vector<40x1xf32>
    %19 = math.log %18 : vector<40x1xf32>
    %20 = vector.broadcast %19 : vector<40x1xf32> to vector<40x128xf32>
    %21 = arith.subf %15, %20 : vector<40x128xf32>
    %c0_14 = arith.constant 0 : index
    %c0_15 = arith.constant 0 : index
    %22 = vector.load %arg6[%c0_14, %c0_15] : memref<40x128xf32, #tpu.memory_space<vmem>>, vector<40x128xf32>
    tpu.vector_store %arg6[%c0_14, %c0_15], %21 {strides = array<i32>} : memref<40x128xf32, #tpu.memory_space<vmem>>, vector<40x128xf32>,
    return
  }
  func.func @transform_0(%arg0: i32) -> (i32, i32, i32) {
    %c0_i32 = arith.constant 0 : i32
    %c0_i32_0 = arith.constant 0 : i32
    %c0_i32_1 = arith.constant 0 : i32
    return %c0_i32, %arg0, %c0_i32_0 : i32, i32, i32
  }
  func.func @transform_1(%arg0: i32) -> (i32, i32) {
    %c0_i32 = arith.constant 0 : i32
    %c0_i32_0 = arith.constant 0 : i32
    %c0_i32_1 = arith.constant 0 : i32
    return %c0_i32, %c0_i32_0 : i32, i32
  }
  func.func @transform_2(%arg0: i32) -> (i32, i32, i32) {
    %c1_i32 = arith.constant 1 : i32
    %c0_i32 = arith.constant 0 : i32
    %c0_i32_0 = arith.constant 0 : i32
    return %c1_i32, %arg0, %c0_i32 : i32, i32, i32
  }
  func.func @transform_3(%arg0: i32) -> (i32, i32) {
    %c0_i32 = arith.constant 0 : i32
    %c0_i32_0 = arith.constant 0 : i32
    %c0_i32_1 = arith.constant 0 : i32
    return %c0_i32, %c0_i32_0 : i32, i32
  }
  func.func @transform_4(%arg0: i32) -> (i32, i32) {
    %c0_i32 = arith.constant 0 : i32
    %c0_i32_0 = arith.constant 0 : i32
    %c0_i32_1 = arith.constant 0 : i32
    return %c0_i32, %c0_i32_0 : i32, i32
  }
  func.func @transform_5(%arg0: i32) -> (i32, i32) {
    %c0_i32 = arith.constant 0 : i32
    %c0_i32_0 = arith.constant 0 : i32
    return %arg0, %c0_i32 : i32, i32
  }
}

</mosaic_0001>

<llo_original>
// kernel: deep_speech_forward.4
$region0: #{deep_speech_forward.4}
  #allocation0 [shape = 'u32[]', space=smem, size = 0x4, offset = 0x4, fixed_abs, tag = 'smem constant byte address 0x4 - core index']
  #allocation1 [shape = 'u32[144,128]{1,0:T(1,128)}', space=vmem, size = 0x12000, scoped, tag = 'internal scratch']
  #allocation2 [shape = 'f32[8,32]{1,0:T(8,128)}', space=vmem, size = 0x1000, scoped, tag = 'scratch operand']
  #allocation3 [shape = 'f32[40,128]{1,0:T(8,128)}', space=vmem, size = 0x5000, scoped, tag = 'scratch operand']
  %s0 = inlined_call_operand.vmem [shape: bf16[2,40,32], index: 0, kind: input, shape index: {}, may-alias: {0,2}]
  %s1 = inlined_call_operand.vmem [shape: bf16[2,32,128], index: 1, kind: input, shape index: {}]
  %s2 = inlined_call_operand.vmem [shape: bf16[2,40,32], index: 2, kind: input, shape index: {}, may-alias: {0,2}]
  %s3 = inlined_call_operand.vmem [shape: bf16[2,32,128], index: 3, kind: input, shape index: {}]
  %s4 = inlined_call_operand.vmem [shape: f32[2,1,128], index: 4, kind: input, shape index: {}]
  %s5 = inlined_call_operand.vmem [shape: bf16[2,32,128], index: 5, kind: input, shape index: {}]
  %s6 = inlined_call_operand.vmem [shape: f32[2,1,128], index: 6, kind: input, shape index: {}]
  %s7 = inlined_call_operand.vmem [shape: bf16[2,40,32], index: 7, kind: output, shape index: {}]
  %s8 = sld [smem:[#allocation0]]
  $region65: #{deep_speech_forward.4} parent=0
    _
  %s10 = ssub.s32 1, %s8
  %s11 = scalar_select 0, %s10, %s8
  loop: start=0, step=1, limit=4
  $region2: #{deep_speech_forward.4} parent=0 // loop_pre_header
    _
  $region3: #{deep_speech_forward.4} parent=0 // loop_header
    %s13 = sphi 0, %s17
    %p14 = scmp.ge.s32.totalorder %s13, 4
    %s20 = sphi 0, %s32
    %s21 = sphi 0, %s28
    %s22 = sphi 0, %s20
    %s23 = sphi 0, %s21
    %s24 = sphi 0, %s22
    %s25 = sphi 0, %s23
    %s45 = sphi 0, %s47
    %s48 = sphi 0, %s45
    %s49 = sphi 0, %s48
    %s65 = sphi 0, %s49
    %s71 = sphi 0, %s73
    %s74 = sphi 0, %s71
    %s75 = sphi 0, %s74
    %s91 = sphi 0, %s75
    %s107 = sphi 0, %s109
    %s110 = sphi 0, %s107
    %s111 = sphi 0, %s110
    %s127 = sphi 0, %s111
    %s133 = sphi 0, %s135
    %s136 = sphi 0, %s133
    %s137 = sphi 0, %s136
    %s153 = sphi 0, %s137
    %s159 = sphi 0, %s161
    %s162 = sphi 0, %s159
    %s163 = sphi 0, %s162
    %s179 = sphi 0, %s163
    %s185 = sphi 0, %s187
    %s188 = sphi 0, %s185
    %s189 = sphi 0, %s188
    %s205 = sphi 0, %s189
    %s211 = sphi 0, %s213
    %s214 = sphi 0, %s211
    %s215 = sphi 0, %s214
    %s231 = sphi 0, %s215
    %s249 = sphi 0, %s251
    %s252 = sphi 0, %s249
    %s253 = sphi 0, %s252
    %s269 = sphi 0, %s253
  $region4: #{deep_speech_forward.4} parent=0 // loop_header_branch
    %16 = sbr.rel (%p14) target = $region8
  $region5: #{deep_speech_forward.4} parent=0 // loop_body
    %s18 = ssub.s32 %s13, 1
    %s19 = ssub.s32 %s13, 2
    %s26 = sadd.s32 1, %s21
    %p27 = scmp.ge.s32.totalorder %s26, 1
    %s28 = scalar_select %p27, 0, %s26
    %s29 = sadd.s32 1, %s20
    %s30 = scalar_select %p27, %s29, %s20
    %p31 = scmp.ge.s32.totalorder %s30, 2
    %s32 = scalar_select %p31, 0, %s30
    %s33 = ssub.s32 1, %s20
    %s34 = smul.u32 %s33, %s21
    %s35 = ssub.s32 0, %s21
    %s36 = smul.u32 %s20, %s35
    %s37 = sadd.s32 %s34, %s36
    %s38 = ssub.s32 1, %s32
    %s39 = smul.u32 %s38, %s28
    %s40 = ssub.s32 0, %s28
    %s41 = smul.u32 %s32, %s40
    %s42 = sadd.s32 %s39, %s41
    %s43 = ssub.s32 %s37, %s42
    %p44 = scmp.eq.s32.totalorder %s43, 0
    %s46 = sadd.s32 %s45, 1
    %s47 = scalar_select %p44, %s45, %s46
    %p50 = pneg %p44
    %p51 = scmp.eq.s32.totalorder %s13, 1
    %p52 = por %p50, %p51
    %p53 = scmp.ne.s32.totalorder %s45, %s48
    %p54 = scmp.eq.s32.totalorder %s13, 0
    %p55 = por %p53, %p54
    %p56 = scmp.ne.s32.totalorder %s45, %s48
    %p57 = scmp.eq.s32.totalorder %s18, 1
    %p58 = por %p56, %p57
    %p59 = scmp.ne.s32.totalorder %s48, %s49
    %p60 = scmp.eq.s32.totalorder %s18, 0
    %p61 = por %p59, %p60
    %p62 = scmp.ne.s32.totalorder %s48, %s49
    %p63 = scmp.eq.s32.totalorder %s19, 1
    %p64 = por %p62, %p63
    %p66 = scmp.ne.s32.totalorder %s49, %s65
    %p67 = scmp.eq.s32.totalorder %s19, 0
    %p68 = por %p66, %p67
    %s69 = ssub.s32 %s20, %s32
    %p70 = scmp.eq.s32.totalorder %s69, 0
    %s72 = sadd.s32 %s71, 1
    %s73 = scalar_select %p70, %s71, %s72
    %p76 = pneg %p70
    %p77 = scmp.eq.s32.totalorder %s13, 1
    %p78 = por %p76, %p77
    %p79 = scmp.ne.s32.totalorder %s71, %s74
    %p80 = scmp.eq.s32.totalorder %s13, 0
    %p81 = por %p79, %p80
    %p82 = scmp.ne.s32.totalorder %s71, %s74
    %p83 = scmp.eq.s32.totalorder %s18, 1
    %p84 = por %p82, %p83
    %p85 = scmp.ne.s32.totalorder %s74, %s75
    %p86 = scmp.eq.s32.totalorder %s18, 0
    %p87 = por %p85, %p86
    %p88 = scmp.ne.s32.totalorder %s74, %s75
    %p89 = scmp.eq.s32.totalorder %s19, 1
    %p90 = por %p88, %p89
    %p92 = scmp.ne.s32.totalorder %s75, %s91
    %p93 = scmp.eq.s32.totalorder %s19, 0
    %p94 = por %p92, %p93
    %s95 = ssub.s32 1, %s20
    %s96 = smul.u32 %s95, %s21
    %s97 = ssub.s32 0, %s21
    %s98 = smul.u32 %s20, %s97
    %s99 = sadd.s32 %s96, %s98
    %s100 = ssub.s32 1, %s32
    %s101 = smul.u32 %s100, %s28
    %s102 = ssub.s32 0, %s28
    %s103 = smul.u32 %s32, %s102
    %s104 = sadd.s32 %s101, %s103
    %s105 = ssub.s32 %s99, %s104
    %p106 = scmp.eq.s32.totalorder %s105, 0
    %s108 = sadd.s32 %s107, 1
    %s109 = scalar_select %p106, %s107, %s108
    %p112 = pneg %p106
    %p113 = scmp.eq.s32.totalorder %s13, 1
    %p114 = por %p112, %p113
    %p115 = scmp.ne.s32.totalorder %s107, %s110
    %p116 = scmp.eq.s32.totalorder %s13, 0
    %p117 = por %p115, %p116
    %p118 = scmp.ne.s32.totalorder %s107, %s110
    %p119 = scmp.eq.s32.totalorder %s18, 1
    %p120 = por %p118, %p119
    %p121 = scmp.ne.s32.totalorder %s110, %s111
    %p122 = scmp.eq.s32.totalorder %s18, 0
    %p123 = por %p121, %p122
    %p124 = scmp.ne.s32.totalorder %s110, %s111
    %p125 = scmp.eq.s32.totalorder %s19, 1
    %p126 = por %p124, %p125
    %p128 = scmp.ne.s32.totalorder %s111, %s127
    %p129 = scmp.eq.s32.totalorder %s19, 0
    %p130 = por %p128, %p129
    %s131 = ssub.s32 %s20, %s32
    %p132 = scmp.eq.s32.totalorder %s131, 0
    %s134 = sadd.s32 %s133, 1
    %s135 = scalar_select %p132, %s133, %s134
    %p138 = pneg %p132
    %p139 = scmp.eq.s32.totalorder %s13, 1
    %p140 = por %p138, %p139
    %p141 = scmp.ne.s32.totalorder %s133, %s136
    %p142 = scmp.eq.s32.totalorder %s13, 0
    %p143 = por %p141, %p142
    %p144 = scmp.ne.s32.totalorder %s133, %s136
    %p145 = scmp.eq.s32.totalorder %s18, 1
    %p146 = por %p144, %p145
    %p147 = scmp.ne.s32.totalorder %s136, %s137
    %p148 = scmp.eq.s32.totalorder %s18, 0
    %p149 = por %p147, %p148
    %p150 = scmp.ne.s32.totalorder %s136, %s137
    %p151 = scmp.eq.s32.totalorder %s19, 1
    %p152 = por %p150, %p151
    %p154 = scmp.ne.s32.totalorder %s137, %s153
    %p155 = scmp.eq.s32.totalorder %s19, 0
    %p156 = por %p154, %p155
    %s157 = ssub.s32 %s20, %s32
    %p158 = scmp.eq.s32.totalorder %s157, 0
    %s160 = sadd.s32 %s159, 1
    %s161 = scalar_select %p158, %s159, %s160
    %p164 = pneg %p158
    %p165 = scmp.eq.s32.totalorder %s13, 1
    %p166 = por %p164, %p165
    %p167 = scmp.ne.s32.totalorder %s159, %s162
    %p168 = scmp.eq.s32.totalorder %s13, 0
    %p169 = por %p167, %p168
    %p170 = scmp.ne.s32.totalorder %s159, %s162
    %p171 = scmp.eq.s32.totalorder %s18, 1
    %p172 = por %p170, %p171
    %p173 = scmp.ne.s32.totalorder %s162, %s163
    %p174 = scmp.eq.s32.totalorder %s18, 0
    %p175 = por %p173, %p174
    %p176 = scmp.ne.s32.totalorder %s162, %s163
    %p177 = scmp.eq.s32.totalorder %s19, 1
    %p178 = por %p176, %p177
    %p180 = scmp.ne.s32.totalorder %s163, %s179
    %p181 = scmp.eq.s32.totalorder %s19, 0
    %p182 = por %p180, %p181
    %s183 = ssub.s32 %s20, %s32
    %p184 = scmp.eq.s32.totalorder %s183, 0
    %s186 = sadd.s32 %s185, 1
    %s187 = scalar_select %p184, %s185, %s186
    %p190 = pneg %p184
    %p191 = scmp.eq.s32.totalorder %s13, 1
    %p192 = por %p190, %p191
    %p193 = scmp.ne.s32.totalorder %s185, %s188
    %p194 = scmp.eq.s32.totalorder %s13, 0
    %p195 = por %p193, %p194
    %p196 = scmp.ne.s32.totalorder %s185, %s188
    %p197 = scmp.eq.s32.totalorder %s18, 1
    %p198 = por %p196, %p197
    %p199 = scmp.ne.s32.totalorder %s188, %s189
    %p200 = scmp.eq.s32.totalorder %s18, 0
    %p201 = por %p199, %p200
    %p202 = scmp.ne.s32.totalorder %s188, %s189
    %p203 = scmp.eq.s32.totalorder %s19, 1
    %p204 = por %p202, %p203
    %p206 = scmp.ne.s32.totalorder %s189, %s205
    %p207 = scmp.eq.s32.totalorder %s19, 0
    %p208 = por %p206, %p207
    %s209 = ssub.s32 %s20, %s32
    %p210 = scmp.eq.s32.totalorder %s209, 0
    %s212 = sadd.s32 %s211, 1
    %s213 = scalar_select %p210, %s211, %s212
    %p216 = pneg %p210
    %p217 = scmp.eq.s32.totalorder %s13, 1
    %p218 = por %p216, %p217
    %p219 = scmp.ne.s32.totalorder %s211, %s214
    %p220 = scmp.eq.s32.totalorder %s13, 0
    %p221 = por %p219, %p220
    %p222 = scmp.ne.s32.totalorder %s211, %s214
    %p223 = scmp.eq.s32.totalorder %s18, 1
    %p224 = por %p222, %p223
    %p225 = scmp.ne.s32.totalorder %s214, %s215
    %p226 = scmp.eq.s32.totalorder %s18, 0
    %p227 = por %p225, %p226
    %p228 = scmp.ne.s32.totalorder %s214, %s215
    %p229 = scmp.eq.s32.totalorder %s19, 1
    %p230 = por %p228, %p229
    %p232 = scmp.ne.s32.totalorder %s215, %s231
    %p233 = scmp.eq.s32.totalorder %s19, 0
    %p234 = por %p232, %p233
    %s235 = ssub.s32 1, %s20
    %s236 = smul.u32 %s235, %s21
    %s237 = ssub.s32 0, %s21
    %s238 = smul.u32 %s20, %s237
    %s239 = sadd.s32 %s236, %s238
    %s240 = ssub.s32 1, %s32
    %s241 = smul.u32 %s240, %s28
    %s242 = ssub.s32 0, %s28
    %s243 = smul.u32 %s32, %s242
    %s244 = sadd.s32 %s241, %s243
    %s245 = ssub.s32 %s20, %s32
    %s246 = ssub.s32 %s239, %s244
    %s247 = sor.u32 %s245, %s246
    %p248 = scmp.eq.s32.totalorder %s247, 0
    %s250 = sadd.s32 %s249, 1
    %s251 = scalar_select %p248, %s249, %s250
    %p254 = pneg %p248
    %p255 = scmp.eq.s32.totalorder %s13, 1
    %p256 = por %p254, %p255
    %p257 = scmp.ne.s32.totalorder %s249, %s252
    %p258 = scmp.eq.s32.totalorder %s13, 0
    %p259 = por %p257, %p258
    %p260 = scmp.ne.s32.totalorder %s249, %s252
    %p261 = scmp.eq.s32.totalorder %s18, 1
    %p262 = por %p260, %p261
    %p263 = scmp.ne.s32.totalorder %s252, %s253
    %p264 = scmp.eq.s32.totalorder %s18, 0
    %p265 = por %p263, %p264
    %p266 = scmp.ne.s32.totalorder %s252, %s253
    %p267 = scmp.eq.s32.totalorder %s19, 1
    %p268 = por %p266, %p267
    %p270 = scmp.ne.s32.totalorder %s253, %s269
    %p271 = scmp.eq.s32.totalorder %s19, 0
    %p272 = por %p270, %p271
    %p273 = scmp.le.s32.totalorder 1, %s13
    %p274 = scmp.lt.s32.totalorder %s13, 3
    %p275 = pnand %p273, %p274
    %p276 = pneg %p275
    // Predicated region
    $region9: #{deep_speech_forward.4} parent=5 // pred_check
      _
    $region10: #{deep_speech_forward.4} parent=5 // pred_check_branch
      %278 = sbr.rel (%p275) target = $region12
    $region11: #{deep_speech_forward.4} parent=5 // pred_region
      %s279 = ssub.s32 %s13, 1
    $region12: #{deep_speech_forward.4} parent=5 // pred_fallthru
      _
    %p280 = scmp.lt.s32.totalorder %s13, 2
    // Predicated region
    $region13: #{deep_speech_forward.4} parent=5 // pred_check
      %p281 = pneg %p280
    $region14: #{deep_speech_forward.4} parent=5 // pred_check_branch
      %283 = sbr.rel (%p281) target = $region16
    $region15: #{deep_speech_forward.4} parent=5 // pred_region
      // Predicated region
      $region17: #{deep_speech_forward.4} parent=15 // pred_check
        %p284 = pneg %p55
      $region18: #{deep_speech_forward.4} parent=15 // pred_check_branch
        %286 = sbr.rel (%p284) target = $region20
      $region19: #{deep_speech_forward.4} parent=15 // pred_region
        %s287 = ssub.s32 1, %s20
        %s288 = smul.u32 %s287, %s21
        %s289 = ssub.s32 0, %s21
        %s290 = smul.u32 %s20, %s289
        %s291 = sadd.s32 %s288, %s290
        %s292 = smul.u32 5, %s291
        %p293 = scmp.lt.s32.totalorder %s292, 4
        %s294 = scalar_select %p293, %s292, 4
        %s295 = smul.addr %s294, 4
        %s296 = scalar_lea.vmem %s0, %s295
        %s297 = ssub.s32 1, %s20
        %s298 = smul.u32 %s297, %s21
        %s299 = ssub.s32 0, %s21
        %s300 = smul.u32 %s20, %s299
        %s301 = sadd.s32 %s298, %s300
        %s302 = smul.u32 5, %s301
      $region20: #{deep_speech_forward.4} parent=15 // pred_fallthru
        _
      // Predicated region
      $region21: #{deep_speech_forward.4} parent=15 // pred_check
        %p303 = pneg %p81
      $region22: #{deep_speech_forward.4} parent=15 // pred_check_branch
        %305 = sbr.rel (%p303) target = $region24
      $region23: #{deep_speech_forward.4} parent=15 // pred_region
        %p306 = scmp.lt.s32.totalorder %s20, 1
        %s307 = scalar_select %p306, %s20, 1
        %s308 = smul.addr %s307, 4
        %s309 = smul.addr %s308, 4
        %s310 = scalar_lea.vmem %s1, %s309
      $region24: #{deep_speech_forward.4} parent=15 // pred_fallthru
        _
      // Predicated region
      $region25: #{deep_speech_forward.4} parent=15 // pred_check
        %p311 = pneg %p117
      $region26: #{deep_speech_forward.4} parent=15 // pred_check_branch
        %313 = sbr.rel (%p311) target = $region28
      $region27: #{deep_speech_forward.4} parent=15 // pred_region
        %s314 = ssub.s32 1, %s20
        %s315 = smul.u32 %s314, %s21
        %s316 = ssub.s32 0, %s21
        %s317 = smul.u32 %s20, %s316
        %s318 = sadd.s32 %s315, %s317
        %s319 = smul.u32 5, %s318
        %p320 = scmp.lt.s32.totalorder %s319, 4
        %s321 = scalar_select %p320, %s319, 4
        %s322 = sadd.s32 %s321, 5
        %s323 = smul.addr %s322, 4
        %s324 = scalar_lea.vmem %s2, %s323
        %s325 = ssub.s32 1, %s20
        %s326 = smul.u32 %s325, %s21
        %s327 = ssub.s32 0, %s21
        %s328 = smul.u32 %s20, %s327
        %s329 = sadd.s32 %s326, %s328
        %s330 = smul.u32 5, %s329
      $region28: #{deep_speech_forward.4} parent=15 // pred_fallthru
        _
      // Predicated region
      $region29: #{deep_speech_forward.4} parent=15 // pred_check
        %p331 = pneg %p143
      $region30: #{deep_speech_forward.4} parent=15 // pred_check_branch
        %333 = sbr.rel (%p331) target = $region32
      $region31: #{deep_speech_forward.4} parent=15 // pred_region
        %p334 = scmp.lt.s32.totalorder %s20, 1
        %s335 = scalar_select %p334, %s20, 1
        %s336 = smul.addr %s335, 4
        %s337 = smul.addr %s336, 4
        %s338 = scalar_lea.vmem %s3, %s337
      $region32: #{deep_speech_forward.4} parent=15 // pred_fallthru
        _
      // Predicated region
      $region33: #{deep_speech_forward.4} parent=15 // pred_check
        %p339 = pneg %p169
      $region34: #{deep_speech_forward.4} parent=15 // pred_check_branch
        %341 = sbr.rel (%p339) target = $region36
      $region35: #{deep_speech_forward.4} parent=15 // pred_region
        %p342 = scmp.lt.s32.totalorder %s20, 1
        %s343 = scalar_select %p342, %s20, 1
        %s344 = scalar_lea.vmem %s4, %s343
      $region36: #{deep_speech_forward.4} parent=15 // pred_fallthru
        _
      // Predicated region
      $region37: #{deep_speech_forward.4} parent=15 // pred_check
        %p345 = pneg %p195
      $region38: #{deep_speech_forward.4} parent=15 // pred_check_branch
        %347 = sbr.rel (%p345) target = $region40
      $region39: #{deep_speech_forward.4} parent=15 // pred_region
        %p348 = scmp.lt.s32.totalorder %s20, 1
        %s349 = scalar_select %p348, %s20, 1
        %s350 = smul.addr %s349, 4
        %s351 = smul.addr %s350, 4
        %s352 = scalar_lea.vmem %s5, %s351
      $region40: #{deep_speech_forward.4} parent=15 // pred_fallthru
        _
      // Predicated region
      $region41: #{deep_speech_forward.4} parent=15 // pred_check
        %p353 = pneg %p221
      $region42: #{deep_speech_forward.4} parent=15 // pred_check_branch
        %355 = sbr.rel (%p353) target = $region44
      $region43: #{deep_speech_forward.4} parent=15 // pred_region
        %p356 = scmp.lt.s32.totalorder %s20, 1
        %s357 = scalar_select %p356, %s20, 1
        %s358 = scalar_lea.vmem %s6, %s357
      $region44: #{deep_speech_forward.4} parent=15 // pred_fallthru
        _
    $region16: #{deep_speech_forward.4} parent=5 // pred_fallthru
      _
    %p359 = scmp.le.s32.totalorder 1, %s13
    %p360 = scmp.lt.s32.totalorder %s13, 3
    %p361 = pnand %p359, %p360
    %p362 = pneg %p361
    // Predicated region
    $region45: #{deep_speech_forward.4} parent=5 // pred_check
      _
    $region46: #{deep_speech_forward.4} parent=5 // pred_check_branch
      %364 = sbr.rel (%p361) target = $region48
    $region47: #{deep_speech_forward.4} parent=5 // pred_region
      %s365 = ssub.s32 %s13, 1
      %s366 = ssub.s32 1, %s22
      %s367 = smul.u32 %s366, %s23
      %s368 = ssub.s32 0, %s23
      %s369 = smul.u32 %s22, %s368
      %s370 = sadd.s32 %s367, %s369
      %s371 = smul.u32 5, %s370
      %p372 = scmp.lt.s32.totalorder %s371, 4
      %s373 = scalar_select %p372, %s371, 4
      %s374 = smul.addr %s373, 4
      %s375 = scalar_lea.vmem %s0, %s374
      %p376 = pneg %p61
      %p377 = pneg %p58
      %p378 = scmp.lt.s32.totalorder %s22, 1
      %s379 = scalar_select %p378, %s22, 1
      %s380 = smul.addr %s379, 4
      %s381 = smul.addr %s380, 4
      %s382 = scalar_lea.vmem %s1, %s381
      %p383 = pneg %p87
      %p384 = pneg %p84
      %s385 = ssub.s32 1, %s22
      %s386 = smul.u32 %s385, %s23
      %s387 = ssub.s32 0, %s23
      %s388 = smul.u32 %s22, %s387
      %s389 = sadd.s32 %s386, %s388
      %s390 = smul.u32 5, %s389
      %p391 = scmp.lt.s32.totalorder %s390, 4
      %s392 = scalar_select %p391, %s390, 4
      %s393 = sadd.s32 %s392, 5
      %s394 = smul.addr %s393, 4
      %s395 = scalar_lea.vmem %s2, %s394
      %p396 = pneg %p123
      %p397 = pneg %p120
      %p398 = scmp.lt.s32.totalorder %s22, 1
      %s399 = scalar_select %p398, %s22, 1
      %s400 = smul.addr %s399, 4
      %s401 = smul.addr %s400, 4
      %s402 = scalar_lea.vmem %s3, %s401
      %p403 = pneg %p149
      %p404 = pneg %p146
      %p405 = scmp.lt.s32.totalorder %s22, 1
      %s406 = scalar_select %p405, %s22, 1
      %s407 = scalar_lea.vmem %s4, %s406
      %p408 = pneg %p175
      %p409 = pneg %p172
      %p410 = scmp.lt.s32.totalorder %s22, 1
      %s411 = scalar_select %p410, %s22, 1
      %s412 = smul.addr %s411, 4
      %s413 = smul.addr %s412, 4
      %s414 = scalar_lea.vmem %s5, %s413
      %p415 = pneg %p201
      %p416 = pneg %p198
      %p417 = scmp.lt.s32.totalorder %s22, 1
      %s418 = scalar_select %p417, %s22, 1
      %s419 = scalar_lea.vmem %s6, %s418
      %p420 = pneg %p227
      %p421 = pneg %p224
      %p422 = pneg %p265
      %p423 = pneg %p262
      %s424 = ssub.s32 1, %s22
      %s425 = smul.u32 %s424, %s23
      %s426 = ssub.s32 0, %s23
      %s427 = smul.u32 %s22, %s426
      %s428 = sadd.s32 %s425, %s427
      %s429 = smul.u32 5, %s428
      %p430 = scmp.lt.s32.totalorder %s22, 1
      %s431 = scalar_select %p430, %s22, 1
      %p432 = scmp.lt.s32.totalorder %s429, 4
      %s433 = scalar_select %p432, %s429, 4
      %s434 = smul.addr %s431, 5
      %s435 = sadd.s32 %s433, %s434
      %s436 = smul.addr %s435, 4
      %s437 = scalar_lea.vmem %s7, %s436
      %s438 = ssub.s32 1, %s22
      %s439 = smul.u32 %s438, %s23
      %s440 = ssub.s32 0, %s23
      %s441 = smul.u32 %s22, %s440
      %s442 = sadd.s32 %s439, %s441
      %s443 = smul.u32 5, %s442
      %p444 = scmp.lt.s32.totalorder %s443, 4
      %s445 = scalar_select %p444, %s443, 4
      %s446 = smul.addr %s445, 4
      %s447 = scalar_lea.vmem %s0, %s446
      %s448 = ssub.s32 1, %s22
      %s449 = smul.u32 %s448, %s23
      %s450 = ssub.s32 0, %s23
      %s451 = smul.u32 %s22, %s450
      %s452 = sadd.s32 %s449, %s451
      %s453 = smul.u32 5, %s452
      %p454 = scmp.lt.s32.totalorder %s22, 1
      %s455 = scalar_select %p454, %s22, 1
      %s456 = smul.addr %s455, 4
      %s457 = smul.addr %s456, 4
      %s458 = scalar_lea.vmem %s1, %s457
      %s459 = ssub.s32 1, %s22
      %s460 = smul.u32 %s459, %s23
      %s461 = ssub.s32 0, %s23
      %s462 = smul.u32 %s22, %s461
      %s463 = sadd.s32 %s460, %s462
      %s464 = smul.u32 5, %s463
      %p465 = scmp.lt.s32.totalorder %s464, 4
      %s466 = scalar_select %p465, %s464, 4
      %s467 = sadd.s32 %s466, 5
      %s468 = smul.addr %s467, 4
      %s469 = scalar_lea.vmem %s2, %s468
      %s470 = ssub.s32 1, %s22
      %s471 = smul.u32 %s470, %s23
      %s472 = ssub.s32 0, %s23
      %s473 = smul.u32 %s22, %s472
      %s474 = sadd.s32 %s471, %s473
      %s475 = smul.u32 5, %s474
      %p476 = scmp.lt.s32.totalorder %s22, 1
      %s477 = scalar_select %p476, %s22, 1
      %s478 = smul.addr %s477, 4
      %s479 = smul.addr %s478, 4
      %s480 = scalar_lea.vmem %s3, %s479
      %p481 = scmp.lt.s32.totalorder %s22, 1
      %s482 = scalar_select %p481, %s22, 1
      %s483 = scalar_lea.vmem %s4, %s482
      %p484 = scmp.lt.s32.totalorder %s22, 1
      %s485 = scalar_select %p484, %s22, 1
      %s486 = smul.addr %s485, 4
      %s487 = smul.addr %s486, 4
      %s488 = scalar_lea.vmem %s5, %s487
      %p489 = scmp.lt.s32.totalorder %s22, 1
      %s490 = scalar_select %p489, %s22, 1
      %s491 = scalar_lea.vmem %s6, %s490
      %s492 = ssub.s32 1, %s22
      %s493 = smul.u32 %s492, %s23
      %s494 = ssub.s32 0, %s23
      %s495 = smul.u32 %s22, %s494
      %s496 = sadd.s32 %s493, %s495
      %s497 = smul.u32 5, %s496
      %p498 = scmp.lt.s32.totalorder %s22, 1
      %s499 = scalar_select %p498, %s22, 1
      %p500 = scmp.lt.s32.totalorder %s497, 4
      %s501 = scalar_select %p500, %s497, 4
      %s502 = smul.addr %s499, 5
      %s503 = sadd.s32 %s501, %s502
      %s504 = smul.addr %s503, 4
      %s505 = scalar_lea.vmem %s7, %s504
      %s506 = ssub.s32 1, %s22
      %s507 = smul.u32 %s506, %s23
      %s508 = ssub.s32 0, %s23
      %s509 = smul.u32 %s22, %s508
      %s510 = sadd.s32 %s507, %s509
      %s511 = smul.u32 5, %s510
      %p513 = scmp.eq.s32.totalorder %s23, 0
      // Predicated region
      $region49: #{deep_speech_forward.4} parent=47 // pred_check
        %p514 = pneg %p513
      $region50: #{deep_speech_forward.4} parent=47 // pred_check_branch
        %516 = sbr.rel (%p514) target = $region52
      $region51: #{deep_speech_forward.4} parent=47 // pred_region
        %vm517 = vcmask 261120
        %518 = vst.msk [vmem:[#allocation2] sm:$0xff] %vm517, 0.0
      $region52: #{deep_speech_forward.4} parent=47 // pred_fallthru
        _
      %v519 = vld [vmem:[%s458] sm:$0xf]
      %v520 = vld [vmem:[%s458 + $0x4] sm:$0xf]
      %v521 = vld [vmem:[%s458 + $0x8] sm:$0xf]
      %v522 = vld [vmem:[%s458 + $0xc] sm:$0xf]
      %v523 = vld [vmem:[%s480] sm:$0xf]
      %v524 = vld [vmem:[%s480 + $0x4] sm:$0xf]
      %v525 = vld [vmem:[%s480 + $0x8] sm:$0xf]
      %v526 = vld [vmem:[%s480 + $0xc] sm:$0xf]
      %v527 = vld [vmem:[%s483] sm:$0x1]
      %v528 = vld [vmem:[%s447] sm:$0xf]
      %v529 = vld [vmem:[%s447 + $0x4] sm:$0xf]
      %v530 = vld [vmem:[%s447 + $0x8] sm:$0xf]
      %v531 = vld [vmem:[%s447 + $0xc] sm:$0xf]
      %v532 = vld [vmem:[%s447 + $0x10] sm:$0xf]
      %v533 = vld [vmem:[%s469] sm:$0xf]
      %v534 = vld [vmem:[%s469 + $0x4] sm:$0xf]
      %v535 = vld [vmem:[%s469 + $0x8] sm:$0xf]
      %v536 = vld [vmem:[%s469 + $0xc] sm:$0xf]
      %v537 = vld [vmem:[%s469 + $0x10] sm:$0xf]
      %v543 = vunpack.c.l.b16 %v533
      %v544 = vunpack.c.l.b16 %v534
      %v545 = vunpack.c.l.b16 %v535
      %v546 = vunpack.c.l.b16 %v536
      %v547 = vunpack.c.l.b16 %v537
      %v548 = vpack.c.b16 %v544, %v543
      %v549 = vpack.c.b16 %v546, %v545
      %v550 = vpack.c.b16 %v547, %v547
      %v555 = vunpack.c.l.b16 %v523
      %v556 = vunpack.c.l.b16 %v524
      %v557 = vunpack.c.l.b16 %v525
      %v558 = vunpack.c.l.b16 %v526
      %v559 = vpack.c.b16 %v556, %v555
      %v560 = vpack.c.b16 %v558, %v557
      %vm563 = vcmask 261120
      %v565 = vsel %vm563, %v548, 0
      %v568 = vsel %vm563, %v549, 0
      %v571 = vsel %vm563, %v550, 0
      %573 = vmatprep.subr.bf16.mxu0 0
      %574 = vmatpush1.bf16.msra.mxu0 0
      %575 = vmatprep.subr.bf16.mxu0 0
      %576 = vmatpush1.bf16.msra.mxu0 0
      %577 = vmatprep.subr.bf16.mxu0 0
      %578 = vmatpush1.bf16.msra.mxu0 0
      %579 = vmatprep.subr.bf16.mxu0 0
      %580 = vmatpush1.bf16.msra.mxu0 0
      %581 = vmatprep.subr.bf16.mxu0 0
      %582 = vmatpush1.bf16.msra.mxu0 0
      %583 = vmatprep.subr.bf16.mxu0 0
      %584 = vmatpush1.bf16.msra.mxu0 0
      %585 = vmatprep.subr.bf16.mxu0 0
      %586 = vmatpush1.bf16.msra.mxu0 %v560
      %587 = vmatprep.subr.bf16.mxu0 0
      %588 = vmatpush1.bf16.msra.mxu0 %v559
      %589 = vmatprep.subr.bf16.mxu0 0
      %590 = vmatpush2.bf16.msra.mxu0 0
      %591 = vmatprep.subr.bf16.mxu0 0
      %592 = vmatpush2.bf16.msra.mxu0 0
      %593 = vmatprep.subr.bf16.mxu0 0
      %594 = vmatpush2.bf16.msra.mxu0 0
      %595 = vmatprep.subr.bf16.mxu0 0
      %596 = vmatpush2.bf16.msra.mxu0 0
      %597 = vmatprep.subr.bf16.mxu0 0
      %598 = vmatpush2.bf16.msra.mxu0 0
      %599 = vmatprep.subr.bf16.mxu0 0
      %600 = vmatpush2.bf16.msra.mxu0 0
      %601 = vmatprep.subr.bf16.mxu0 0
      %602 = vmatpush2.bf16.msra.mxu0 0
      %603 = vmatprep.subr.bf16.mxu0 0
      %604 = vmatpush2.bf16.msra.mxu0 0
      %605 = vmatprep.mubr.bf16.mxu0 0
      %606 = vmatmul.mubr.bf16.gmra.mxu0 %v565
      %v607 = vpop.f32.mrf.mxu0
      %v608 = vadd.f32 0.0, %v607
      %v609 = vpop.f32.mrf.mxu0
      %v610 = vpop.f32.mrf.mxu0
      %v611 = vadd.f32 0.0, %v610
      %v612 = vpop.f32.mrf.mxu0
      %613 = vmatprep.mubr.bf16.mxu0 0
      %614 = vmatmul.mubr.bf16.gmra.mxu0 %v568
      %v615 = vpop.f32.mrf.mxu0
      %v616 = vadd.f32 0.0, %v615
      %v617 = vpop.f32.mrf.mxu0
      %v618 = vpop.f32.mrf.mxu0
      %v619 = vadd.f32 0.0, %v618
      %v620 = vpop.f32.mrf.mxu0
      %621 = vmatprep.mubr.bf16.mxu0 0
      %622 = vmatmul.mubr.bf16.gmra.mxu0 %v571
      %v623 = vpop.f32.mrf.mxu0
      %v624 = vadd.f32 0.0, %v623
      %v625 = vpop.f32.mrf.mxu0
      %v626 = vpop.f32.mrf.mxu0
      %v627 = vpop.f32.mrf.mxu0
      %628 = vdwg.mxu0
      %v634 = vunpack.c.l.b16 %v528
      %v635 = vunpack.c.l.b16 %v529
      %v636 = vunpack.c.l.b16 %v530
      %v637 = vunpack.c.l.b16 %v531
      %v638 = vunpack.c.l.b16 %v532
      %v639 = vpack.c.b16 %v635, %v634
      %v640 = vpack.c.b16 %v637, %v636
      %v641 = vpack.c.b16 %v638, %v638
      %v646 = vunpack.c.l.b16 %v519
      %v647 = vunpack.c.l.b16 %v520
      %v648 = vunpack.c.l.b16 %v521
      %v649 = vunpack.c.l.b16 %v522
      %v650 = vpack.c.b16 %v647, %v646
      %v651 = vpack.c.b16 %v649, %v648
      %v655 = vsel %vm563, %v639, 0
      %v658 = vsel %vm563, %v640, 0
      %v661 = vsel %vm563, %v641, 0
      %663 = vmatprep.subr.bf16.mxu0 0
      %664 = vmatpush1.bf16.msra.mxu0 0
      %665 = vmatprep.subr.bf16.mxu0 0
      %666 = vmatpush1.bf16.msra.mxu0 0
      %667 = vmatprep.subr.bf16.mxu0 0
      %668 = vmatpush1.bf16.msra.mxu0 0
      %669 = vmatprep.subr.bf16.mxu0 0
      %670 = vmatpush1.bf16.msra.mxu0 0
      %671 = vmatprep.subr.bf16.mxu0 0
      %672 = vmatpush1.bf16.msra.mxu0 0
      %673 = vmatprep.subr.bf16.mxu0 0
      %674 = vmatpush1.bf16.msra.mxu0 0
      %675 = vmatprep.subr.bf16.mxu0 0
      %676 = vmatpush1.bf16.msra.mxu0 %v651
      %677 = vmatprep.subr.bf16.mxu0 0
      %678 = vmatpush1.bf16.msra.mxu0 %v650
      %679 = vmatprep.subr.bf16.mxu0 0
      %680 = vmatpush2.bf16.msra.mxu0 0
      %681 = vmatprep.subr.bf16.mxu0 0
      %682 = vmatpush2.bf16.msra.mxu0 0
      %683 = vmatprep.subr.bf16.mxu0 0
      %684 = vmatpush2.bf16.msra.mxu0 0
      %685 = vmatprep.subr.bf16.mxu0 0
      %686 = vmatpush2.bf16.msra.mxu0 0
      %687 = vmatprep.subr.bf16.mxu0 0
      %688 = vmatpush2.bf16.msra.mxu0 0
      %689 = vmatprep.subr.bf16.mxu0 0
      %690 = vmatpush2.bf16.msra.mxu0 0
      %691 = vmatprep.subr.bf16.mxu0 0
      %692 = vmatpush2.bf16.msra.mxu0 0
      %693 = vmatprep.subr.bf16.mxu0 0
      %694 = vmatpush2.bf16.msra.mxu0 0
      %695 = vmatprep.mubr.bf16.mxu0 0
      %696 = vmatmul.mubr.bf16.gmra.mxu0 %v655
      %v697 = vpop.f32.mrf.mxu0
      %v698 = vadd.f32 %v608, %v697
      %v699 = vpop.f32.mrf.mxu0
      %v700 = vpop.f32.mrf.mxu0
      %v701 = vadd.f32 %v611, %v700
      %v702 = vpop.f32.mrf.mxu0
      %703 = vmatprep.mubr.bf16.mxu0 0
      %704 = vmatmul.mubr.bf16.gmra.mxu0 %v658
      %v705 = vpop.f32.mrf.mxu0
      %v706 = vadd.f32 %v616, %v705
      %v707 = vpop.f32.mrf.mxu0
      %v708 = vpop.f32.mrf.mxu0
      %v709 = vadd.f32 %v619, %v708
      %v710 = vpop.f32.mrf.mxu0
      %711 = vmatprep.mubr.bf16.mxu0 0
      %712 = vmatmul.mubr.bf16.gmra.mxu0 %v661
      %v713 = vpop.f32.mrf.mxu0
      %v714 = vadd.f32 %v624, %v713
      %v715 = vpop.f32.mrf.mxu0
      %v716 = vpop.f32.mrf.mxu0
      %v717 = vpop.f32.mrf.mxu0
      %718 = vdwg.mxu0
      %v720 = vlaneseq
      %v721 = vshrl.u32 %v720, 7
      %v722 = vsub.s32 0, %v721
      %v723 = vrot.slane %v527, %v722
      %v725 = vadd.f32 %v698, %v723
      %v726 = vadd.f32 %v701, %v723
      %v727 = vadd.f32 %v706, %v723
      %v728 = vadd.f32 %v709, %v723
      %v729 = vadd.f32 %v714, %v723
      %730 = vst [vmem:[#allocation3] sm:$0xff] %v725
      %731 = vst [vmem:[#allocation3 + $0x8] sm:$0xff] %v726
      %732 = vst [vmem:[#allocation3 + $0x10] sm:$0xff] %v727
      %733 = vst [vmem:[#allocation3 + $0x18] sm:$0xff] %v728
      %734 = vst [vmem:[#allocation3 + $0x20] sm:$0xff] %v729
      %v735 = vld [vmem:[%s488] sm:$0xf]
      %v736 = vld [vmem:[%s488 + $0x4] sm:$0xf]
      %v737 = vld [vmem:[%s488 + $0x8] sm:$0xf]
      %v738 = vld [vmem:[%s488 + $0xc] sm:$0xf]
      %v739 = vld [vmem:[%s491] sm:$0x1]
      %s740 = smul.u32 %s23, 5
      %v741 = vld [vmem:[#allocation2] sm:$0xff]
      %s742 = smul.u32 %s22, 32
      %s743 = scalar_lea.vmem [#allocation3], %s742
      %v744 = vld [vmem:[%s743] sm:$0xff]
      %v745 = vpack.c.bf16 %v741, %v741
      %v747 = vlaneseq
      %v748 = vshrl.u32 %v747, 7
      %v749 = vsub.s32 0, %v748
      %v750 = vrot.slane %v739, %v749
      %v756 = vunpack.c.l.b16 %v735
      %v757 = vunpack.c.l.b16 %v736
      %v758 = vunpack.c.l.b16 %v737
      %v759 = vunpack.c.l.b16 %v738
      %v760 = vpack.c.b16 %v757, %v756
      %v761 = vpack.c.b16 %v759, %v758
      %v765 = vsel %vm563, %v745, 0
      %767 = vmatprep.subr.bf16.mxu0 0
      %768 = vmatpush1.bf16.msra.mxu0 0
      %769 = vmatprep.subr.bf16.mxu0 0
      %770 = vmatpush1.bf16.msra.mxu0 0
      %771 = vmatprep.subr.bf16.mxu0 0
      %772 = vmatpush1.bf16.msra.mxu0 0
      %773 = vmatprep.subr.bf16.mxu0 0
      %774 = vmatpush1.bf16.msra.mxu0 0
      %775 = vmatprep.subr.bf16.mxu0 0
      %776 = vmatpush1.bf16.msra.mxu0 0
      %777 = vmatprep.subr.bf16.mxu0 0
      %778 = vmatpush1.bf16.msra.mxu0 0
      %779 = vmatprep.subr.bf16.mxu0 0
      %780 = vmatpush1.bf16.msra.mxu0 %v761
      %781 = vmatprep.subr.bf16.mxu0 0
      %782 = vmatpush1.bf16.msra.mxu0 %v760
      %783 = vmatprep.subr.bf16.mxu0 0
      %784 = vmatpush2.bf16.msra.mxu0 0
      %785 = vmatprep.subr.bf16.mxu0 0
      %786 = vmatpush2.bf16.msra.mxu0 0
      %787 = vmatprep.subr.bf16.mxu0 0
      %788 = vmatpush2.bf16.msra.mxu0 0
      %789 = vmatprep.subr.bf16.mxu0 0
      %790 = vmatpush2.bf16.msra.mxu0 0
      %791 = vmatprep.subr.bf16.mxu0 0
      %792 = vmatpush2.bf16.msra.mxu0 0
      %793 = vmatprep.subr.bf16.mxu0 0
      %794 = vmatpush2.bf16.msra.mxu0 0
      %795 = vmatprep.subr.bf16.mxu0 0
      %796 = vmatpush2.bf16.msra.mxu0 0
      %797 = vmatprep.subr.bf16.mxu0 0
      %798 = vmatpush2.bf16.msra.mxu0 0
      %799 = vmatprep.mubr.bf16.mxu0 0
      %800 = vmatmul.mubr.bf16.gmra.mxu0 %v765
      %v801 = vpop.f32.mrf.mxu0
      %v802 = vadd.f32 %v750, %v801
      %v803 = vpop.f32.mrf.mxu0
      %v804 = vpop.f32.mrf.mxu0
      %v805 = vpop.f32.mrf.mxu0
      %806 = vdwg.mxu0
      %v807 = vadd.f32 %v744, %v802
      %v808 = vmul.f32 %v807, 0.5
      %v809 = vtanh.pop %v808
      %v810 = vmul.f32 %v809, 0.5
      %v811 = vadd.f32 %v810, 0.5
      %813 = vrot.lane.b32.xlu0 %v802, 64
      %v814 = vpop.permute.xlu0 %813
      %v816 = vmul.f32 %v811, %v814
      %818 = vrot.lane.b32.xlu0 %v816, 64
      %v819 = vpop.permute.xlu0 %818
      %v821 = vadd.f32 %v744, %v819
      %v822 = vtanh.pop %v821
      %v823 = vsub.f32 1.0, %v811
      %825 = vrot.lane.b32.xlu0 %v822, 96
      %v826 = vpop.permute.xlu0 %825
      %v828 = vmul.f32 %v823, %v826
      %830 = vrot.lane.b32.xlu0 %v741, 32
      %v831 = vpop.permute.xlu0 %830
      %v833 = vmul.f32 %v811, %v831
      %v834 = vadd.f32 %v828, %v833
      %s835 = ssub.s32 1, %s22
      %s836 = smul.u32 %s835, %s740
      %s837 = ssub.s32 4, %s740
      %s838 = smul.u32 %s22, %s837
      %s839 = sadd.s32 %s836, %s838
      %p840 = scmp.lt.s32.totalorder %s839, 5
      %s841 = scalar_select %p840, 1, 0
      %s842 = scvt.s32.f32 %s841
      %v843 = vstv %s842
      %v844 = vmul.f32 %v843, %v834
      %s845 = ssub.f32 1.0, %s842
      %v846 = vstv %s845
      %v847 = vmul.f32 %v846, %v741
      %849 = vrot.lane.b32.xlu0 %v847, 32
      %v850 = vpop.permute.xlu0 %849
      %v852 = vadd.f32 %v844, %v850
      %v853 = vpack.c.bf16 %v852, %v852
      %v855 = vunpack.c.l.b16 %v853
      %v856 = vpack.c.b16 %v855, %v855
      %857 = vrot.lane.b32.xlu0 %v856, 96
      %v858 = vpop.permute.xlu0 %857
      %s860 = sshra.s32 %s742, 3
      %s861 = sand.u32 %s742, 7
      %s862 = smul.addr %s860, 4
      %s863 = scalar_lea.vmem %s505, %s862
      %vm864 = vcmask 257024
      %865 = vst.msk [vmem:[%s863] sm:$0xf] %vm864, %v858
      %s866 = smul.u32 %s22, 3
      %s867 = sadd.s32 %s835, %s866
      %s868 = smul.u32 %s867, 8
      %s869 = scalar_lea.vmem [#allocation3], %s868
      %v870 = vld [vmem:[%s869] sm:$0xff]
      %871 = vrot.lane.b32.xlu0 %v853, 96
      %v872 = vpop.permute.xlu0 %871
      %v874 = vsel %vm563, %v872, 0
      %876 = vmatprep.subr.bf16.mxu0 0
      %877 = vmatpush1.bf16.msra.mxu0 0
      %878 = vmatprep.subr.bf16.mxu0 0
      %879 = vmatpush1.bf16.msra.mxu0 0
      %880 = vmatprep.subr.bf16.mxu0 0
      %881 = vmatpush1.bf16.msra.mxu0 0
      %882 = vmatprep.subr.bf16.mxu0 0
      %883 = vmatpush1.bf16.msra.mxu0 0
      %884 = vmatprep.subr.bf16.mxu0 0
      %885 = vmatpush1.bf16.msra.mxu0 0
      %886 = vmatprep.subr.bf16.mxu0 0
      %887 = vmatpush1.bf16.msra.mxu0 0
      %888 = vmatprep.subr.bf16.mxu0 0
      %889 = vmatpush1.bf16.msra.mxu0 %v761
      %890 = vmatprep.subr.bf16.mxu0 0
      %891 = vmatpush1.bf16.msra.mxu0 %v760
      %892 = vmatprep.subr.bf16.mxu0 0
      %893 = vmatpush2.bf16.msra.mxu0 0
      %894 = vmatprep.subr.bf16.mxu0 0
      %895 = vmatpush2.bf16.msra.mxu0 0
      %896 = vmatprep.subr.bf16.mxu0 0
      %897 = vmatpush2.bf16.msra.mxu0 0
      %898 = vmatprep.subr.bf16.mxu0 0
      %899 = vmatpush2.bf16.msra.mxu0 0
      %900 = vmatprep.subr.bf16.mxu0 0
      %901 = vmatpush2.bf16.msra.mxu0 0
      %902 = vmatprep.subr.bf16.mxu0 0
      %903 = vmatpush2.bf16.msra.mxu0 0
      %904 = vmatprep.subr.bf16.mxu0 0
      %905 = vmatpush2.bf16.msra.mxu0 0
      %906 = vmatprep.subr.bf16.mxu0 0
      %907 = vmatpush2.bf16.msra.mxu0 0
      %908 = vmatprep.mubr.bf16.mxu0 0
      %909 = vmatmul.mubr.bf16.gmra.mxu0 %v874
      %v910 = vpop.f32.mrf.mxu0
      %v911 = vadd.f32 %v750, %v910
      %v912 = vpop.f32.mrf.mxu0
      %v913 = vpop.f32.mrf.mxu0
      %v914 = vpop.f32.mrf.mxu0
      %915 = vdwg.mxu0
      %v916 = vadd.f32 %v870, %v911
      %v917 = vmul.f32 %v916, 0.5
      %v918 = vtanh.pop %v917
      %v919 = vmul.f32 %v918, 0.5
      %v920 = vadd.f32 %v919, 0.5
      %922 = vrot.lane.b32.xlu0 %v911, 64
      %v923 = vpop.permute.xlu0 %922
      %v925 = vmul.f32 %v920, %v923
      %927 = vrot.lane.b32.xlu0 %v925, 64
      %v928 = vpop.permute.xlu0 %927
      %v930 = vadd.f32 %v870, %v928
      %v931 = vtanh.pop %v930
      %v932 = vsub.f32 1.0, %v920
      %934 = vrot.lane.b32.xlu0 %v931, 96
      %v935 = vpop.permute.xlu0 %934
      %v937 = vmul.f32 %v932, %v935
      %v938 = vmul.f32 %v920, %v852
      %v939 = vadd.f32 %v937, %v938
      %s940 = sadd.s32 %s740, 1
      %s941 = smul.u32 %s835, %s940
      %s942 = ssub.s32 3, %s740
      %s943 = smul.u32 %s22, %s942
      %s944 = sadd.s32 %s941, %s943
      %p945 = scmp.lt.s32.totalorder %s944, 5
      %s946 = scalar_select %p945, 1, 0
      %s947 = scvt.s32.f32 %s946
      %v948 = vstv %s947
      %v949 = vmul.f32 %v948, %v939
      %s950 = ssub.f32 1.0, %s947
      %v951 = vstv %s950
      %v952 = vmul.f32 %v951, %v852
      %v953 = vadd.f32 %v949, %v952
      %v954 = vpack.c.bf16 %v953, %v953
      %v956 = vunpack.c.l.b16 %v954
      %v957 = vpack.c.b16 %v956, %v956
      %958 = vrot.lane.b32.xlu0 %v957, 96
      %v959 = vpop.permute.xlu0 %958
      %s961 = sshra.s32 %s868, 3
      %s962 = sand.u32 %s868, 7
      %s963 = smul.addr %s961, 4
      %s964 = scalar_lea.vmem %s505, %s963
      %965 = vst.msk [vmem:[%s964] sm:$0xf] %vm864, %v959
      %s966 = smul.u32 %s835, 2
      %s967 = smul.u32 %s22, 2
      %s968 = sadd.s32 %s966, %s967
      %s969 = smul.u32 %s968, 8
      %s970 = scalar_lea.vmem [#allocation3], %s969
      %v971 = vld [vmem:[%s970] sm:$0xff]
      %972 = vrot.lane.b32.xlu0 %v954, 96
      %v973 = vpop.permute.xlu0 %972
      %v975 = vsel %vm563, %v973, 0
      %977 = vmatprep.subr.bf16.mxu0 0
      %978 = vmatpush1.bf16.msra.mxu0 0
      %979 = vmatprep.subr.bf16.mxu0 0
      %980 = vmatpush1.bf16.msra.mxu0 0
      %981 = vmatprep.subr.bf16.mxu0 0
      %982 = vmatpush1.bf16.msra.mxu0 0
      %983 = vmatprep.subr.bf16.mxu0 0
      %984 = vmatpush1.bf16.msra.mxu0 0
      %985 = vmatprep.subr.bf16.mxu0 0
      %986 = vmatpush1.bf16.msra.mxu0 0
      %987 = vmatprep.subr.bf16.mxu0 0
      %988 = vmatpush1.bf16.msra.mxu0 0
      %989 = vmatprep.subr.bf16.mxu0 0
      %990 = vmatpush1.bf16.msra.mxu0 %v761
      %991 = vmatprep.subr.bf16.mxu0 0
      %992 = vmatpush1.bf16.msra.mxu0 %v760
      %993 = vmatprep.subr.bf16.mxu0 0
      %994 = vmatpush2.bf16.msra.mxu0 0
      %995 = vmatprep.subr.bf16.mxu0 0
      %996 = vmatpush2.bf16.msra.mxu0 0
      %997 = vmatprep.subr.bf16.mxu0 0
      %998 = vmatpush2.bf16.msra.mxu0 0
      %999 = vmatprep.subr.bf16.mxu0 0
      %1000 = vmatpush2.bf16.msra.mxu0 0
      %1001 = vmatprep.subr.bf16.mxu0 0
      %1002 = vmatpush2.bf16.msra.mxu0 0
      %1003 = vmatprep.subr.bf16.mxu0 0
      %1004 = vmatpush2.bf16.msra.mxu0 0
      %1005 = vmatprep.subr.bf16.mxu0 0
      %1006 = vmatpush2.bf16.msra.mxu0 0
      %1007 = vmatprep.subr.bf16.mxu0 0
      %1008 = vmatpush2.bf16.msra.mxu0 0
      %1009 = vmatprep.mubr.bf16.mxu0 0
      %1010 = vmatmul.mubr.bf16.gmra.mxu0 %v975
      %v1011 = vpop.f32.mrf.mxu0
      %v1012 = vadd.f32 %v750, %v1011
      %v1013 = vpop.f32.mrf.mxu0
      %v1014 = vpop.f32.mrf.mxu0
      %v1015 = vpop.f32.mrf.mxu0
      %1016 = vdwg.mxu0
      %v1017 = vadd.f32 %v971, %v1012
      %v1018 = vmul.f32 %v1017, 0.5
      %v1019 = vtanh.pop %v1018
      %v1020 = vmul.f32 %v1019, 0.5
      %v1021 = vadd.f32 %v1020, 0.5
      %1023 = vrot.lane.b32.xlu0 %v1012, 64
      %v1024 = vpop.permute.xlu0 %1023
      %v1026 = vmul.f32 %v1021, %v1024
      %1028 = vrot.lane.b32.xlu0 %v1026, 64
      %v1029 = vpop.permute.xlu0 %1028
      %v1031 = vadd.f32 %v971, %v1029
      %v1032 = vtanh.pop %v1031
      %v1033 = vsub.f32 1.0, %v1021
      %1035 = vrot.lane.b32.xlu0 %v1032, 96
      %v1036 = vpop.permute.xlu0 %1035
      %v1038 = vmul.f32 %v1033, %v1036
      %v1039 = vmul.f32 %v1021, %v953
      %v1040 = vadd.f32 %v1038, %v1039
      %s1041 = sadd.s32 %s740, 2
      %s1042 = smul.u32 %s835, %s1041
      %s1043 = ssub.s32 2, %s740
      %s1044 = smul.u32 %s22, %s1043
      %s1045 = sadd.s32 %s1042, %s1044
      %p1046 = scmp.lt.s32.totalorder %s1045, 5
      %s1047 = scalar_select %p1046, 1, 0
      %s1048 = scvt.s32.f32 %s1047
      %v1049 = vstv %s1048
      %v1050 = vmul.f32 %v1049, %v1040
      %s1051 = ssub.f32 1.0, %s1048
      %v1052 = vstv %s1051
      %v1053 = vmul.f32 %v1052, %v953
      %v1054 = vadd.f32 %v1050, %v1053
      %v1055 = vpack.c.bf16 %v1054, %v1054
      %v1057 = vunpack.c.l.b16 %v1055
      %v1058 = vpack.c.b16 %v1057, %v1057
      %1059 = vrot.lane.b32.xlu0 %v1058, 96
      %v1060 = vpop.permute.xlu0 %1059
      %s1062 = sshra.s32 %s969, 3
      %s1063 = sand.u32 %s969, 7
      %s1064 = smul.addr %s1062, 4
      %s1065 = scalar_lea.vmem %s505, %s1064
      %1066 = vst.msk [vmem:[%s1065] sm:$0xf] %vm864, %v1060
      %s1067 = smul.u32 %s835, 3
      %s1068 = sadd.s32 %s1067, %s22
      %s1069 = smul.u32 %s1068, 8
      %s1070 = scalar_lea.vmem [#allocation3], %s1069
      %v1071 = vld [vmem:[%s1070] sm:$0xff]
      %1072 = vrot.lane.b32.xlu0 %v1055, 96
      %v1073 = vpop.permute.xlu0 %1072
      %v1075 = vsel %vm563, %v1073, 0
      %1077 = vmatprep.subr.bf16.mxu0 0
      %1078 = vmatpush1.bf16.msra.mxu0 0
      %1079 = vmatprep.subr.bf16.mxu0 0
      %1080 = vmatpush1.bf16.msra.mxu0 0
      %1081 = vmatprep.subr.bf16.mxu0 0
      %1082 = vmatpush1.bf16.msra.mxu0 0
      %1083 = vmatprep.subr.bf16.mxu0 0
      %1084 = vmatpush1.bf16.msra.mxu0 0
      %1085 = vmatprep.subr.bf16.mxu0 0
      %1086 = vmatpush1.bf16.msra.mxu0 0
      %1087 = vmatprep.subr.bf16.mxu0 0
      %1088 = vmatpush1.bf16.msra.mxu0 0
      %1089 = vmatprep.subr.bf16.mxu0 0
      %1090 = vmatpush1.bf16.msra.mxu0 %v761
      %1091 = vmatprep.subr.bf16.mxu0 0
      %1092 = vmatpush1.bf16.msra.mxu0 %v760
      %1093 = vmatprep.subr.bf16.mxu0 0
      %1094 = vmatpush2.bf16.msra.mxu0 0
      %1095 = vmatprep.subr.bf16.mxu0 0
      %1096 = vmatpush2.bf16.msra.mxu0 0
      %1097 = vmatprep.subr.bf16.mxu0 0
      %1098 = vmatpush2.bf16.msra.mxu0 0
      %1099 = vmatprep.subr.bf16.mxu0 0
      %1100 = vmatpush2.bf16.msra.mxu0 0
      %1101 = vmatprep.subr.bf16.mxu0 0
      %1102 = vmatpush2.bf16.msra.mxu0 0
      %1103 = vmatprep.subr.bf16.mxu0 0
      %1104 = vmatpush2.bf16.msra.mxu0 0
      %1105 = vmatprep.subr.bf16.mxu0 0
      %1106 = vmatpush2.bf16.msra.mxu0 0
      %1107 = vmatprep.subr.bf16.mxu0 0
      %1108 = vmatpush2.bf16.msra.mxu0 0
      %1109 = vmatprep.mubr.bf16.mxu0 0
      %1110 = vmatmul.mubr.bf16.gmra.mxu0 %v1075
      %v1111 = vpop.f32.mrf.mxu0
      %v1112 = vadd.f32 %v750, %v1111
      %v1113 = vpop.f32.mrf.mxu0
      %v1114 = vpop.f32.mrf.mxu0
      %v1115 = vpop.f32.mrf.mxu0
      %1116 = vdwg.mxu0
      %v1117 = vadd.f32 %v1071, %v1112
      %v1118 = vmul.f32 %v1117, 0.5
      %v1119 = vtanh.pop %v1118
      %v1120 = vmul.f32 %v1119, 0.5
      %v1121 = vadd.f32 %v1120, 0.5
      %1123 = vrot.lane.b32.xlu0 %v1112, 64
      %v1124 = vpop.permute.xlu0 %1123
      %v1126 = vmul.f32 %v1121, %v1124
      %1128 = vrot.lane.b32.xlu0 %v1126, 64
      %v1129 = vpop.permute.xlu0 %1128
      %v1131 = vadd.f32 %v1071, %v1129
      %v1132 = vtanh.pop %v1131
      %v1133 = vsub.f32 1.0, %v1121
      %1135 = vrot.lane.b32.xlu0 %v1132, 96
      %v1136 = vpop.permute.xlu0 %1135
      %v1138 = vmul.f32 %v1133, %v1136
      %v1139 = vmul.f32 %v1121, %v1054
      %v1140 = vadd.f32 %v1138, %v1139
      %s1141 = sadd.s32 %s740, 3
      %s1142 = smul.u32 %s835, %s1141
      %s1143 = ssub.s32 1, %s740
      %s1144 = smul.u32 %s22, %s1143
      %s1145 = sadd.s32 %s1142, %s1144
      %p1146 = scmp.lt.s32.totalorder %s1145, 5
      %s1147 = scalar_select %p1146, 1, 0
      %s1148 = scvt.s32.f32 %s1147
      %v1149 = vstv %s1148
      %v1150 = vmul.f32 %v1149, %v1140
      %s1151 = ssub.f32 1.0, %s1148
      %v1152 = vstv %s1151
      %v1153 = vmul.f32 %v1152, %v1054
      %v1154 = vadd.f32 %v1150, %v1153
      %v1155 = vpack.c.bf16 %v1154, %v1154
      %v1157 = vunpack.c.l.b16 %v1155
      %v1158 = vpack.c.b16 %v1157, %v1157
      %1159 = vrot.lane.b32.xlu0 %v1158, 96
      %v1160 = vpop.permute.xlu0 %1159
      %s1162 = sshra.s32 %s1069, 3
      %s1163 = sand.u32 %s1069, 7
      %s1164 = smul.addr %s1162, 4
      %s1165 = scalar_lea.vmem %s505, %s1164
      %1166 = vst.msk [vmem:[%s1165] sm:$0xf] %vm864, %v1160
      %s1167 = smul.u32 %s835, 32
      %s1168 = scalar_lea.vmem [#allocation3], %s1167
      %v1169 = vld [vmem:[%s1168] sm:$0xff]
      %1170 = vrot.lane.b32.xlu0 %v1155, 96
      %v1171 = vpop.permute.xlu0 %1170
      %v1173 = vsel %vm563, %v1171, 0
      %1175 = vmatprep.subr.bf16.mxu0 0
      %1176 = vmatpush1.bf16.msra.mxu0 0
      %1177 = vmatprep.subr.bf16.mxu0 0
      %1178 = vmatpush1.bf16.msra.mxu0 0
      %1179 = vmatprep.subr.bf16.mxu0 0
      %1180 = vmatpush1.bf16.msra.mxu0 0
      %1181 = vmatprep.subr.bf16.mxu0 0
      %1182 = vmatpush1.bf16.msra.mxu0 0
      %1183 = vmatprep.subr.bf16.mxu0 0
      %1184 = vmatpush1.bf16.msra.mxu0 0
      %1185 = vmatprep.subr.bf16.mxu0 0
      %1186 = vmatpush1.bf16.msra.mxu0 0
      %1187 = vmatprep.subr.bf16.mxu0 0
      %1188 = vmatpush1.bf16.msra.mxu0 %v761
      %1189 = vmatprep.subr.bf16.mxu0 0
      %1190 = vmatpush1.bf16.msra.mxu0 %v760
      %1191 = vmatprep.subr.bf16.mxu0 0
      %1192 = vmatpush2.bf16.msra.mxu0 0
      %1193 = vmatprep.subr.bf16.mxu0 0
      %1194 = vmatpush2.bf16.msra.mxu0 0
      %1195 = vmatprep.subr.bf16.mxu0 0
      %1196 = vmatpush2.bf16.msra.mxu0 0
      %1197 = vmatprep.subr.bf16.mxu0 0
      %1198 = vmatpush2.bf16.msra.mxu0 0
      %1199 = vmatprep.subr.bf16.mxu0 0
      %1200 = vmatpush2.bf16.msra.mxu0 0
      %1201 = vmatprep.subr.bf16.mxu0 0
      %1202 = vmatpush2.bf16.msra.mxu0 0
      %1203 = vmatprep.subr.bf16.mxu0 0
      %1204 = vmatpush2.bf16.msra.mxu0 0
      %1205 = vmatprep.subr.bf16.mxu0 0
      %1206 = vmatpush2.bf16.msra.mxu0 0
      %1207 = vmatprep.mubr.bf16.mxu0 0
      %1208 = vmatmul.mubr.bf16.gmra.mxu0 %v1173
      %v1209 = vpop.f32.mrf.mxu0
      %v1210 = vadd.f32 %v750, %v1209
      %v1211 = vpop.f32.mrf.mxu0
      %v1212 = vpop.f32.mrf.mxu0
      %v1213 = vpop.f32.mrf.mxu0
      %1214 = vdwg.mxu0
      %v1215 = vadd.f32 %v1169, %v1210
      %v1216 = vmul.f32 %v1215, 0.5
      %v1217 = vtanh.pop %v1216
      %v1218 = vmul.f32 %v1217, 0.5
      %v1219 = vadd.f32 %v1218, 0.5
      %1221 = vrot.lane.b32.xlu0 %v1210, 64
      %v1222 = vpop.permute.xlu0 %1221
      %v1224 = vmul.f32 %v1219, %v1222
      %1226 = vrot.lane.b32.xlu0 %v1224, 64
      %v1227 = vpop.permute.xlu0 %1226
      %v1229 = vadd.f32 %v1169, %v1227
      %v1230 = vtanh.pop %v1229
      %v1231 = vsub.f32 1.0, %v1219
      %1233 = vrot.lane.b32.xlu0 %v1230, 96
      %v1234 = vpop.permute.xlu0 %1233
      %v1236 = vmul.f32 %v1231, %v1234
      %v1237 = vmul.f32 %v1219, %v1154
      %v1238 = vadd.f32 %v1236, %v1237
      %s1239 = sadd.s32 %s740, 4
      %s1240 = smul.u32 %s835, %s1239
      %s1241 = ssub.s32 0, %s740
      %s1242 = smul.u32 %s22, %s1241
      %s1243 = sadd.s32 %s1240, %s1242
      %p1244 = scmp.lt.s32.totalorder %s1243, 5
      %s1245 = scalar_select %p1244, 1, 0
      %s1246 = scvt.s32.f32 %s1245
      %v1247 = vstv %s1246
      %v1248 = vmul.f32 %v1247, %v1238
      %s1249 = ssub.f32 1.0, %s1246
      %v1250 = vstv %s1249
      %v1251 = vmul.f32 %v1250, %v1154
      %v1252 = vadd.f32 %v1248, %v1251
      %v1253 = vpack.c.bf16 %v1252, %v1252
      %v1255 = vunpack.c.l.b16 %v1253
      %v1256 = vpack.c.b16 %v1255, %v1255
      %1257 = vrot.lane.b32.xlu0 %v1256, 96
      %v1258 = vpop.permute.xlu0 %1257
      %s1260 = sshra.s32 %s1167, 3
      %s1261 = sand.u32 %s1167, 7
      %s1262 = smul.addr %s1260, 4
      %s1263 = scalar_lea.vmem %s505, %s1262
      %1264 = vst.msk [vmem:[%s1263] sm:$0xf] %vm864, %v1258
      %1266 = vrot.lane.b32.xlu0 %v1252, 96
      %v1267 = vpop.permute.xlu0 %1266
      %1269 = vst.msk [vmem:[#allocation2] sm:$0xff] %vm563, %v1267
      %s1270 = ssub.s32 1, %s22
      %s1271 = smul.u32 %s1270, %s23
      %s1272 = ssub.s32 0, %s23
      %s1273 = smul.u32 %s22, %s1272
      %s1274 = sadd.s32 %s1271, %s1273
      %s1275 = smul.u32 5, %s1274
      %p1276 = scmp.lt.s32.totalorder %s22, 1
      %s1277 = scalar_select %p1276, %s22, 1
      %p1278 = scmp.lt.s32.totalorder %s1275, 4
      %s1279 = scalar_select %p1278, %s1275, 4
      %s1280 = smul.addr %s1277, 5
      %s1281 = sadd.s32 %s1279, %s1280
      %s1282 = smul.addr %s1281, 4
      %s1283 = scalar_lea.vmem %s7, %s1282
      // Predicated region
      $region53: #{deep_speech_forward.4} parent=47 // pred_check
        %p1284 = pneg %p262
      $region54: #{deep_speech_forward.4} parent=47 // pred_check_branch
        %1286 = sbr.rel (%p1284) target = $region56
      $region55: #{deep_speech_forward.4} parent=47 // pred_region
        %s1287 = ssub.s32 1, %s22
        %s1288 = smul.u32 %s1287, %s23
        %s1289 = ssub.s32 0, %s23
        %s1290 = smul.u32 %s22, %s1289
        %s1291 = sadd.s32 %s1288, %s1290
        %s1292 = smul.u32 5, %s1291
      $region56: #{deep_speech_forward.4} parent=47 // pred_fallthru
        _
    $region48: #{deep_speech_forward.4} parent=5 // pred_fallthru
      _
    %p1293 = scmp.le.s32.totalorder 2, %s13
    // Predicated region
    $region57: #{deep_speech_forward.4} parent=5 // pred_check
      %p1294 = pneg %p1293
    $region58: #{deep_speech_forward.4} parent=5 // pred_check_branch
      %1296 = sbr.rel (%p1294) target = $region60
    $region59: #{deep_speech_forward.4} parent=5 // pred_region
      %s1297 = ssub.s32 %s13, 2
      // Predicated region
      $region61: #{deep_speech_forward.4} parent=59 // pred_check
        %p1298 = pneg %p268
      $region62: #{deep_speech_forward.4} parent=59 // pred_check_branch
        %1300 = sbr.rel (%p1298) target = $region64
      $region63: #{deep_speech_forward.4} parent=59 // pred_region
        %s1301 = ssub.s32 1, %s24
        %s1302 = smul.u32 %s1301, %s25
        %s1303 = ssub.s32 0, %s25
        %s1304 = smul.u32 %s24, %s1303
        %s1305 = sadd.s32 %s1302, %s1304
        %s1306 = smul.u32 5, %s1305
        %p1307 = scmp.lt.s32.totalorder %s24, 1
        %s1308 = scalar_select %p1307, %s24, 1
        %p1309 = scmp.lt.s32.totalorder %s1306, 4
        %s1310 = scalar_select %p1309, %s1306, 4
        %s1311 = smul.addr %s1308, 5
        %s1312 = sadd.s32 %s1310, %s1311
        %s1313 = smul.addr %s1312, 4
        %s1314 = scalar_lea.vmem %s7, %s1313
      $region64: #{deep_speech_forward.4} parent=59 // pred_fallthru
        _
    $region60: #{deep_speech_forward.4} parent=5 // pred_fallthru
      _
  $region6: #{deep_speech_forward.4} parent=0 // loop_footer
    %s17 = sadd.s32 1, %s13
  $region7: #{deep_speech_forward.4} parent=0 // loop_footer_branch
    %12 = sbr.rel target = $region3
  $region8: #{deep_speech_forward.4} parent=0 // loop_exit
    _

// kernel: deep_speech_forward.3
$region0: #{deep_speech_forward.3}
  #allocation0 [shape = 'u32[]', space=smem, size = 0x4, offset = 0x4, fixed_abs, tag = 'smem constant byte address 0x4 - core index']
  #allocation1 [shape = 'u32[144,128]{1,0:T(1,128)}', space=vmem, size = 0x12000, scoped, tag = 'internal scratch']
  #allocation2 [shape = 'f32[8,32]{1,0:T(8,128)}', space=vmem, size = 0x1000, scoped, tag = 'scratch operand']
  #allocation3 [shape = 'f32[40,128]{1,0:T(8,128)}', space=vmem, size = 0x5000, scoped, tag = 'scratch operand']
  %s0 = inlined_call_operand.vmem [shape: bf16[40,384], index: 0, kind: input, shape index: {}]
  %s1 = inlined_call_operand.vmem [shape: bf16[2,384,128], index: 1, kind: input, shape index: {}]
  %s2 = inlined_call_operand.vmem [shape: f32[2,1,128], index: 2, kind: input, shape index: {}]
  %s3 = inlined_call_operand.vmem [shape: bf16[2,32,128], index: 3, kind: input, shape index: {}]
  %s4 = inlined_call_operand.vmem [shape: f32[2,1,128], index: 4, kind: input, shape index: {}]
  %s5 = inlined_call_operand.vmem [shape: bf16[2,40,32], index: 5, kind: output, shape index: {}]
  %s6 = sld [smem:[#allocation0]]
  $region57: #{deep_speech_forward.3} parent=0
    _
  %s8 = ssub.s32 1, %s6
  %s9 = scalar_select 0, %s8, %s6
  loop: start=0, step=1, limit=4
  $region2: #{deep_speech_forward.3} parent=0 // loop_pre_header
    _
  $region3: #{deep_speech_forward.3} parent=0 // loop_header
    %s11 = sphi 0, %s15
    %p12 = scmp.ge.s32.totalorder %s11, 4
    %s18 = sphi 0, %s30
    %s19 = sphi 0, %s26
    %s20 = sphi 0, %s18
    %s21 = sphi 0, %s19
    %s22 = sphi 0, %s20
    %s23 = sphi 0, %s21
    %s43 = sphi 0, %s45
    %s46 = sphi 0, %s43
    %s47 = sphi 0, %s46
    %s63 = sphi 0, %s47
    %s69 = sphi 0, %s71
    %s72 = sphi 0, %s69
    %s73 = sphi 0, %s72
    %s89 = sphi 0, %s73
    %s95 = sphi 0, %s97
    %s98 = sphi 0, %s95
    %s99 = sphi 0, %s98
    %s115 = sphi 0, %s99
    %s121 = sphi 0, %s123
    %s124 = sphi 0, %s121
    %s125 = sphi 0, %s124
    %s141 = sphi 0, %s125
    %s147 = sphi 0, %s149
    %s150 = sphi 0, %s147
    %s151 = sphi 0, %s150
    %s167 = sphi 0, %s151
    %s185 = sphi 0, %s187
    %s188 = sphi 0, %s185
    %s189 = sphi 0, %s188
    %s205 = sphi 0, %s189
  $region4: #{deep_speech_forward.3} parent=0 // loop_header_branch
    %14 = sbr.rel (%p12) target = $region8
  $region5: #{deep_speech_forward.3} parent=0 // loop_body
    %s16 = ssub.s32 %s11, 1
    %s17 = ssub.s32 %s11, 2
    %s24 = sadd.s32 1, %s19
    %p25 = scmp.ge.s32.totalorder %s24, 1
    %s26 = scalar_select %p25, 0, %s24
    %s27 = sadd.s32 1, %s18
    %s28 = scalar_select %p25, %s27, %s18
    %p29 = scmp.ge.s32.totalorder %s28, 2
    %s30 = scalar_select %p29, 0, %s28
    %s31 = ssub.s32 1, %s18
    %s32 = smul.u32 %s31, %s19
    %s33 = ssub.s32 0, %s19
    %s34 = smul.u32 %s18, %s33
    %s35 = sadd.s32 %s32, %s34
    %s36 = ssub.s32 1, %s30
    %s37 = smul.u32 %s36, %s26
    %s38 = ssub.s32 0, %s26
    %s39 = smul.u32 %s30, %s38
    %s40 = sadd.s32 %s37, %s39
    %s41 = ssub.s32 %s35, %s40
    %p42 = scmp.eq.s32.totalorder %s41, 0
    %s44 = sadd.s32 %s43, 1
    %s45 = scalar_select %p42, %s43, %s44
    %p48 = pneg %p42
    %p49 = scmp.eq.s32.totalorder %s11, 1
    %p50 = por %p48, %p49
    %p51 = scmp.ne.s32.totalorder %s43, %s46
    %p52 = scmp.eq.s32.totalorder %s11, 0
    %p53 = por %p51, %p52
    %p54 = scmp.ne.s32.totalorder %s43, %s46
    %p55 = scmp.eq.s32.totalorder %s16, 1
    %p56 = por %p54, %p55
    %p57 = scmp.ne.s32.totalorder %s46, %s47
    %p58 = scmp.eq.s32.totalorder %s16, 0
    %p59 = por %p57, %p58
    %p60 = scmp.ne.s32.totalorder %s46, %s47
    %p61 = scmp.eq.s32.totalorder %s17, 1
    %p62 = por %p60, %p61
    %p64 = scmp.ne.s32.totalorder %s47, %s63
    %p65 = scmp.eq.s32.totalorder %s17, 0
    %p66 = por %p64, %p65
    %s67 = ssub.s32 %s18, %s30
    %p68 = scmp.eq.s32.totalorder %s67, 0
    %s70 = sadd.s32 %s69, 1
    %s71 = scalar_select %p68, %s69, %s70
    %p74 = pneg %p68
    %p75 = scmp.eq.s32.totalorder %s11, 1
    %p76 = por %p74, %p75
    %p77 = scmp.ne.s32.totalorder %s69, %s72
    %p78 = scmp.eq.s32.totalorder %s11, 0
    %p79 = por %p77, %p78
    %p80 = scmp.ne.s32.totalorder %s69, %s72
    %p81 = scmp.eq.s32.totalorder %s16, 1
    %p82 = por %p80, %p81
    %p83 = scmp.ne.s32.totalorder %s72, %s73
    %p84 = scmp.eq.s32.totalorder %s16, 0
    %p85 = por %p83, %p84
    %p86 = scmp.ne.s32.totalorder %s72, %s73
    %p87 = scmp.eq.s32.totalorder %s17, 1
    %p88 = por %p86, %p87
    %p90 = scmp.ne.s32.totalorder %s73, %s89
    %p91 = scmp.eq.s32.totalorder %s17, 0
    %p92 = por %p90, %p91
    %s93 = ssub.s32 %s18, %s30
    %p94 = scmp.eq.s32.totalorder %s93, 0
    %s96 = sadd.s32 %s95, 1
    %s97 = scalar_select %p94, %s95, %s96
    %p100 = pneg %p94
    %p101 = scmp.eq.s32.totalorder %s11, 1
    %p102 = por %p100, %p101
    %p103 = scmp.ne.s32.totalorder %s95, %s98
    %p104 = scmp.eq.s32.totalorder %s11, 0
    %p105 = por %p103, %p104
    %p106 = scmp.ne.s32.totalorder %s95, %s98
    %p107 = scmp.eq.s32.totalorder %s16, 1
    %p108 = por %p106, %p107
    %p109 = scmp.ne.s32.totalorder %s98, %s99
    %p110 = scmp.eq.s32.totalorder %s16, 0
    %p111 = por %p109, %p110
    %p112 = scmp.ne.s32.totalorder %s98, %s99
    %p113 = scmp.eq.s32.totalorder %s17, 1
    %p114 = por %p112, %p113
    %p116 = scmp.ne.s32.totalorder %s99, %s115
    %p117 = scmp.eq.s32.totalorder %s17, 0
    %p118 = por %p116, %p117
    %s119 = ssub.s32 %s18, %s30
    %p120 = scmp.eq.s32.totalorder %s119, 0
    %s122 = sadd.s32 %s121, 1
    %s123 = scalar_select %p120, %s121, %s122
    %p126 = pneg %p120
    %p127 = scmp.eq.s32.totalorder %s11, 1
    %p128 = por %p126, %p127
    %p129 = scmp.ne.s32.totalorder %s121, %s124
    %p130 = scmp.eq.s32.totalorder %s11, 0
    %p131 = por %p129, %p130
    %p132 = scmp.ne.s32.totalorder %s121, %s124
    %p133 = scmp.eq.s32.totalorder %s16, 1
    %p134 = por %p132, %p133
    %p135 = scmp.ne.s32.totalorder %s124, %s125
    %p136 = scmp.eq.s32.totalorder %s16, 0
    %p137 = por %p135, %p136
    %p138 = scmp.ne.s32.totalorder %s124, %s125
    %p139 = scmp.eq.s32.totalorder %s17, 1
    %p140 = por %p138, %p139
    %p142 = scmp.ne.s32.totalorder %s125, %s141
    %p143 = scmp.eq.s32.totalorder %s17, 0
    %p144 = por %p142, %p143
    %s145 = ssub.s32 %s18, %s30
    %p146 = scmp.eq.s32.totalorder %s145, 0
    %s148 = sadd.s32 %s147, 1
    %s149 = scalar_select %p146, %s147, %s148
    %p152 = pneg %p146
    %p153 = scmp.eq.s32.totalorder %s11, 1
    %p154 = por %p152, %p153
    %p155 = scmp.ne.s32.totalorder %s147, %s150
    %p156 = scmp.eq.s32.totalorder %s11, 0
    %p157 = por %p155, %p156
    %p158 = scmp.ne.s32.totalorder %s147, %s150
    %p159 = scmp.eq.s32.totalorder %s16, 1
    %p160 = por %p158, %p159
    %p161 = scmp.ne.s32.totalorder %s150, %s151
    %p162 = scmp.eq.s32.totalorder %s16, 0
    %p163 = por %p161, %p162
    %p164 = scmp.ne.s32.totalorder %s150, %s151
    %p165 = scmp.eq.s32.totalorder %s17, 1
    %p166 = por %p164, %p165
    %p168 = scmp.ne.s32.totalorder %s151, %s167
    %p169 = scmp.eq.s32.totalorder %s17, 0
    %p170 = por %p168, %p169
    %s171 = ssub.s32 1, %s18
    %s172 = smul.u32 %s171, %s19
    %s173 = ssub.s32 0, %s19
    %s174 = smul.u32 %s18, %s173
    %s175 = sadd.s32 %s172, %s174
    %s176 = ssub.s32 1, %s30
    %s177 = smul.u32 %s176, %s26
    %s178 = ssub.s32 0, %s26
    %s179 = smul.u32 %s30, %s178
    %s180 = sadd.s32 %s177, %s179
    %s181 = ssub.s32 %s18, %s30
    %s182 = ssub.s32 %s175, %s180
    %s183 = sor.u32 %s181, %s182
    %p184 = scmp.eq.s32.totalorder %s183, 0
    %s186 = sadd.s32 %s185, 1
    %s187 = scalar_select %p184, %s185, %s186
    %p190 = pneg %p184
    %p191 = scmp.eq.s32.totalorder %s11, 1
    %p192 = por %p190, %p191
    %p193 = scmp.ne.s32.totalorder %s185, %s188
    %p194 = scmp.eq.s32.totalorder %s11, 0
    %p195 = por %p193, %p194
    %p196 = scmp.ne.s32.totalorder %s185, %s188
    %p197 = scmp.eq.s32.totalorder %s16, 1
    %p198 = por %p196, %p197
    %p199 = scmp.ne.s32.totalorder %s188, %s189
    %p200 = scmp.eq.s32.totalorder %s16, 0
    %p201 = por %p199, %p200
    %p202 = scmp.ne.s32.totalorder %s188, %s189
    %p203 = scmp.eq.s32.totalorder %s17, 1
    %p204 = por %p202, %p203
    %p206 = scmp.ne.s32.totalorder %s189, %s205
    %p207 = scmp.eq.s32.totalorder %s17, 0
    %p208 = por %p206, %p207
    %p209 = scmp.le.s32.totalorder 1, %s11
    %p210 = scmp.lt.s32.totalorder %s11, 3
    %p211 = pnand %p209, %p210
    %p212 = pneg %p211
    // Predicated region
    $region9: #{deep_speech_forward.3} parent=5 // pred_check
      _
    $region10: #{deep_speech_forward.3} parent=5 // pred_check_branch
      %214 = sbr.rel (%p211) target = $region12
    $region11: #{deep_speech_forward.3} parent=5 // pred_region
      %s215 = ssub.s32 %s11, 1
    $region12: #{deep_speech_forward.3} parent=5 // pred_fallthru
      _
    %p216 = scmp.lt.s32.totalorder %s11, 2
    // Predicated region
    $region13: #{deep_speech_forward.3} parent=5 // pred_check
      %p217 = pneg %p216
    $region14: #{deep_speech_forward.3} parent=5 // pred_check_branch
      %219 = sbr.rel (%p217) target = $region16
    $region15: #{deep_speech_forward.3} parent=5 // pred_region
      // Predicated region
      $region17: #{deep_speech_forward.3} parent=15 // pred_check
        %p220 = pneg %p53
      $region18: #{deep_speech_forward.3} parent=15 // pred_check_branch
        %222 = sbr.rel (%p220) target = $region20
      $region19: #{deep_speech_forward.3} parent=15 // pred_region
        %s223 = ssub.s32 1, %s18
        %s224 = smul.u32 %s223, %s19
        %s225 = ssub.s32 0, %s19
        %s226 = smul.u32 %s18, %s225
        %s227 = sadd.s32 %s224, %s226
        %s228 = smul.u32 5, %s227
        %p229 = scmp.lt.s32.totalorder %s228, 4
        %s230 = scalar_select %p229, %s228, 4
        %s231 = smul.addr %s230, 3
        %s232 = smul.addr %s231, 4
        %s233 = scalar_lea.vmem %s0, %s232
        %s234 = ssub.s32 1, %s18
        %s235 = smul.u32 %s234, %s19
        %s236 = ssub.s32 0, %s19
        %s237 = smul.u32 %s18, %s236
        %s238 = sadd.s32 %s235, %s237
        %s239 = smul.u32 5, %s238
      $region20: #{deep_speech_forward.3} parent=15 // pred_fallthru
        _
      // Predicated region
      $region21: #{deep_speech_forward.3} parent=15 // pred_check
        %p240 = pneg %p79
      $region22: #{deep_speech_forward.3} parent=15 // pred_check_branch
        %242 = sbr.rel (%p240) target = $region24
      $region23: #{deep_speech_forward.3} parent=15 // pred_region
        %p243 = scmp.lt.s32.totalorder %s18, 1
        %s244 = scalar_select %p243, %s18, 1
        %s245 = smul.addr %s244, 48
        %s246 = smul.addr %s245, 4
        %s247 = scalar_lea.vmem %s1, %s246
      $region24: #{deep_speech_forward.3} parent=15 // pred_fallthru
        _
      // Predicated region
      $region25: #{deep_speech_forward.3} parent=15 // pred_check
        %p248 = pneg %p105
      $region26: #{deep_speech_forward.3} parent=15 // pred_check_branch
        %250 = sbr.rel (%p248) target = $region28
      $region27: #{deep_speech_forward.3} parent=15 // pred_region
        %p251 = scmp.lt.s32.totalorder %s18, 1
        %s252 = scalar_select %p251, %s18, 1
        %s253 = scalar_lea.vmem %s2, %s252
      $region28: #{deep_speech_forward.3} parent=15 // pred_fallthru
        _
      // Predicated region
      $region29: #{deep_speech_forward.3} parent=15 // pred_check
        %p254 = pneg %p131
      $region30: #{deep_speech_forward.3} parent=15 // pred_check_branch
        %256 = sbr.rel (%p254) target = $region32
      $region31: #{deep_speech_forward.3} parent=15 // pred_region
        %p257 = scmp.lt.s32.totalorder %s18, 1
        %s258 = scalar_select %p257, %s18, 1
        %s259 = smul.addr %s258, 4
        %s260 = smul.addr %s259, 4
        %s261 = scalar_lea.vmem %s3, %s260
      $region32: #{deep_speech_forward.3} parent=15 // pred_fallthru
        _
      // Predicated region
      $region33: #{deep_speech_forward.3} parent=15 // pred_check
        %p262 = pneg %p157
      $region34: #{deep_speech_forward.3} parent=15 // pred_check_branch
        %264 = sbr.rel (%p262) target = $region36
      $region35: #{deep_speech_forward.3} parent=15 // pred_region
        %p265 = scmp.lt.s32.totalorder %s18, 1
        %s266 = scalar_select %p265, %s18, 1
        %s267 = scalar_lea.vmem %s4, %s266
      $region36: #{deep_speech_forward.3} parent=15 // pred_fallthru
        _
    $region16: #{deep_speech_forward.3} parent=5 // pred_fallthru
      _
    %p268 = scmp.le.s32.totalorder 1, %s11
    %p269 = scmp.lt.s32.totalorder %s11, 3
    %p270 = pnand %p268, %p269
    %p271 = pneg %p270
    // Predicated region
    $region37: #{deep_speech_forward.3} parent=5 // pred_check
      _
    $region38: #{deep_speech_forward.3} parent=5 // pred_check_branch
      %273 = sbr.rel (%p270) target = $region40
    $region39: #{deep_speech_forward.3} parent=5 // pred_region
      %s274 = ssub.s32 %s11, 1
      %s275 = ssub.s32 1, %s20
      %s276 = smul.u32 %s275, %s21
      %s277 = ssub.s32 0, %s21
      %s278 = smul.u32 %s20, %s277
      %s279 = sadd.s32 %s276, %s278
      %s280 = smul.u32 5, %s279
      %p281 = scmp.lt.s32.totalorder %s280, 4
      %s282 = scalar_select %p281, %s280, 4
      %s283 = smul.addr %s282, 3
      %s284 = smul.addr %s283, 4
      %s285 = scalar_lea.vmem %s0, %s284
      %p286 = pneg %p59
      %p287 = pneg %p56
      %p288 = scmp.lt.s32.totalorder %s20, 1
      %s289 = scalar_select %p288, %s20, 1
      %s290 = smul.addr %s289, 48
      %s291 = smul.addr %s290, 4
      %s292 = scalar_lea.vmem %s1, %s291
      %p293 = pneg %p85
      %p294 = pneg %p82
      %p295 = scmp.lt.s32.totalorder %s20, 1
      %s296 = scalar_select %p295, %s20, 1
      %s297 = scalar_lea.vmem %s2, %s296
      %p298 = pneg %p111
      %p299 = pneg %p108
      %p300 = scmp.lt.s32.totalorder %s20, 1
      %s301 = scalar_select %p300, %s20, 1
      %s302 = smul.addr %s301, 4
      %s303 = smul.addr %s302, 4
      %s304 = scalar_lea.vmem %s3, %s303
      %p305 = pneg %p137
      %p306 = pneg %p134
      %p307 = scmp.lt.s32.totalorder %s20, 1
      %s308 = scalar_select %p307, %s20, 1
      %s309 = scalar_lea.vmem %s4, %s308
      %p310 = pneg %p163
      %p311 = pneg %p160
      %p312 = pneg %p201
      %p313 = pneg %p198
      %s314 = ssub.s32 1, %s20
      %s315 = smul.u32 %s314, %s21
      %s316 = ssub.s32 0, %s21
      %s317 = smul.u32 %s20, %s316
      %s318 = sadd.s32 %s315, %s317
      %s319 = smul.u32 5, %s318
      %p320 = scmp.lt.s32.totalorder %s20, 1
      %s321 = scalar_select %p320, %s20, 1
      %p322 = scmp.lt.s32.totalorder %s319, 4
      %s323 = scalar_select %p322, %s319, 4
      %s324 = smul.addr %s321, 5
      %s325 = sadd.s32 %s323, %s324
      %s326 = smul.addr %s325, 4
      %s327 = scalar_lea.vmem %s5, %s326
      %s328 = ssub.s32 1, %s20
      %s329 = smul.u32 %s328, %s21
      %s330 = ssub.s32 0, %s21
      %s331 = smul.u32 %s20, %s330
      %s332 = sadd.s32 %s329, %s331
      %s333 = smul.u32 5, %s332
      %p334 = scmp.lt.s32.totalorder %s333, 4
      %s335 = scalar_select %p334, %s333, 4
      %s336 = smul.addr %s335, 3
      %s337 = smul.addr %s336, 4
      %s338 = scalar_lea.vmem %s0, %s337
      %s339 = ssub.s32 1, %s20
      %s340 = smul.u32 %s339, %s21
      %s341 = ssub.s32 0, %s21
      %s342 = smul.u32 %s20, %s341
      %s343 = sadd.s32 %s340, %s342
      %s344 = smul.u32 5, %s343
      %p345 = scmp.lt.s32.totalorder %s20, 1
      %s346 = scalar_select %p345, %s20, 1
      %s347 = smul.addr %s346, 48
      %s348 = smul.addr %s347, 4
      %s349 = scalar_lea.vmem %s1, %s348
      %p350 = scmp.lt.s32.totalorder %s20, 1
      %s351 = scalar_select %p350, %s20, 1
      %s352 = scalar_lea.vmem %s2, %s351
      %p353 = scmp.lt.s32.totalorder %s20, 1
      %s354 = scalar_select %p353, %s20, 1
      %s355 = smul.addr %s354, 4
      %s356 = smul.addr %s355, 4
      %s357 = scalar_lea.vmem %s3, %s356
      %p358 = scmp.lt.s32.totalorder %s20, 1
      %s359 = scalar_select %p358, %s20, 1
      %s360 = scalar_lea.vmem %s4, %s359
      %s361 = ssub.s32 1, %s20
      %s362 = smul.u32 %s361, %s21
      %s363 = ssub.s32 0, %s21
      %s364 = smul.u32 %s20, %s363
      %s365 = sadd.s32 %s362, %s364
      %s366 = smul.u32 5, %s365
      %p367 = scmp.lt.s32.totalorder %s20, 1
      %s368 = scalar_select %p367, %s20, 1
      %p369 = scmp.lt.s32.totalorder %s366, 4
      %s370 = scalar_select %p369, %s366, 4
      %s371 = smul.addr %s368, 5
      %s372 = sadd.s32 %s370, %s371
      %s373 = smul.addr %s372, 4
      %s374 = scalar_lea.vmem %s5, %s373
      %s375 = ssub.s32 1, %s20
      %s376 = smul.u32 %s375, %s21
      %s377 = ssub.s32 0, %s21
      %s378 = smul.u32 %s20, %s377
      %s379 = sadd.s32 %s376, %s378
      %s380 = smul.u32 5, %s379
      %p382 = scmp.eq.s32.totalorder %s21, 0
      // Predicated region
      $region41: #{deep_speech_forward.3} parent=39 // pred_check
        %p383 = pneg %p382
      $region42: #{deep_speech_forward.3} parent=39 // pred_check_branch
        %385 = sbr.rel (%p383) target = $region44
      $region43: #{deep_speech_forward.3} parent=39 // pred_region
        %vm386 = vcmask 261120
        %387 = vst.msk [vmem:[#allocation2] sm:$0xff] %vm386, 0.0
      $region44: #{deep_speech_forward.3} parent=39 // pred_fallthru
        _
      %v388 = vld [vmem:[%s349] sm:$0xf]
      %v389 = vld [vmem:[%s349 + $0x4] sm:$0xf]
      %v390 = vld [vmem:[%s349 + $0x8] sm:$0xf]
      %v391 = vld [vmem:[%s349 + $0xc] sm:$0xf]
      %v392 = vld [vmem:[%s349 + $0x10] sm:$0xf]
      %v393 = vld [vmem:[%s349 + $0x14] sm:$0xf]
      %v394 = vld [vmem:[%s349 + $0x18] sm:$0xf]
      %v395 = vld [vmem:[%s349 + $0x1c] sm:$0xf]
      %v396 = vld [vmem:[%s349 + $0x20] sm:$0xf]
      %v397 = vld [vmem:[%s349 + $0x24] sm:$0xf]
      %v398 = vld [vmem:[%s349 + $0x28] sm:$0xf]
      %v399 = vld [vmem:[%s349 + $0x2c] sm:$0xf]
      %v400 = vld [vmem:[%s349 + $0x30] sm:$0xf]
      %v401 = vld [vmem:[%s349 + $0x34] sm:$0xf]
      %v402 = vld [vmem:[%s349 + $0x38] sm:$0xf]
      %v403 = vld [vmem:[%s349 + $0x3c] sm:$0xf]
      %v404 = vld [vmem:[%s349 + $0x40] sm:$0xf]
      %v405 = vld [vmem:[%s349 + $0x44] sm:$0xf]
      %v406 = vld [vmem:[%s349 + $0x48] sm:$0xf]
      %v407 = vld [vmem:[%s349 + $0x4c] sm:$0xf]
      %v408 = vld [vmem:[%s349 + $0x50] sm:$0xf]
      %v409 = vld [vmem:[%s349 + $0x54] sm:$0xf]
      %v410 = vld [vmem:[%s349 + $0x58] sm:$0xf]
      %v411 = vld [vmem:[%s349 + $0x5c] sm:$0xf]
      %v412 = vld [vmem:[%s349 + $0x60] sm:$0xf]
      %v413 = vld [vmem:[%s349 + $0x64] sm:$0xf]
      %v414 = vld [vmem:[%s349 + $0x68] sm:$0xf]
      %v415 = vld [vmem:[%s349 + $0x6c] sm:$0xf]
      %v416 = vld [vmem:[%s349 + $0x70] sm:$0xf]
      %v417 = vld [vmem:[%s349 + $0x74] sm:$0xf]
      %v418 = vld [vmem:[%s349 + $0x78] sm:$0xf]
      %v419 = vld [vmem:[%s349 + $0x7c] sm:$0xf]
      %v420 = vld [vmem:[%s349 + $0x80] sm:$0xf]
      %v421 = vld [vmem:[%s349 + $0x84] sm:$0xf]
      %v422 = vld [vmem:[%s349 + $0x88] sm:$0xf]
      %v423 = vld [vmem:[%s349 + $0x8c] sm:$0xf]
      %v424 = vld [vmem:[%s349 + $0x90] sm:$0xf]
      %v425 = vld [vmem:[%s349 + $0x94] sm:$0xf]
      %v426 = vld [vmem:[%s349 + $0x98] sm:$0xf]
      %v427 = vld [vmem:[%s349 + $0x9c] sm:$0xf]
      %v428 = vld [vmem:[%s349 + $0xa0] sm:$0xf]
      %v429 = vld [vmem:[%s349 + $0xa4] sm:$0xf]
      %v430 = vld [vmem:[%s349 + $0xa8] sm:$0xf]
      %v431 = vld [vmem:[%s349 + $0xac] sm:$0xf]
      %v432 = vld [vmem:[%s349 + $0xb0] sm:$0xf]
      %v433 = vld [vmem:[%s349 + $0xb4] sm:$0xf]
      %v434 = vld [vmem:[%s349 + $0xb8] sm:$0xf]
      %v435 = vld [vmem:[%s349 + $0xbc] sm:$0xf]
      %v436 = vld [vmem:[%s352] sm:$0x1]
      %v437 = vld [vmem:[%s338] sm:$0xff]
      %v438 = vld [vmem:[%s338 + $0x8] sm:$0xf]
      %v439 = vld [vmem:[%s338 + $0xc] sm:$0xff]
      %v440 = vld [vmem:[%s338 + $0x14] sm:$0xf]
      %v441 = vld [vmem:[%s338 + $0x18] sm:$0xff]
      %v442 = vld [vmem:[%s338 + $0x20] sm:$0xf]
      %v443 = vld [vmem:[%s338 + $0x24] sm:$0xff]
      %v444 = vld [vmem:[%s338 + $0x2c] sm:$0xf]
      %v445 = vld [vmem:[%s338 + $0x30] sm:$0xff]
      %v446 = vld [vmem:[%s338 + $0x38] sm:$0xf]
      %v448 = vlaneseq
      %v449 = vshrl.u32 %v448, 7
      %v450 = vsub.s32 0, %v449
      %v451 = vrot.slane %v436, %v450
      %v463 = vunpack.c.l.b16 %v437
      %v464 = vunpack.c.h.b16 %v437
      %v465 = vunpack.c.l.b16 %v438
      %v466 = vunpack.c.l.b16 %v439
      %v467 = vunpack.c.h.b16 %v439
      %v468 = vunpack.c.l.b16 %v440
      %v469 = vunpack.c.l.b16 %v441
      %v470 = vunpack.c.h.b16 %v441
      %v471 = vunpack.c.l.b16 %v442
      %v472 = vunpack.c.l.b16 %v443
      %v473 = vunpack.c.h.b16 %v443
      %v474 = vunpack.c.l.b16 %v444
      %v475 = vunpack.c.l.b16 %v445
      %v476 = vunpack.c.h.b16 %v445
      %v477 = vunpack.c.l.b16 %v446
      %v478 = vpack.c.b16 %v466, %v463
      %v479 = vpack.c.b16 %v467, %v464
      %v480 = vpack.c.b16 %v468, %v465
      %v481 = vpack.c.b16 %v472, %v469
      %v482 = vpack.c.b16 %v473, %v470
      %v483 = vpack.c.b16 %v474, %v471
      %v484 = vpack.c.b16 %v475, %v475
      %v485 = vpack.c.b16 %v476, %v476
      %v486 = vpack.c.b16 %v477, %v477
      %v544 = vunpack.c.l.b16 %v388
      %v545 = vunpack.c.l.b16 %v389
      %v546 = vunpack.c.l.b16 %v390
      %v547 = vunpack.c.l.b16 %v391
      %v548 = vunpack.c.l.b16 %v392
      %v549 = vunpack.c.l.b16 %v393
      %v550 = vunpack.c.l.b16 %v394
      %v551 = vunpack.c.l.b16 %v395
      %v552 = vunpack.c.l.b16 %v396
      %v553 = vunpack.c.l.b16 %v397
      %v554 = vunpack.c.l.b16 %v398
      %v555 = vunpack.c.l.b16 %v399
      %v556 = vunpack.c.l.b16 %v400
      %v557 = vunpack.c.l.b16 %v401
      %v558 = vunpack.c.l.b16 %v402
      %v559 = vunpack.c.l.b16 %v403
      %v560 = vunpack.c.l.b16 %v404
      %v561 = vunpack.c.l.b16 %v405
      %v562 = vunpack.c.l.b16 %v406
      %v563 = vunpack.c.l.b16 %v407
      %v564 = vunpack.c.l.b16 %v408
      %v565 = vunpack.c.l.b16 %v409
      %v566 = vunpack.c.l.b16 %v410
      %v567 = vunpack.c.l.b16 %v411
      %v568 = vunpack.c.l.b16 %v412
      %v569 = vunpack.c.l.b16 %v413
      %v570 = vunpack.c.l.b16 %v414
      %v571 = vunpack.c.l.b16 %v415
      %v572 = vunpack.c.l.b16 %v416
      %v573 = vunpack.c.l.b16 %v417
      %v574 = vunpack.c.l.b16 %v418
      %v575 = vunpack.c.l.b16 %v419
      %v576 = vunpack.c.l.b16 %v420
      %v577 = vunpack.c.l.b16 %v421
      %v578 = vunpack.c.l.b16 %v422
      %v579 = vunpack.c.l.b16 %v423
      %v580 = vunpack.c.l.b16 %v424
      %v581 = vunpack.c.l.b16 %v425
      %v582 = vunpack.c.l.b16 %v426
      %v583 = vunpack.c.l.b16 %v427
      %v584 = vunpack.c.l.b16 %v428
      %v585 = vunpack.c.l.b16 %v429
      %v586 = vunpack.c.l.b16 %v430
      %v587 = vunpack.c.l.b16 %v431
      %v588 = vunpack.c.l.b16 %v432
      %v589 = vunpack.c.l.b16 %v433
      %v590 = vunpack.c.l.b16 %v434
      %v591 = vunpack.c.l.b16 %v435
      %v592 = vpack.c.b16 %v545, %v544
      %v593 = vpack.c.b16 %v547, %v546
      %v594 = vpack.c.b16 %v549, %v548
      %v595 = vpack.c.b16 %v551, %v550
      %v596 = vpack.c.b16 %v553, %v552
      %v597 = vpack.c.b16 %v555, %v554
      %v598 = vpack.c.b16 %v557, %v556
      %v599 = vpack.c.b16 %v559, %v558
      %v600 = vpack.c.b16 %v561, %v560
      %v601 = vpack.c.b16 %v563, %v562
      %v602 = vpack.c.b16 %v565, %v564
      %v603 = vpack.c.b16 %v567, %v566
      %v604 = vpack.c.b16 %v569, %v568
      %v605 = vpack.c.b16 %v571, %v570
      %v606 = vpack.c.b16 %v573, %v572
      %v607 = vpack.c.b16 %v575, %v574
      %v608 = vpack.c.b16 %v577, %v576
      %v609 = vpack.c.b16 %v579, %v578
      %v610 = vpack.c.b16 %v581, %v580
      %v611 = vpack.c.b16 %v583, %v582
      %v612 = vpack.c.b16 %v585, %v584
      %v613 = vpack.c.b16 %v587, %v586
      %v614 = vpack.c.b16 %v589, %v588
      %v615 = vpack.c.b16 %v591, %v590
      %640 = vmatprep.subr.bf16.mxu0 0
      %641 = vmatpush1.bf16.msra.mxu0 %v599
      %642 = vmatprep.subr.bf16.mxu0 0
      %643 = vmatpush1.bf16.msra.mxu0 %v598
      %644 = vmatprep.subr.bf16.mxu0 0
      %645 = vmatpush1.bf16.msra.mxu0 %v597
      %646 = vmatprep.subr.bf16.mxu0 0
      %647 = vmatpush1.bf16.msra.mxu0 %v596
      %648 = vmatprep.subr.bf16.mxu0 0
      %649 = vmatpush1.bf16.msra.mxu0 %v595
      %650 = vmatprep.subr.bf16.mxu0 0
      %651 = vmatpush1.bf16.msra.mxu0 %v594
      %652 = vmatprep.subr.bf16.mxu0 0
      %653 = vmatpush1.bf16.msra.mxu0 %v593
      %654 = vmatprep.subr.bf16.mxu0 0
      %655 = vmatpush1.bf16.msra.mxu0 %v592
      %656 = vmatprep.subr.bf16.mxu0 0
      %657 = vmatpush2.bf16.msra.mxu0 %v607
      %658 = vmatprep.subr.bf16.mxu0 0
      %659 = vmatpush2.bf16.msra.mxu0 %v606
      %660 = vmatprep.subr.bf16.mxu0 0
      %661 = vmatpush2.bf16.msra.mxu0 %v605
      %662 = vmatprep.subr.bf16.mxu0 0
      %663 = vmatpush2.bf16.msra.mxu0 %v604
      %664 = vmatprep.subr.bf16.mxu0 0
      %665 = vmatpush2.bf16.msra.mxu0 %v603
      %666 = vmatprep.subr.bf16.mxu0 0
      %667 = vmatpush2.bf16.msra.mxu0 %v602
      %668 = vmatprep.subr.bf16.mxu0 0
      %669 = vmatpush2.bf16.msra.mxu0 %v601
      %670 = vmatprep.subr.bf16.mxu0 0
      %671 = vmatpush2.bf16.msra.mxu0 %v600
      %672 = vmatprep.mubr.bf16.mxu0 %v479
      %673 = vmatmul.mubr.bf16.gmra.mxu0 %v478
      %v674 = vpop.f32.mrf.mxu0
      %v675 = vadd.f32 %v451, %v674
      %v676 = vpop.f32.mrf.mxu0
      %v677 = vpop.f32.mrf.mxu0
      %v678 = vadd.f32 %v451, %v677
      %v679 = vpop.f32.mrf.mxu0
      %680 = vmatprep.mubr.bf16.mxu0 %v482
      %681 = vmatmul.mubr.bf16.gmra.mxu0 %v481
      %v682 = vpop.f32.mrf.mxu0
      %v683 = vadd.f32 %v451, %v682
      %v684 = vpop.f32.mrf.mxu0
      %v685 = vpop.f32.mrf.mxu0
      %v686 = vadd.f32 %v451, %v685
      %v687 = vpop.f32.mrf.mxu0
      %688 = vmatprep.mubr.bf16.mxu0 %v485
      %689 = vmatmul.mubr.bf16.gmra.mxu0 %v484
      %v690 = vpop.f32.mrf.mxu0
      %v691 = vadd.f32 %v451, %v690
      %v692 = vpop.f32.mrf.mxu0
      %v693 = vpop.f32.mrf.mxu0
      %v694 = vpop.f32.mrf.mxu0
      %695 = vdwg.mxu0
      %696 = vmatprep.subr.bf16.mxu0 0
      %697 = vmatpush1.bf16.msra.mxu0 %v615
      %698 = vmatprep.subr.bf16.mxu0 0
      %699 = vmatpush1.bf16.msra.mxu0 %v614
      %700 = vmatprep.subr.bf16.mxu0 0
      %701 = vmatpush1.bf16.msra.mxu0 %v613
      %702 = vmatprep.subr.bf16.mxu0 0
      %703 = vmatpush1.bf16.msra.mxu0 %v612
      %704 = vmatprep.subr.bf16.mxu0 0
      %705 = vmatpush1.bf16.msra.mxu0 %v611
      %706 = vmatprep.subr.bf16.mxu0 0
      %707 = vmatpush1.bf16.msra.mxu0 %v610
      %708 = vmatprep.subr.bf16.mxu0 0
      %709 = vmatpush1.bf16.msra.mxu0 %v609
      %710 = vmatprep.subr.bf16.mxu0 0
      %711 = vmatpush1.bf16.msra.mxu0 %v608
      %712 = vmatprep.subr.bf16.mxu0 0
      %713 = vmatpush2.bf16.msra.mxu0 0
      %714 = vmatprep.subr.bf16.mxu0 0
      %715 = vmatpush2.bf16.msra.mxu0 0
      %716 = vmatprep.subr.bf16.mxu0 0
      %717 = vmatpush2.bf16.msra.mxu0 0
      %718 = vmatprep.subr.bf16.mxu0 0
      %719 = vmatpush2.bf16.msra.mxu0 0
      %720 = vmatprep.subr.bf16.mxu0 0
      %721 = vmatpush2.bf16.msra.mxu0 0
      %722 = vmatprep.subr.bf16.mxu0 0
      %723 = vmatpush2.bf16.msra.mxu0 0
      %724 = vmatprep.subr.bf16.mxu0 0
      %725 = vmatpush2.bf16.msra.mxu0 0
      %726 = vmatprep.subr.bf16.mxu0 0
      %727 = vmatpush2.bf16.msra.mxu0 0
      %728 = vmatprep.mubr.bf16.mxu0 0
      %729 = vmatmul.mubr.bf16.gmra.mxu0 %v480
      %v730 = vpop.f32.mrf.mxu0
      %v731 = vadd.f32 %v675, %v730
      %v732 = vpop.f32.mrf.mxu0
      %v733 = vpop.f32.mrf.mxu0
      %v734 = vadd.f32 %v678, %v733
      %v735 = vpop.f32.mrf.mxu0
      %736 = vmatprep.mubr.bf16.mxu0 0
      %737 = vmatmul.mubr.bf16.gmra.mxu0 %v483
      %v738 = vpop.f32.mrf.mxu0
      %v739 = vadd.f32 %v683, %v738
      %v740 = vpop.f32.mrf.mxu0
      %v741 = vpop.f32.mrf.mxu0
      %v742 = vadd.f32 %v686, %v741
      %v743 = vpop.f32.mrf.mxu0
      %744 = vmatprep.mubr.bf16.mxu0 0
      %745 = vmatmul.mubr.bf16.gmra.mxu0 %v486
      %v746 = vpop.f32.mrf.mxu0
      %v747 = vadd.f32 %v691, %v746
      %v748 = vpop.f32.mrf.mxu0
      %v749 = vpop.f32.mrf.mxu0
      %v750 = vpop.f32.mrf.mxu0
      %751 = vdwg.mxu0
      %752 = vst [vmem:[#allocation3] sm:$0xff] %v731
      %753 = vst [vmem:[#allocation3 + $0x8] sm:$0xff] %v734
      %754 = vst [vmem:[#allocation3 + $0x10] sm:$0xff] %v739
      %755 = vst [vmem:[#allocation3 + $0x18] sm:$0xff] %v742
      %756 = vst [vmem:[#allocation3 + $0x20] sm:$0xff] %v747
      %v757 = vld [vmem:[%s357] sm:$0xf]
      %v758 = vld [vmem:[%s357 + $0x4] sm:$0xf]
      %v759 = vld [vmem:[%s357 + $0x8] sm:$0xf]
      %v760 = vld [vmem:[%s357 + $0xc] sm:$0xf]
      %v761 = vld [vmem:[%s360] sm:$0x1]
      %s762 = smul.u32 %s21, 5
      %v763 = vld [vmem:[#allocation2] sm:$0xff]
      %s764 = smul.u32 %s20, 32
      %s765 = scalar_lea.vmem [#allocation3], %s764
      %v766 = vld [vmem:[%s765] sm:$0xff]
      %v767 = vpack.c.bf16 %v763, %v763
      %v769 = vlaneseq
      %v770 = vshrl.u32 %v769, 7
      %v771 = vsub.s32 0, %v770
      %v772 = vrot.slane %v761, %v771
      %v778 = vunpack.c.l.b16 %v757
      %v779 = vunpack.c.l.b16 %v758
      %v780 = vunpack.c.l.b16 %v759
      %v781 = vunpack.c.l.b16 %v760
      %v782 = vpack.c.b16 %v779, %v778
      %v783 = vpack.c.b16 %v781, %v780
      %vm786 = vcmask 261120
      %v788 = vsel %vm786, %v767, 0
      %790 = vmatprep.subr.bf16.mxu0 0
      %791 = vmatpush1.bf16.msra.mxu0 0
      %792 = vmatprep.subr.bf16.mxu0 0
      %793 = vmatpush1.bf16.msra.mxu0 0
      %794 = vmatprep.subr.bf16.mxu0 0
      %795 = vmatpush1.bf16.msra.mxu0 0
      %796 = vmatprep.subr.bf16.mxu0 0
      %797 = vmatpush1.bf16.msra.mxu0 0
      %798 = vmatprep.subr.bf16.mxu0 0
      %799 = vmatpush1.bf16.msra.mxu0 0
      %800 = vmatprep.subr.bf16.mxu0 0
      %801 = vmatpush1.bf16.msra.mxu0 0
      %802 = vmatprep.subr.bf16.mxu0 0
      %803 = vmatpush1.bf16.msra.mxu0 %v783
      %804 = vmatprep.subr.bf16.mxu0 0
      %805 = vmatpush1.bf16.msra.mxu0 %v782
      %806 = vmatprep.subr.bf16.mxu0 0
      %807 = vmatpush2.bf16.msra.mxu0 0
      %808 = vmatprep.subr.bf16.mxu0 0
      %809 = vmatpush2.bf16.msra.mxu0 0
      %810 = vmatprep.subr.bf16.mxu0 0
      %811 = vmatpush2.bf16.msra.mxu0 0
      %812 = vmatprep.subr.bf16.mxu0 0
      %813 = vmatpush2.bf16.msra.mxu0 0
      %814 = vmatprep.subr.bf16.mxu0 0
      %815 = vmatpush2.bf16.msra.mxu0 0
      %816 = vmatprep.subr.bf16.mxu0 0
      %817 = vmatpush2.bf16.msra.mxu0 0
      %818 = vmatprep.subr.bf16.mxu0 0
      %819 = vmatpush2.bf16.msra.mxu0 0
      %820 = vmatprep.subr.bf16.mxu0 0
      %821 = vmatpush2.bf16.msra.mxu0 0
      %822 = vmatprep.mubr.bf16.mxu0 0
      %823 = vmatmul.mubr.bf16.gmra.mxu0 %v788
      %v824 = vpop.f32.mrf.mxu0
      %v825 = vadd.f32 %v772, %v824
      %v826 = vpop.f32.mrf.mxu0
      %v827 = vpop.f32.mrf.mxu0
      %v828 = vpop.f32.mrf.mxu0
      %829 = vdwg.mxu0
      %v830 = vadd.f32 %v766, %v825
      %v831 = vmul.f32 %v830, 0.5
      %v832 = vtanh.pop %v831
      %v833 = vmul.f32 %v832, 0.5
      %v834 = vadd.f32 %v833, 0.5
      %836 = vrot.lane.b32.xlu0 %v825, 64
      %v837 = vpop.permute.xlu0 %836
      %v839 = vmul.f32 %v834, %v837
      %841 = vrot.lane.b32.xlu0 %v839, 64
      %v842 = vpop.permute.xlu0 %841
      %v844 = vadd.f32 %v766, %v842
      %v845 = vtanh.pop %v844
      %v846 = vsub.f32 1.0, %v834
      %848 = vrot.lane.b32.xlu0 %v845, 96
      %v849 = vpop.permute.xlu0 %848
      %v851 = vmul.f32 %v846, %v849
      %853 = vrot.lane.b32.xlu0 %v763, 32
      %v854 = vpop.permute.xlu0 %853
      %v856 = vmul.f32 %v834, %v854
      %v857 = vadd.f32 %v851, %v856
      %s858 = ssub.s32 1, %s20
      %s859 = smul.u32 %s858, %s762
      %s860 = ssub.s32 4, %s762
      %s861 = smul.u32 %s20, %s860
      %s862 = sadd.s32 %s859, %s861
      %p863 = scmp.lt.s32.totalorder %s862, 5
      %s864 = scalar_select %p863, 1, 0
      %s865 = scvt.s32.f32 %s864
      %v866 = vstv %s865
      %v867 = vmul.f32 %v866, %v857
      %s868 = ssub.f32 1.0, %s865
      %v869 = vstv %s868
      %v870 = vmul.f32 %v869, %v763
      %872 = vrot.lane.b32.xlu0 %v870, 32
      %v873 = vpop.permute.xlu0 %872
      %v875 = vadd.f32 %v867, %v873
      %v876 = vpack.c.bf16 %v875, %v875
      %v878 = vunpack.c.l.b16 %v876
      %v879 = vpack.c.b16 %v878, %v878
      %880 = vrot.lane.b32.xlu0 %v879, 96
      %v881 = vpop.permute.xlu0 %880
      %s883 = sshra.s32 %s764, 3
      %s884 = sand.u32 %s764, 7
      %s885 = smul.addr %s883, 4
      %s886 = scalar_lea.vmem %s374, %s885
      %vm887 = vcmask 257024
      %888 = vst.msk [vmem:[%s886] sm:$0xf] %vm887, %v881
      %s889 = smul.u32 %s20, 3
      %s890 = sadd.s32 %s858, %s889
      %s891 = smul.u32 %s890, 8
      %s892 = scalar_lea.vmem [#allocation3], %s891
      %v893 = vld [vmem:[%s892] sm:$0xff]
      %894 = vrot.lane.b32.xlu0 %v876, 96
      %v895 = vpop.permute.xlu0 %894
      %v897 = vsel %vm786, %v895, 0
      %899 = vmatprep.subr.bf16.mxu0 0
      %900 = vmatpush1.bf16.msra.mxu0 0
      %901 = vmatprep.subr.bf16.mxu0 0
      %902 = vmatpush1.bf16.msra.mxu0 0
      %903 = vmatprep.subr.bf16.mxu0 0
      %904 = vmatpush1.bf16.msra.mxu0 0
      %905 = vmatprep.subr.bf16.mxu0 0
      %906 = vmatpush1.bf16.msra.mxu0 0
      %907 = vmatprep.subr.bf16.mxu0 0
      %908 = vmatpush1.bf16.msra.mxu0 0
      %909 = vmatprep.subr.bf16.mxu0 0
      %910 = vmatpush1.bf16.msra.mxu0 0
      %911 = vmatprep.subr.bf16.mxu0 0
      %912 = vmatpush1.bf16.msra.mxu0 %v783
      %913 = vmatprep.subr.bf16.mxu0 0
      %914 = vmatpush1.bf16.msra.mxu0 %v782
      %915 = vmatprep.subr.bf16.mxu0 0
      %916 = vmatpush2.bf16.msra.mxu0 0
      %917 = vmatprep.subr.bf16.mxu0 0
      %918 = vmatpush2.bf16.msra.mxu0 0
      %919 = vmatprep.subr.bf16.mxu0 0
      %920 = vmatpush2.bf16.msra.mxu0 0
      %921 = vmatprep.subr.bf16.mxu0 0
      %922 = vmatpush2.bf16.msra.mxu0 0
      %923 = vmatprep.subr.bf16.mxu0 0
      %924 = vmatpush2.bf16.msra.mxu0 0
      %925 = vmatprep.subr.bf16.mxu0 0
      %926 = vmatpush2.bf16.msra.mxu0 0
      %927 = vmatprep.subr.bf16.mxu0 0
      %928 = vmatpush2.bf16.msra.mxu0 0
      %929 = vmatprep.subr.bf16.mxu0 0
      %930 = vmatpush2.bf16.msra.mxu0 0
      %931 = vmatprep.mubr.bf16.mxu0 0
      %932 = vmatmul.mubr.bf16.gmra.mxu0 %v897
      %v933 = vpop.f32.mrf.mxu0
      %v934 = vadd.f32 %v772, %v933
      %v935 = vpop.f32.mrf.mxu0
      %v936 = vpop.f32.mrf.mxu0
      %v937 = vpop.f32.mrf.mxu0
      %938 = vdwg.mxu0
      %v939 = vadd.f32 %v893, %v934
      %v940 = vmul.f32 %v939, 0.5
      %v941 = vtanh.pop %v940
      %v942 = vmul.f32 %v941, 0.5
      %v943 = vadd.f32 %v942, 0.5
      %945 = vrot.lane.b32.xlu0 %v934, 64
      %v946 = vpop.permute.xlu0 %945
      %v948 = vmul.f32 %v943, %v946
      %950 = vrot.lane.b32.xlu0 %v948, 64
      %v951 = vpop.permute.xlu0 %950
      %v953 = vadd.f32 %v893, %v951
      %v954 = vtanh.pop %v953
      %v955 = vsub.f32 1.0, %v943
      %957 = vrot.lane.b32.xlu0 %v954, 96
      %v958 = vpop.permute.xlu0 %957
      %v960 = vmul.f32 %v955, %v958
      %v961 = vmul.f32 %v943, %v875
      %v962 = vadd.f32 %v960, %v961
      %s963 = sadd.s32 %s762, 1
      %s964 = smul.u32 %s858, %s963
      %s965 = ssub.s32 3, %s762
      %s966 = smul.u32 %s20, %s965
      %s967 = sadd.s32 %s964, %s966
      %p968 = scmp.lt.s32.totalorder %s967, 5
      %s969 = scalar_select %p968, 1, 0
      %s970 = scvt.s32.f32 %s969
      %v971 = vstv %s970
      %v972 = vmul.f32 %v971, %v962
      %s973 = ssub.f32 1.0, %s970
      %v974 = vstv %s973
      %v975 = vmul.f32 %v974, %v875
      %v976 = vadd.f32 %v972, %v975
      %v977 = vpack.c.bf16 %v976, %v976
      %v979 = vunpack.c.l.b16 %v977
      %v980 = vpack.c.b16 %v979, %v979
      %981 = vrot.lane.b32.xlu0 %v980, 96
      %v982 = vpop.permute.xlu0 %981
      %s984 = sshra.s32 %s891, 3
      %s985 = sand.u32 %s891, 7
      %s986 = smul.addr %s984, 4
      %s987 = scalar_lea.vmem %s374, %s986
      %988 = vst.msk [vmem:[%s987] sm:$0xf] %vm887, %v982
      %s989 = smul.u32 %s858, 2
      %s990 = smul.u32 %s20, 2
      %s991 = sadd.s32 %s989, %s990
      %s992 = smul.u32 %s991, 8
      %s993 = scalar_lea.vmem [#allocation3], %s992
      %v994 = vld [vmem:[%s993] sm:$0xff]
      %995 = vrot.lane.b32.xlu0 %v977, 96
      %v996 = vpop.permute.xlu0 %995
      %v998 = vsel %vm786, %v996, 0
      %1000 = vmatprep.subr.bf16.mxu0 0
      %1001 = vmatpush1.bf16.msra.mxu0 0
      %1002 = vmatprep.subr.bf16.mxu0 0
      %1003 = vmatpush1.bf16.msra.mxu0 0
      %1004 = vmatprep.subr.bf16.mxu0 0
      %1005 = vmatpush1.bf16.msra.mxu0 0
      %1006 = vmatprep.subr.bf16.mxu0 0
      %1007 = vmatpush1.bf16.msra.mxu0 0
      %1008 = vmatprep.subr.bf16.mxu0 0
      %1009 = vmatpush1.bf16.msra.mxu0 0
      %1010 = vmatprep.subr.bf16.mxu0 0
      %1011 = vmatpush1.bf16.msra.mxu0 0
      %1012 = vmatprep.subr.bf16.mxu0 0
      %1013 = vmatpush1.bf16.msra.mxu0 %v783
      %1014 = vmatprep.subr.bf16.mxu0 0
      %1015 = vmatpush1.bf16.msra.mxu0 %v782
      %1016 = vmatprep.subr.bf16.mxu0 0
      %1017 = vmatpush2.bf16.msra.mxu0 0
      %1018 = vmatprep.subr.bf16.mxu0 0
      %1019 = vmatpush2.bf16.msra.mxu0 0
      %1020 = vmatprep.subr.bf16.mxu0 0
      %1021 = vmatpush2.bf16.msra.mxu0 0
      %1022 = vmatprep.subr.bf16.mxu0 0
      %1023 = vmatpush2.bf16.msra.mxu0 0
      %1024 = vmatprep.subr.bf16.mxu0 0
      %1025 = vmatpush2.bf16.msra.mxu0 0
      %1026 = vmatprep.subr.bf16.mxu0 0
      %1027 = vmatpush2.bf16.msra.mxu0 0
      %1028 = vmatprep.subr.bf16.mxu0 0
      %1029 = vmatpush2.bf16.msra.mxu0 0
      %1030 = vmatprep.subr.bf16.mxu0 0
      %1031 = vmatpush2.bf16.msra.mxu0 0
      %1032 = vmatprep.mubr.bf16.mxu0 0
      %1033 = vmatmul.mubr.bf16.gmra.mxu0 %v998
      %v1034 = vpop.f32.mrf.mxu0
      %v1035 = vadd.f32 %v772, %v1034
      %v1036 = vpop.f32.mrf.mxu0
      %v1037 = vpop.f32.mrf.mxu0
      %v1038 = vpop.f32.mrf.mxu0
      %1039 = vdwg.mxu0
      %v1040 = vadd.f32 %v994, %v1035
      %v1041 = vmul.f32 %v1040, 0.5
      %v1042 = vtanh.pop %v1041
      %v1043 = vmul.f32 %v1042, 0.5
      %v1044 = vadd.f32 %v1043, 0.5
      %1046 = vrot.lane.b32.xlu0 %v1035, 64
      %v1047 = vpop.permute.xlu0 %1046
      %v1049 = vmul.f32 %v1044, %v1047
      %1051 = vrot.lane.b32.xlu0 %v1049, 64
      %v1052 = vpop.permute.xlu0 %1051
      %v1054 = vadd.f32 %v994, %v1052
      %v1055 = vtanh.pop %v1054
      %v1056 = vsub.f32 1.0, %v1044
      %1058 = vrot.lane.b32.xlu0 %v1055, 96
      %v1059 = vpop.permute.xlu0 %1058
      %v1061 = vmul.f32 %v1056, %v1059
      %v1062 = vmul.f32 %v1044, %v976
      %v1063 = vadd.f32 %v1061, %v1062
      %s1064 = sadd.s32 %s762, 2
      %s1065 = smul.u32 %s858, %s1064
      %s1066 = ssub.s32 2, %s762
      %s1067 = smul.u32 %s20, %s1066
      %s1068 = sadd.s32 %s1065, %s1067
      %p1069 = scmp.lt.s32.totalorder %s1068, 5
      %s1070 = scalar_select %p1069, 1, 0
      %s1071 = scvt.s32.f32 %s1070
      %v1072 = vstv %s1071
      %v1073 = vmul.f32 %v1072, %v1063
      %s1074 = ssub.f32 1.0, %s1071
      %v1075 = vstv %s1074
      %v1076 = vmul.f32 %v1075, %v976
      %v1077 = vadd.f32 %v1073, %v1076
      %v1078 = vpack.c.bf16 %v1077, %v1077
      %v1080 = vunpack.c.l.b16 %v1078
      %v1081 = vpack.c.b16 %v1080, %v1080
      %1082 = vrot.lane.b32.xlu0 %v1081, 96
      %v1083 = vpop.permute.xlu0 %1082
      %s1085 = sshra.s32 %s992, 3
      %s1086 = sand.u32 %s992, 7
      %s1087 = smul.addr %s1085, 4
      %s1088 = scalar_lea.vmem %s374, %s1087
      %1089 = vst.msk [vmem:[%s1088] sm:$0xf] %vm887, %v1083
      %s1090 = smul.u32 %s858, 3
      %s1091 = sadd.s32 %s1090, %s20
      %s1092 = smul.u32 %s1091, 8
      %s1093 = scalar_lea.vmem [#allocation3], %s1092
      %v1094 = vld [vmem:[%s1093] sm:$0xff]
      %1095 = vrot.lane.b32.xlu0 %v1078, 96
      %v1096 = vpop.permute.xlu0 %1095
      %v1098 = vsel %vm786, %v1096, 0
      %1100 = vmatprep.subr.bf16.mxu0 0
      %1101 = vmatpush1.bf16.msra.mxu0 0
      %1102 = vmatprep.subr.bf16.mxu0 0
      %1103 = vmatpush1.bf16.msra.mxu0 0
      %1104 = vmatprep.subr.bf16.mxu0 0
      %1105 = vmatpush1.bf16.msra.mxu0 0
      %1106 = vmatprep.subr.bf16.mxu0 0
      %1107 = vmatpush1.bf16.msra.mxu0 0
      %1108 = vmatprep.subr.bf16.mxu0 0
      %1109 = vmatpush1.bf16.msra.mxu0 0
      %1110 = vmatprep.subr.bf16.mxu0 0
      %1111 = vmatpush1.bf16.msra.mxu0 0
      %1112 = vmatprep.subr.bf16.mxu0 0
      %1113 = vmatpush1.bf16.msra.mxu0 %v783
      %1114 = vmatprep.subr.bf16.mxu0 0
      %1115 = vmatpush1.bf16.msra.mxu0 %v782
      %1116 = vmatprep.subr.bf16.mxu0 0
      %1117 = vmatpush2.bf16.msra.mxu0 0
      %1118 = vmatprep.subr.bf16.mxu0 0
      %1119 = vmatpush2.bf16.msra.mxu0 0
      %1120 = vmatprep.subr.bf16.mxu0 0
      %1121 = vmatpush2.bf16.msra.mxu0 0
      %1122 = vmatprep.subr.bf16.mxu0 0
      %1123 = vmatpush2.bf16.msra.mxu0 0
      %1124 = vmatprep.subr.bf16.mxu0 0
      %1125 = vmatpush2.bf16.msra.mxu0 0
      %1126 = vmatprep.subr.bf16.mxu0 0
      %1127 = vmatpush2.bf16.msra.mxu0 0
      %1128 = vmatprep.subr.bf16.mxu0 0
      %1129 = vmatpush2.bf16.msra.mxu0 0
      %1130 = vmatprep.subr.bf16.mxu0 0
      %1131 = vmatpush2.bf16.msra.mxu0 0
      %1132 = vmatprep.mubr.bf16.mxu0 0
      %1133 = vmatmul.mubr.bf16.gmra.mxu0 %v1098
      %v1134 = vpop.f32.mrf.mxu0
      %v1135 = vadd.f32 %v772, %v1134
      %v1136 = vpop.f32.mrf.mxu0
      %v1137 = vpop.f32.mrf.mxu0
      %v1138 = vpop.f32.mrf.mxu0
      %1139 = vdwg.mxu0
      %v1140 = vadd.f32 %v1094, %v1135
      %v1141 = vmul.f32 %v1140, 0.5
      %v1142 = vtanh.pop %v1141
      %v1143 = vmul.f32 %v1142, 0.5
      %v1144 = vadd.f32 %v1143, 0.5
      %1146 = vrot.lane.b32.xlu0 %v1135, 64
      %v1147 = vpop.permute.xlu0 %1146
      %v1149 = vmul.f32 %v1144, %v1147
      %1151 = vrot.lane.b32.xlu0 %v1149, 64
      %v1152 = vpop.permute.xlu0 %1151
      %v1154 = vadd.f32 %v1094, %v1152
      %v1155 = vtanh.pop %v1154
      %v1156 = vsub.f32 1.0, %v1144
      %1158 = vrot.lane.b32.xlu0 %v1155, 96
      %v1159 = vpop.permute.xlu0 %1158
      %v1161 = vmul.f32 %v1156, %v1159
      %v1162 = vmul.f32 %v1144, %v1077
      %v1163 = vadd.f32 %v1161, %v1162
      %s1164 = sadd.s32 %s762, 3
      %s1165 = smul.u32 %s858, %s1164
      %s1166 = ssub.s32 1, %s762
      %s1167 = smul.u32 %s20, %s1166
      %s1168 = sadd.s32 %s1165, %s1167
      %p1169 = scmp.lt.s32.totalorder %s1168, 5
      %s1170 = scalar_select %p1169, 1, 0
      %s1171 = scvt.s32.f32 %s1170
      %v1172 = vstv %s1171
      %v1173 = vmul.f32 %v1172, %v1163
      %s1174 = ssub.f32 1.0, %s1171
      %v1175 = vstv %s1174
      %v1176 = vmul.f32 %v1175, %v1077
      %v1177 = vadd.f32 %v1173, %v1176
      %v1178 = vpack.c.bf16 %v1177, %v1177
      %v1180 = vunpack.c.l.b16 %v1178
      %v1181 = vpack.c.b16 %v1180, %v1180
      %1182 = vrot.lane.b32.xlu0 %v1181, 96
      %v1183 = vpop.permute.xlu0 %1182
      %s1185 = sshra.s32 %s1092, 3
      %s1186 = sand.u32 %s1092, 7
      %s1187 = smul.addr %s1185, 4
      %s1188 = scalar_lea.vmem %s374, %s1187
      %1189 = vst.msk [vmem:[%s1188] sm:$0xf] %vm887, %v1183
      %s1190 = smul.u32 %s858, 32
      %s1191 = scalar_lea.vmem [#allocation3], %s1190
      %v1192 = vld [vmem:[%s1191] sm:$0xff]
      %1193 = vrot.lane.b32.xlu0 %v1178, 96
      %v1194 = vpop.permute.xlu0 %1193
      %v1196 = vsel %vm786, %v1194, 0
      %1198 = vmatprep.subr.bf16.mxu0 0
      %1199 = vmatpush1.bf16.msra.mxu0 0
      %1200 = vmatprep.subr.bf16.mxu0 0
      %1201 = vmatpush1.bf16.msra.mxu0 0
      %1202 = vmatprep.subr.bf16.mxu0 0
      %1203 = vmatpush1.bf16.msra.mxu0 0
      %1204 = vmatprep.subr.bf16.mxu0 0
      %1205 = vmatpush1.bf16.msra.mxu0 0
      %1206 = vmatprep.subr.bf16.mxu0 0
      %1207 = vmatpush1.bf16.msra.mxu0 0
      %1208 = vmatprep.subr.bf16.mxu0 0
      %1209 = vmatpush1.bf16.msra.mxu0 0
      %1210 = vmatprep.subr.bf16.mxu0 0
      %1211 = vmatpush1.bf16.msra.mxu0 %v783
      %1212 = vmatprep.subr.bf16.mxu0 0
      %1213 = vmatpush1.bf16.msra.mxu0 %v782
      %1214 = vmatprep.subr.bf16.mxu0 0
      %1215 = vmatpush2.bf16.msra.mxu0 0
      %1216 = vmatprep.subr.bf16.mxu0 0
      %1217 = vmatpush2.bf16.msra.mxu0 0
      %1218 = vmatprep.subr.bf16.mxu0 0
      %1219 = vmatpush2.bf16.msra.mxu0 0
      %1220 = vmatprep.subr.bf16.mxu0 0
      %1221 = vmatpush2.bf16.msra.mxu0 0
      %1222 = vmatprep.subr.bf16.mxu0 0
      %1223 = vmatpush2.bf16.msra.mxu0 0
      %1224 = vmatprep.subr.bf16.mxu0 0
      %1225 = vmatpush2.bf16.msra.mxu0 0
      %1226 = vmatprep.subr.bf16.mxu0 0
      %1227 = vmatpush2.bf16.msra.mxu0 0
      %1228 = vmatprep.subr.bf16.mxu0 0
      %1229 = vmatpush2.bf16.msra.mxu0 0
      %1230 = vmatprep.mubr.bf16.mxu0 0
      %1231 = vmatmul.mubr.bf16.gmra.mxu0 %v1196
      %v1232 = vpop.f32.mrf.mxu0
      %v1233 = vadd.f32 %v772, %v1232
      %v1234 = vpop.f32.mrf.mxu0
      %v1235 = vpop.f32.mrf.mxu0
      %v1236 = vpop.f32.mrf.mxu0
      %1237 = vdwg.mxu0
      %v1238 = vadd.f32 %v1192, %v1233
      %v1239 = vmul.f32 %v1238, 0.5
      %v1240 = vtanh.pop %v1239
      %v1241 = vmul.f32 %v1240, 0.5
      %v1242 = vadd.f32 %v1241, 0.5
      %1244 = vrot.lane.b32.xlu0 %v1233, 64
      %v1245 = vpop.permute.xlu0 %1244
      %v1247 = vmul.f32 %v1242, %v1245
      %1249 = vrot.lane.b32.xlu0 %v1247, 64
      %v1250 = vpop.permute.xlu0 %1249
      %v1252 = vadd.f32 %v1192, %v1250
      %v1253 = vtanh.pop %v1252
      %v1254 = vsub.f32 1.0, %v1242
      %1256 = vrot.lane.b32.xlu0 %v1253, 96
      %v1257 = vpop.permute.xlu0 %1256
      %v1259 = vmul.f32 %v1254, %v1257
      %v1260 = vmul.f32 %v1242, %v1177
      %v1261 = vadd.f32 %v1259, %v1260
      %s1262 = sadd.s32 %s762, 4
      %s1263 = smul.u32 %s858, %s1262
      %s1264 = ssub.s32 0, %s762
      %s1265 = smul.u32 %s20, %s1264
      %s1266 = sadd.s32 %s1263, %s1265
      %p1267 = scmp.lt.s32.totalorder %s1266, 5
      %s1268 = scalar_select %p1267, 1, 0
      %s1269 = scvt.s32.f32 %s1268
      %v1270 = vstv %s1269
      %v1271 = vmul.f32 %v1270, %v1261
      %s1272 = ssub.f32 1.0, %s1269
      %v1273 = vstv %s1272
      %v1274 = vmul.f32 %v1273, %v1177
      %v1275 = vadd.f32 %v1271, %v1274
      %v1276 = vpack.c.bf16 %v1275, %v1275
      %v1278 = vunpack.c.l.b16 %v1276
      %v1279 = vpack.c.b16 %v1278, %v1278
      %1280 = vrot.lane.b32.xlu0 %v1279, 96
      %v1281 = vpop.permute.xlu0 %1280
      %s1283 = sshra.s32 %s1190, 3
      %s1284 = sand.u32 %s1190, 7
      %s1285 = smul.addr %s1283, 4
      %s1286 = scalar_lea.vmem %s374, %s1285
      %1287 = vst.msk [vmem:[%s1286] sm:$0xf] %vm887, %v1281
      %1289 = vrot.lane.b32.xlu0 %v1275, 96
      %v1290 = vpop.permute.xlu0 %1289
      %1292 = vst.msk [vmem:[#allocation2] sm:$0xff] %vm786, %v1290
      %s1293 = ssub.s32 1, %s20
      %s1294 = smul.u32 %s1293, %s21
      %s1295 = ssub.s32 0, %s21
      %s1296 = smul.u32 %s20, %s1295
      %s1297 = sadd.s32 %s1294, %s1296
      %s1298 = smul.u32 5, %s1297
      %p1299 = scmp.lt.s32.totalorder %s20, 1
      %s1300 = scalar_select %p1299, %s20, 1
      %p1301 = scmp.lt.s32.totalorder %s1298, 4
      %s1302 = scalar_select %p1301, %s1298, 4
      %s1303 = smul.addr %s1300, 5
      %s1304 = sadd.s32 %s1302, %s1303
      %s1305 = smul.addr %s1304, 4
      %s1306 = scalar_lea.vmem %s5, %s1305
      // Predicated region
      $region45: #{deep_speech_forward.3} parent=39 // pred_check
        %p1307 = pneg %p198
      $region46: #{deep_speech_forward.3} parent=39 // pred_check_branch
        %1309 = sbr.rel (%p1307) target = $region48
      $region47: #{deep_speech_forward.3} parent=39 // pred_region
        %s1310 = ssub.s32 1, %s20
        %s1311 = smul.u32 %s1310, %s21
        %s1312 = ssub.s32 0, %s21
        %s1313 = smul.u32 %s20, %s1312
        %s1314 = sadd.s32 %s1311, %s1313
        %s1315 = smul.u32 5, %s1314
      $region48: #{deep_speech_forward.3} parent=39 // pred_fallthru
        _
    $region40: #{deep_speech_forward.3} parent=5 // pred_fallthru
      _
    %p1316 = scmp.le.s32.totalorder 2, %s11
    // Predicated region
    $region49: #{deep_speech_forward.3} parent=5 // pred_check
      %p1317 = pneg %p1316
    $region50: #{deep_speech_forward.3} parent=5 // pred_check_branch
      %1319 = sbr.rel (%p1317) target = $region52
    $region51: #{deep_speech_forward.3} parent=5 // pred_region
      %s1320 = ssub.s32 %s11, 2
      // Predicated region
      $region53: #{deep_speech_forward.3} parent=51 // pred_check
        %p1321 = pneg %p204
      $region54: #{deep_speech_forward.3} parent=51 // pred_check_branch
        %1323 = sbr.rel (%p1321) target = $region56
      $region55: #{deep_speech_forward.3} parent=51 // pred_region
        %s1324 = ssub.s32 1, %s22
        %s1325 = smul.u32 %s1324, %s23
        %s1326 = ssub.s32 0, %s23
        %s1327 = smul.u32 %s22, %s1326
        %s1328 = sadd.s32 %s1325, %s1327
        %s1329 = smul.u32 5, %s1328
        %p1330 = scmp.lt.s32.totalorder %s22, 1
        %s1331 = scalar_select %p1330, %s22, 1
        %p1332 = scmp.lt.s32.totalorder %s1329, 4
        %s1333 = scalar_select %p1332, %s1329, 4
        %s1334 = smul.addr %s1331, 5
        %s1335 = sadd.s32 %s1333, %s1334
        %s1336 = smul.addr %s1335, 4
        %s1337 = scalar_lea.vmem %s5, %s1336
      $region56: #{deep_speech_forward.3} parent=51 // pred_fallthru
        _
    $region52: #{deep_speech_forward.3} parent=5 // pred_fallthru
      _
  $region6: #{deep_speech_forward.3} parent=0 // loop_footer
    %s15 = sadd.s32 1, %s11
  $region7: #{deep_speech_forward.3} parent=0 // loop_footer_branch
    %10 = sbr.rel target = $region3
  $region8: #{deep_speech_forward.3} parent=0 // loop_exit
    _

// kernel: deep_speech_forward.5
$region0: #{deep_speech_forward.5}
  #allocation0 [shape = 'u32[]', space=smem, size = 0x4, offset = 0x4, fixed_abs, tag = 'smem constant byte address 0x4 - core index']
  #allocation1 [shape = 'u32[144,128]{1,0:T(1,128)}', space=vmem, size = 0x12000, scoped, tag = 'internal scratch']
  %s0 = inlined_call_operand.vmem [shape: bf16[2,40,32], index: 0, kind: input, shape index: {}, may-alias: {0,2}]
  %s1 = inlined_call_operand.vmem [shape: bf16[32,128], index: 1, kind: input, shape index: {}]
  %s2 = inlined_call_operand.vmem [shape: bf16[2,40,32], index: 2, kind: input, shape index: {}, may-alias: {0,2}]
  %s3 = inlined_call_operand.vmem [shape: bf16[32,128], index: 3, kind: input, shape index: {}]
  %s4 = inlined_call_operand.vmem [shape: f32[1,128], index: 4, kind: input, shape index: {}]
  %s5 = inlined_call_operand.vmem [shape: f32[40,128], index: 5, kind: output, shape index: {}]
  %s6 = sld [smem:[#allocation0]]
  $region30: #{deep_speech_forward.5} parent=0
    _
  %s8 = ssub.s32 1, %s6
  %s9 = scalar_select 0, %s8, %s6
  // Predicated region
  $region2: #{deep_speech_forward.5} parent=0 // pred_check
    _
  $region3: #{deep_speech_forward.5} parent=0 // pred_check_branch
    %11 = sbr.rel (0) target = $region5
  $region4: #{deep_speech_forward.5} parent=0 // pred_region
    _
  $region5: #{deep_speech_forward.5} parent=0 // pred_fallthru
    _
  // Predicated region
  $region6: #{deep_speech_forward.5} parent=0 // pred_check
    _
  $region7: #{deep_speech_forward.5} parent=0 // pred_check_branch
    %13 = sbr.rel (0) target = $region9
  $region8: #{deep_speech_forward.5} parent=0 // pred_region
    _
  $region9: #{deep_speech_forward.5} parent=0 // pred_fallthru
    _
  // Predicated region
  $region10: #{deep_speech_forward.5} parent=0 // pred_check
    _
  $region11: #{deep_speech_forward.5} parent=0 // pred_check_branch
    %15 = sbr.rel (0) target = $region13
  $region12: #{deep_speech_forward.5} parent=0 // pred_region
    %s16 = scalar_lea.vmem %s2, 20
  $region13: #{deep_speech_forward.5} parent=0 // pred_fallthru
    _
  // Predicated region
  $region14: #{deep_speech_forward.5} parent=0 // pred_check
    _
  $region15: #{deep_speech_forward.5} parent=0 // pred_check_branch
    %18 = sbr.rel (0) target = $region17
  $region16: #{deep_speech_forward.5} parent=0 // pred_region
    _
  $region17: #{deep_speech_forward.5} parent=0 // pred_fallthru
    _
  // Predicated region
  $region18: #{deep_speech_forward.5} parent=0 // pred_check
    _
  $region19: #{deep_speech_forward.5} parent=0 // pred_check_branch
    %20 = sbr.rel (0) target = $region21
  $region20: #{deep_speech_forward.5} parent=0 // pred_region
    _
  $region21: #{deep_speech_forward.5} parent=0 // pred_fallthru
    _
  %s21 = scalar_lea.vmem %s2, 20
  %s22 = scalar_lea.vmem %s2, 20
  %v24 = vld [vmem:[%s0] sm:$0xf]
  %v25 = vld [vmem:[%s0 + $0x4] sm:$0xf]
  %v26 = vld [vmem:[%s0 + $0x8] sm:$0xf]
  %v27 = vld [vmem:[%s0 + $0xc] sm:$0xf]
  %v28 = vld [vmem:[%s0 + $0x10] sm:$0xf]
  %v29 = vld [vmem:[%s1] sm:$0xf]
  %v30 = vld [vmem:[%s1 + $0x4] sm:$0xf]
  %v31 = vld [vmem:[%s1 + $0x8] sm:$0xf]
  %v32 = vld [vmem:[%s1 + $0xc] sm:$0xf]
  %v33 = vld [vmem:[%s22] sm:$0xf]
  %v34 = vld [vmem:[%s22 + $0x4] sm:$0xf]
  %v35 = vld [vmem:[%s22 + $0x8] sm:$0xf]
  %v36 = vld [vmem:[%s22 + $0xc] sm:$0xf]
  %v37 = vld [vmem:[%s22 + $0x10] sm:$0xf]
  %v38 = vld [vmem:[%s3] sm:$0xf]
  %v39 = vld [vmem:[%s3 + $0x4] sm:$0xf]
  %v40 = vld [vmem:[%s3 + $0x8] sm:$0xf]
  %v41 = vld [vmem:[%s3 + $0xc] sm:$0xf]
  %v47 = vunpack.c.l.b16 %v33
  %v48 = vunpack.c.l.b16 %v34
  %v49 = vunpack.c.l.b16 %v35
  %v50 = vunpack.c.l.b16 %v36
  %v51 = vunpack.c.l.b16 %v37
  %v52 = vpack.c.b16 %v48, %v47
  %v53 = vpack.c.b16 %v50, %v49
  %v54 = vpack.c.b16 %v51, %v51
  %v59 = vunpack.c.l.b16 %v38
  %v60 = vunpack.c.l.b16 %v39
  %v61 = vunpack.c.l.b16 %v40
  %v62 = vunpack.c.l.b16 %v41
  %v63 = vpack.c.b16 %v60, %v59
  %v64 = vpack.c.b16 %v62, %v61
  %vm67 = vcmask 261120
  %v69 = vsel %vm67, %v52, 0
  %v72 = vsel %vm67, %v53, 0
  %v75 = vsel %vm67, %v54, 0
  %77 = vmatprep.subr.bf16.mxu0 0
  %78 = vmatpush1.bf16.msra.mxu0 0
  %79 = vmatprep.subr.bf16.mxu0 0
  %80 = vmatpush1.bf16.msra.mxu0 0
  %81 = vmatprep.subr.bf16.mxu0 0
  %82 = vmatpush1.bf16.msra.mxu0 0
  %83 = vmatprep.subr.bf16.mxu0 0
  %84 = vmatpush1.bf16.msra.mxu0 0
  %85 = vmatprep.subr.bf16.mxu0 0
  %86 = vmatpush1.bf16.msra.mxu0 0
  %87 = vmatprep.subr.bf16.mxu0 0
  %88 = vmatpush1.bf16.msra.mxu0 0
  %89 = vmatprep.subr.bf16.mxu0 0
  %90 = vmatpush1.bf16.msra.mxu0 %v64
  %91 = vmatprep.subr.bf16.mxu0 0
  %92 = vmatpush1.bf16.msra.mxu0 %v63
  %93 = vmatprep.subr.bf16.mxu0 0
  %94 = vmatpush2.bf16.msra.mxu0 0
  %95 = vmatprep.subr.bf16.mxu0 0
  %96 = vmatpush2.bf16.msra.mxu0 0
  %97 = vmatprep.subr.bf16.mxu0 0
  %98 = vmatpush2.bf16.msra.mxu0 0
  %99 = vmatprep.subr.bf16.mxu0 0
  %100 = vmatpush2.bf16.msra.mxu0 0
  %101 = vmatprep.subr.bf16.mxu0 0
  %102 = vmatpush2.bf16.msra.mxu0 0
  %103 = vmatprep.subr.bf16.mxu0 0
  %104 = vmatpush2.bf16.msra.mxu0 0
  %105 = vmatprep.subr.bf16.mxu0 0
  %106 = vmatpush2.bf16.msra.mxu0 0
  %107 = vmatprep.subr.bf16.mxu0 0
  %108 = vmatpush2.bf16.msra.mxu0 0
  %109 = vmatprep.mubr.bf16.mxu0 0
  %110 = vmatmul.mubr.bf16.gmra.mxu0 %v69
  %v111 = vpop.f32.mrf.mxu0
  %v112 = vadd.f32 0.0, %v111
  %v113 = vpop.f32.mrf.mxu0
  %v114 = vpop.f32.mrf.mxu0
  %v115 = vadd.f32 0.0, %v114
  %v116 = vpop.f32.mrf.mxu0
  %117 = vmatprep.mubr.bf16.mxu0 0
  %118 = vmatmul.mubr.bf16.gmra.mxu0 %v72
  %v119 = vpop.f32.mrf.mxu0
  %v120 = vadd.f32 0.0, %v119
  %v121 = vpop.f32.mrf.mxu0
  %v122 = vpop.f32.mrf.mxu0
  %v123 = vadd.f32 0.0, %v122
  %v124 = vpop.f32.mrf.mxu0
  %125 = vmatprep.mubr.bf16.mxu0 0
  %126 = vmatmul.mubr.bf16.gmra.mxu0 %v75
  %v127 = vpop.f32.mrf.mxu0
  %v128 = vadd.f32 0.0, %v127
  %v129 = vpop.f32.mrf.mxu0
  %v130 = vpop.f32.mrf.mxu0
  %v131 = vpop.f32.mrf.mxu0
  %132 = vdwg.mxu0
  %v138 = vunpack.c.l.b16 %v24
  %v139 = vunpack.c.l.b16 %v25
  %v140 = vunpack.c.l.b16 %v26
  %v141 = vunpack.c.l.b16 %v27
  %v142 = vunpack.c.l.b16 %v28
  %v143 = vpack.c.b16 %v139, %v138
  %v144 = vpack.c.b16 %v141, %v140
  %v145 = vpack.c.b16 %v142, %v142
  %v150 = vunpack.c.l.b16 %v29
  %v151 = vunpack.c.l.b16 %v30
  %v152 = vunpack.c.l.b16 %v31
  %v153 = vunpack.c.l.b16 %v32
  %v154 = vpack.c.b16 %v151, %v150
  %v155 = vpack.c.b16 %v153, %v152
  %v159 = vsel %vm67, %v143, 0
  %v162 = vsel %vm67, %v144, 0
  %v165 = vsel %vm67, %v145, 0
  %167 = vmatprep.subr.bf16.mxu0 0
  %168 = vmatpush1.bf16.msra.mxu0 0
  %169 = vmatprep.subr.bf16.mxu0 0
  %170 = vmatpush1.bf16.msra.mxu0 0
  %171 = vmatprep.subr.bf16.mxu0 0
  %172 = vmatpush1.bf16.msra.mxu0 0
  %173 = vmatprep.subr.bf16.mxu0 0
  %174 = vmatpush1.bf16.msra.mxu0 0
  %175 = vmatprep.subr.bf16.mxu0 0
  %176 = vmatpush1.bf16.msra.mxu0 0
  %177 = vmatprep.subr.bf16.mxu0 0
  %178 = vmatpush1.bf16.msra.mxu0 0
  %179 = vmatprep.subr.bf16.mxu0 0
  %180 = vmatpush1.bf16.msra.mxu0 %v155
  %181 = vmatprep.subr.bf16.mxu0 0
  %182 = vmatpush1.bf16.msra.mxu0 %v154
  %183 = vmatprep.subr.bf16.mxu0 0
  %184 = vmatpush2.bf16.msra.mxu0 0
  %185 = vmatprep.subr.bf16.mxu0 0
  %186 = vmatpush2.bf16.msra.mxu0 0
  %187 = vmatprep.subr.bf16.mxu0 0
  %188 = vmatpush2.bf16.msra.mxu0 0
  %189 = vmatprep.subr.bf16.mxu0 0
  %190 = vmatpush2.bf16.msra.mxu0 0
  %191 = vmatprep.subr.bf16.mxu0 0
  %192 = vmatpush2.bf16.msra.mxu0 0
  %193 = vmatprep.subr.bf16.mxu0 0
  %194 = vmatpush2.bf16.msra.mxu0 0
  %195 = vmatprep.subr.bf16.mxu0 0
  %196 = vmatpush2.bf16.msra.mxu0 0
  %197 = vmatprep.subr.bf16.mxu0 0
  %198 = vmatpush2.bf16.msra.mxu0 0
  %199 = vmatprep.mubr.bf16.mxu0 0
  %200 = vmatmul.mubr.bf16.gmra.mxu0 %v159
  %v201 = vpop.f32.mrf.mxu0
  %v202 = vadd.f32 %v112, %v201
  %v203 = vpop.f32.mrf.mxu0
  %v204 = vpop.f32.mrf.mxu0
  %v205 = vadd.f32 %v115, %v204
  %v206 = vpop.f32.mrf.mxu0
  %207 = vmatprep.mubr.bf16.mxu0 0
  %208 = vmatmul.mubr.bf16.gmra.mxu0 %v162
  %v209 = vpop.f32.mrf.mxu0
  %v210 = vadd.f32 %v120, %v209
  %v211 = vpop.f32.mrf.mxu0
  %v212 = vpop.f32.mrf.mxu0
  %v213 = vadd.f32 %v123, %v212
  %v214 = vpop.f32.mrf.mxu0
  %215 = vmatprep.mubr.bf16.mxu0 0
  %216 = vmatmul.mubr.bf16.gmra.mxu0 %v165
  %v217 = vpop.f32.mrf.mxu0
  %v218 = vadd.f32 %v128, %v217
  %v219 = vpop.f32.mrf.mxu0
  %v220 = vpop.f32.mrf.mxu0
  %v221 = vpop.f32.mrf.mxu0
  %222 = vdwg.mxu0
  %v223 = vld [vmem:[%s4] sm:$0x1]
  %v225 = vlaneseq
  %v226 = vshrl.u32 %v225, 7
  %v227 = vsub.s32 0, %v226
  %v228 = vrot.slane %v223, %v227
  %v230 = vadd.f32 %v202, %v228
  %v231 = vadd.f32 %v205, %v228
  %v232 = vadd.f32 %v210, %v228
  %v233 = vadd.f32 %v213, %v228
  %v234 = vadd.f32 %v218, %v228
  %235 = vmax.xlane.f32.xlu0 %v230
  %v236 = vpop.xlane.xlu0 %235
  %237 = vmax.xlane.f32.xlu0 %v231
  %v238 = vpop.xlane.xlu0 %237
  %239 = vmax.xlane.f32.xlu0 %v232
  %v240 = vpop.xlane.xlu0 %239
  %241 = vmax.xlane.f32.xlu0 %v233
  %v242 = vpop.xlane.xlu0 %241
  %243 = vmax.xlane.f32.xlu0 %v234
  %v244 = vpop.xlane.xlu0 %243
  %v245 = vsub.f32 %v230, %v236
  %v246 = vsub.f32 %v231, %v238
  %v247 = vsub.f32 %v232, %v240
  %v248 = vsub.f32 %v233, %v242
  %v249 = vsub.f32 %v234, %v244
  %v250 = vmul.f32 %v245, 1.442695
  %v251 = vpow.pop %v250
  %v252 = vmul.f32 %v246, 1.442695
  %v253 = vpow.pop %v252
  %v254 = vmul.f32 %v247, 1.442695
  %v255 = vpow.pop %v254
  %v256 = vmul.f32 %v248, 1.442695
  %v257 = vpow.pop %v256
  %v258 = vmul.f32 %v249, 1.442695
  %v259 = vpow.pop %v258
  %260 = vadd.xlane.f32.xlu0 %v251
  %v261 = vpop.xlane.xlu0 %260
  %262 = vadd.xlane.f32.xlu0 %v253
  %v263 = vpop.xlane.xlu0 %262
  %264 = vadd.xlane.f32.xlu0 %v255
  %v265 = vpop.xlane.xlu0 %264
  %266 = vadd.xlane.f32.xlu0 %v257
  %v267 = vpop.xlane.xlu0 %266
  %268 = vadd.xlane.f32.xlu0 %v259
  %v269 = vpop.xlane.xlu0 %268
  %v270 = vlog2.pop %v261
  %v271 = vmul.f32 %v270, 0.6931472
  %v272 = vlog2.pop %v263
  %v273 = vmul.f32 %v272, 0.6931472
  %v274 = vlog2.pop %v265
  %v275 = vmul.f32 %v274, 0.6931472
  %v276 = vlog2.pop %v267
  %v277 = vmul.f32 %v276, 0.6931472
  %v278 = vlog2.pop %v269
  %v279 = vmul.f32 %v278, 0.6931472
  %v280 = vsub.f32 %v245, %v271
  %v281 = vsub.f32 %v246, %v273
  %v282 = vsub.f32 %v247, %v275
  %v283 = vsub.f32 %v248, %v277
  %v284 = vsub.f32 %v249, %v279
  %285 = vst [vmem:[%s5] sm:$0xff] %v280
  %286 = vst [vmem:[%s5 + $0x8] sm:$0xff] %v281
  %287 = vst [vmem:[%s5 + $0x10] sm:$0xff] %v282
  %288 = vst [vmem:[%s5 + $0x18] sm:$0xff] %v283
  %289 = vst [vmem:[%s5 + $0x20] sm:$0xff] %v284
  // Predicated region
  $region22: #{deep_speech_forward.5} parent=0 // pred_check
    _
  $region23: #{deep_speech_forward.5} parent=0 // pred_check_branch
    %291 = sbr.rel (0) target = $region25
  $region24: #{deep_speech_forward.5} parent=0 // pred_region
    _
  $region25: #{deep_speech_forward.5} parent=0 // pred_fallthru
    _
  // Predicated region
  $region26: #{deep_speech_forward.5} parent=0 // pred_check
    _
  $region27: #{deep_speech_forward.5} parent=0 // pred_check_branch
    %293 = sbr.rel (0) target = $region29
  $region28: #{deep_speech_forward.5} parent=0 // pred_region
    _
  $region29: #{deep_speech_forward.5} parent=0 // pred_fallthru
    _

</llo_original>
